<compile_context>
chip_gen: v7x
topology: tpu7x:2x2x1
jax: 0.10.0
libtpu: 0.0.40
codegen_flags: <defaults>
</compile_context>

<pallas_src>
import numpy as np
import jax
import jax.numpy as jnp
from jax.experimental import pallas as pl
from jax.experimental.pallas import tpu as pltpu


# ------------------------------ small helpers -------------------------------

def _roll_left(x, k, size):
    """result[..., q] = x[..., (q + k) % size] for a static shift k."""
    k = k % size
    if k == 0:
        return x
    return jnp.concatenate([x[:, k:], x[:, :k]], axis=1)


def _build_masks(h, w, block_b, n_conv, kernel_size):
    """Per-layer (k*k, lanes) 0/1 'same'-padding masks, lane order (row, img, col)."""
    r = kernel_size // 2
    taps = [(dy, dx) for dy in range(-r, r + 1) for dx in range(-r, r + 1)]
    masks = []
    for li in range(n_conv):
        hi, s = h >> li, 1 << li
        brw = block_b * w
        lanes = hi * brw
        q = np.arange(lanes)
        rr = q // brw               # row within image
        cc = q % w                  # physical column within row
        m = np.zeros((len(taps), lanes), np.float32)
        for t, (dy, dx) in enumerate(taps):
            valid = (rr + dy >= 0) & (rr + dy < hi) & \
                    (cc + s * dx >= 0) & (cc + s * dx < w)
            m[t] = valid.astype(np.float32)
        masks.append(jnp.asarray(m))
    return masks


# ------------------------------ Pallas kernel -------------------------------

def make_fused_forward_kernel(*, h, w, block_b, channels, kernel_size):
    assert kernel_size % 2 == 1, "padding='same' fold assumes an odd kernel"
    n_conv = len(channels) - 1
    assert h % (2 ** n_conv) == 0 and w % (2 ** n_conv) == 0
    row_w = w
    brw = block_b * row_w                       # lanes per spatial row (all images)
    rk = kernel_size // 2
    taps = [(dy, dx) for dy in range(-rk, rk + 1) for dx in range(-rk, rk + 1)]
    layer_h = [h >> i for i in range(n_conv + 1)]
    h_f = layer_h[-1]

    def kernel(*refs):
        x_ref = refs[0]
        conv_refs = refs[1:1 + 3 * n_conv]          # (weight, shift, mask) per layer
        wf1_ref, b1_ref, wf2_ref, b2_ref = refs[1 + 3 * n_conv:-1]
        o_ref = refs[-1]

        # (C_in, H * B * row_w) f32, lanes ordered (row, image, col).
        act = x_ref[0]
        for li in range(n_conv):
            hi, s = layer_h[li], 1 << li
            lanes = hi * brw
            w_ref = conv_refs[3 * li]
            s_ref = conv_refs[3 * li + 1]
            m_ref = conv_refs[3 * li + 2]

            # ---- in-kernel im2col: shifted lane slices * precomputed 0/1 masks ----
            cols = []
            for t, (dy, dx) in enumerate(taps):
                shifted = _roll_left(act, dy * brw + s * dx, lanes)
                if dy == 0 and dx == 0:             # center tap: mask is all-ones
                    cols.append(shifted)
                else:
                    cols.append(shifted * m_ref[t:t + 1, :])
            cols = jnp.concatenate(cols, axis=0).astype(jnp.bfloat16)  # (k*k*C_in, lanes)

            # ---- conv on the MXU (BN scale pre-folded into bf16 weights) ----
            y = jnp.dot(w_ref[...], cols, preferred_element_type=jnp.float32)

            # ---- MaxPool2d(2,2) on raw conv output, then folded shift + ReLU ----
            v = jnp.maximum(y, _roll_left(y, brw, lanes))              # rows 2r, 2r+1
            v = jnp.concatenate(                                       # keep even rows
                [v[:, (2 * i) * brw:(2 * i + 1) * brw] for i in range(hi // 2)], axis=1)
            v = jnp.maximum(v, _roll_left(v, s, (hi // 2) * brw))      # cols c, c+s
            act = jnp.maximum(v + s_ref[...], 0.0)                     # BN shift + ReLU
            # valid columns now sit at stride 2*s; compaction deferred into fc1.

        # ---- regroup lanes (row, image, col) -> (image, row, col) ----
        c_f = channels[-1]
        act = jnp.concatenate(
            [act[:, ri * brw + b * row_w: ri * brw + (b + 1) * row_w]
             for b in range(block_b) for ri in range(h_f)], axis=1)    # (c_f, B*h_f*row_w)

        # ---- flatten to a (B, feat) matrix (column order (c, row, col)) ----
        L = h_f * row_w
        feat = jnp.concatenate(
            [jnp.concatenate([act[c:c + 1, b * L:(b + 1) * L] for c in range(c_f)],
                             axis=1)
             for b in range(block_b)], axis=0)                         # (B, c_f*L)

        # ---- fc1 + ReLU + fc2 (dropout_fc is an inference no-op) ----
        hid = jnp.dot(feat.astype(jnp.bfloat16), wf1_ref[...],
                      preferred_element_type=jnp.float32) + b1_ref[...]
        hid = jnp.maximum(hid, 0.0)
        logits = jnp.dot(hid.astype(jnp.bfloat16), wf2_ref[...],
                         preferred_element_type=jnp.float32) + b2_ref[...]
        o_ref[0] = logits.astype(o_ref.dtype)

    return kernel


# --------------------------- parameter preparation ---------------------------

def _fold_conv(w_oihw, b, gamma, beta, mean, var, eps=1e-5):
    """Fold conv bias + eval BatchNorm into (bf16 weight matrix, f32 shift)."""
    cout, cin, kh, kw = w_oihw.shape
    scale = gamma / jnp.sqrt(var + eps)
    wmat = (w_oihw.transpose(0, 2, 3, 1).reshape(cout, kh * kw * cin)
            * scale[:, None]).astype(jnp.bfloat16)          # column order (kh, kw, cin)
    shift = (beta + (b - mean) * scale).reshape(cout, 1).astype(jnp.float32)
    return wmat, shift


def _fold_fc1(fc1_w, c_f, h_f, w_f, row_w, s_f):
    """Embed fc1 weights (torch flatten order c*h_f*w_f + y*w_f + x) into the
    kernel's sparse (c, h_f*row_w) feature layout (valid rows at column stride
    s_f, zeros elsewhere absorb the un-compacted garbage lanes)."""
    hidden = fc1_w.shape[1]
    w3 = fc1_w.reshape(c_f, h_f * w_f, hidden)
    q = (row_w * jnp.arange(h_f)[:, None] + s_f * jnp.arange(w_f)[None, :]).reshape(-1)
    big = jnp.zeros((c_f, h_f * row_w, hidden), fc1_w.dtype).at[:, q, :].set(w3)
    return big.reshape(c_f * h_f * row_w, hidden).astype(jnp.bfloat16)


# ------------------------------- JAX wrapper ---------------------------------

def cnn_clf_forward(x_nchw, params, *, input_hw, channels, kernel_size,
                    num_classes, block_b=8):
    # TODO(synk): dropout_input / dropout_conv / dropout_fc are inference no-ops
    # and max_norm is a training-time parameter-update side effect; neither is
    # part of the forward compute.
    n = x_nchw.shape[0]
    h, w = input_hw
    c_in = channels[0]
    n_conv = len(channels) - 1
    h_f, w_f, s_f = h >> n_conv, w >> n_conv, 1 << n_conv

    g = -(-n // block_b)                     # grid steps of block_b images each
    n_pad = g * block_b
    x = x_nchw.astype(jnp.float32)
    if n_pad != n:
        x = jnp.concatenate(
            [x, jnp.zeros((n_pad - n, c_in, h, w), jnp.float32)], axis=0)
    # (g, B, C, H, W) -> (g, C, H, B, W) -> (g, C, H*B*W): lane order (row, img, col)
    x_lanes = (x.reshape(g, block_b, c_in, h, w)
                .transpose(0, 2, 3, 1, 4)
                .reshape(g, c_in, h * block_b * w))

    # One-time parameter prep (BN fold, bf16 cast, fc1 layout fold, tap masks).
    masks = _build_masks(h, w, block_b, n_conv, kernel_size)
    weight_ops = []
    for li, layer in enumerate(params["conv_layers"]):
        wm, sh = _fold_conv(layer["w"], layer["b"], layer["gamma"],
                            layer["beta"], layer["mean"], layer["var"])
        weight_ops += [wm, sh, masks[li]]
    weight_ops += [
        _fold_fc1(params["fc1_w"], channels[-1], h_f, w_f, w, s_f),
        params["fc1_b"].reshape(1, -1).astype(jnp.float32),
        params["fc2_w"].astype(jnp.bfloat16),
        params["fc2_b"].reshape(1, -1).astype(jnp.float32),
    ]

    kernel = make_fused_forward_kernel(h=h, w=w, block_b=block_b,
                                       channels=channels, kernel_size=kernel_size)

    def _const_spec(arr):
        zeros = (0,) * arr.ndim
        return pl.BlockSpec(arr.shape, lambda i, z=zeros: z)

    out = pl.pallas_call(
        kernel,
        out_shape=jax.ShapeDtypeStruct((g, block_b, num_classes), jnp.float32),
        grid=(g,),
        in_specs=[pl.BlockSpec((1, c_in, h * block_b * w), lambda i: (i, 0, 0))]
                 + [_const_spec(a) for a in weight_ops],
        out_specs=pl.BlockSpec((1, block_b, num_classes), lambda i: (i, 0, 0)),
        compiler_params=pltpu.CompilerParams(dimension_semantics=("parallel",)),
    )(x_lanes, *weight_ops)
    return out.reshape(n_pad, num_classes)[:n]


# --------------------------- pure-JAX reference ------------------------------

def _reference_forward(x, params):
    a = x
    for layer in params["conv_layers"]:
        a = jax.lax.conv_general_dilated(a, layer["w"], (1, 1), "SAME",
                                         dimension_numbers=("NCHW", "OIHW", "NCHW"))
        a = a + layer["b"][None, :, None, None]
        scale = layer["gamma"] / jnp.sqrt(layer["var"] + 1e-5)
        a = ((a - layer["mean"][None, :, None, None]) * scale[None, :, None, None]
             + layer["beta"][None, :, None, None])
        a = jnp.maximum(a, 0.0)
        a = jax.lax.reduce_window(a, -jnp.inf, jax.lax.max,
                                  (1, 1, 2, 2), (1, 1, 2, 2), "VALID")
    a = a.reshape(a.shape[0], -1)
    a = jnp.maximum(a @ params["fc1_w"] + params["fc1_b"], 0.0)
    return a @ params["fc2_w"] + params["fc2_b"]


# ------------------------- deterministic parameters -------------------------

def init_params(key, input_hw, num_channels, kernel_size,
                linear_layer_size, num_classes):
    h, w = input_hw
    chans = [1] + list(num_channels)
    layers = []
    for i in range(len(num_channels)):
        key, k1, k2, k3, k4, k5, k6 = jax.random.split(key, 7)
        cin, cout = chans[i], chans[i + 1]
        fan_in = cin * kernel_size * kernel_size
        layers.append(dict(
            w=jax.random.normal(k1, (cout, cin, kernel_size, kernel_size),
                                jnp.float32) / jnp.sqrt(fan_in),
            b=0.05 * jax.random.normal(k2, (cout,), jnp.float32),
            gamma=1.0 + 0.1 * jax.random.normal(k3, (cout,), jnp.float32),
            beta=0.1 * jax.random.normal(k4, (cout,), jnp.float32),
            mean=0.1 * jax.random.normal(k5, (cout,), jnp.float32),
            var=jax.random.uniform(k6, (cout,), jnp.float32, 0.5, 1.5),
        ))
        h, w = h // 2, w // 2
    feat = h * w * chans[-1]
    key, k1, k2, k3, k4 = jax.random.split(key, 5)
    return dict(
        conv_layers=layers,
        fc1_w=jax.random.normal(k1, (feat, linear_layer_size),
                                jnp.float32) / jnp.sqrt(feat),
        fc1_b=0.05 * jax.random.normal(k2, (linear_layer_size,), jnp.float32),
        fc2_w=jax.random.normal(k3, (linear_layer_size, num_classes),
                                jnp.float32) / jnp.sqrt(linear_layer_size),
        fc2_b=0.05 * jax.random.normal(k4, (num_classes,), jnp.float32),
    )


if __name__ == "__main__":
    # Module config (mirrors CnnClf.__init__): input 16x16, num_channels=[4, 8],
    # kernel_size=3, linear_layer_size=32, 3 classes.  Batch 16 -> 2 grid steps
    # of 8 images each (keeps both v7x TensorCores busy).
    key = jax.random.PRNGKey(0)
    key, kx, kp = jax.random.split(key, 3)
    x = jax.random.normal(kx, (16, 1, 16, 16), jnp.float32)   # NCHW, 1 input channel
    params = init_params(kp, input_hw=(16, 16), num_channels=[4, 8],
                         kernel_size=3, linear_layer_size=32, num_classes=3)

    @jax.jit
    def fwd(xx, pp):
        return cnn_clf_forward(xx, pp, input_hw=(16, 16), channels=[1, 4, 8],
                               kernel_size=3, num_classes=3, block_b=8)

    logits = fwd(x, params)
    jax.block_until_ready(logits)
    assert logits.shape == (16, 3) and logits.dtype == jnp.float32

    ref = _reference_forward(x, params)
    err = float(jnp.max(jnp.abs(logits - ref)))
    ref_mag = float(jnp.max(jnp.abs(ref)))
    # bf16 weights/activations => not bit-identical to the f32 reference.
    assert err <= 0.1 * max(1.0, ref_mag), f"mismatch: max abs err {err}"
    print("KERNEL_OK")
</pallas_src>

<mosaic_0001>
module attributes {stable_mosaic.version = 11 : i64} {
  func.func @kernel(%arg0: i32, %arg1: memref<1x1x2048xf32, #tpu.memory_space<vmem>>, %arg2: memref<4x9xbf16, #tpu.memory_space<vmem>>, %arg3: memref<4x1xf32, #tpu.memory_space<vmem>>, %arg4: memref<9x2048xf32, #tpu.memory_space<vmem>>, %arg5: memref<8x36xbf16, #tpu.memory_space<vmem>>, %arg6: memref<8x1xf32, #tpu.memory_space<vmem>>, %arg7: memref<9x1024xf32, #tpu.memory_space<vmem>>, %arg8: memref<512x32xbf16, #tpu.memory_space<vmem>>, %arg9: memref<1x32xf32, #tpu.memory_space<vmem>>, %arg10: memref<32x3xbf16, #tpu.memory_space<vmem>>, %arg11: memref<1x3xf32, #tpu.memory_space<vmem>>, %arg12: memref<1x8x3xf32, #tpu.memory_space<vmem>>) attributes {dimension_semantics = [#tpu.dimension_semantics<parallel>], iteration_bounds = array<i64: 2>, scalar_prefetch = 0 : i64, scratch_operands = 0 : i64, tpu.core_type = #tpu.core_type<tc>, window_params = [{transform_indices = @transform_0, window_bounds = array<i64: 1, 1, 2048>}, {pipeline_mode = #tpu.pipeline_mode<synchronous>, transform_indices = @transform_1, window_bounds = array<i64: 4, 9>}, {pipeline_mode = #tpu.pipeline_mode<synchronous>, transform_indices = @transform_2, window_bounds = array<i64: 4, 1>}, {pipeline_mode = #tpu.pipeline_mode<synchronous>, transform_indices = @transform_3, window_bounds = array<i64: 9, 2048>}, {pipeline_mode = #tpu.pipeline_mode<synchronous>, transform_indices = @transform_4, window_bounds = array<i64: 8, 36>}, {pipeline_mode = #tpu.pipeline_mode<synchronous>, transform_indices = @transform_5, window_bounds = array<i64: 8, 1>}, {pipeline_mode = #tpu.pipeline_mode<synchronous>, transform_indices = @transform_6, window_bounds = array<i64: 9, 1024>}, {pipeline_mode = #tpu.pipeline_mode<synchronous>, transform_indices = @transform_7, window_bounds = array<i64: 512, 32>}, {pipeline_mode = #tpu.pipeline_mode<synchronous>, transform_indices = @transform_8, window_bounds = array<i64: 1, 32>}, {pipeline_mode = #tpu.pipeline_mode<synchronous>, transform_indices = @transform_9, window_bounds = array<i64: 32, 3>}, {pipeline_mode = #tpu.pipeline_mode<synchronous>, transform_indices = @transform_10, window_bounds = array<i64: 1, 3>}, {transform_indices = @transform_11, window_bounds = array<i64: 1, 8, 3>}]} {
    %c0 = arith.constant 0 : index
    %c0_0 = arith.constant 0 : index
    %c0_1 = arith.constant 0 : index
    %0 = vector.load %arg1[%c0, %c0_0, %c0_1] : memref<1x1x2048xf32, #tpu.memory_space<vmem>>, vector<1x1x2048xf32>
    %1 = vector.shape_cast %0 : vector<1x1x2048xf32> to vector<1x2048xf32>
    %2 = vector.extract_strided_slice %1 {offsets = [0, 1919], sizes = [1, 129], strides = [1, 1]} : vector<1x2048xf32> to vector<1x129xf32>
    %3 = vector.extract_strided_slice %1 {offsets = [0, 0], sizes = [1, 1919], strides = [1, 1]} : vector<1x2048xf32> to vector<1x1919xf32>
    %4 = tpu.concatenate %2, %3 in 1 : vector<1x129xf32>, vector<1x1919xf32> -> vector<1x2048xf32>
    %c0_2 = arith.constant 0 : index
    %c0_3 = arith.constant 0 : index
    %5 = vector.load %arg4[%c0_2, %c0_3] : memref<9x2048xf32, #tpu.memory_space<vmem>>, vector<1x2048xf32>
    %6 = arith.mulf %4, %5 : vector<1x2048xf32>
    %7 = vector.extract_strided_slice %1 {offsets = [0, 1920], sizes = [1, 128], strides = [1, 1]} : vector<1x2048xf32> to vector<1x128xf32>
    %8 = vector.extract_strided_slice %1 {offsets = [0, 0], sizes = [1, 1920], strides = [1, 1]} : vector<1x2048xf32> to vector<1x1920xf32>
    %9 = tpu.concatenate %7, %8 in 1 : vector<1x128xf32>, vector<1x1920xf32> -> vector<1x2048xf32>
    %c1 = arith.constant 1 : index
    %c0_4 = arith.constant 0 : index
    %10 = vector.load %arg4[%c1, %c0_4] : memref<9x2048xf32, #tpu.memory_space<vmem>>, vector<1x2048xf32>
    %11 = arith.mulf %9, %10 : vector<1x2048xf32>
    %12 = vector.extract_strided_slice %1 {offsets = [0, 1921], sizes = [1, 127], strides = [1, 1]} : vector<1x2048xf32> to vector<1x127xf32>
    %13 = vector.extract_strided_slice %1 {offsets = [0, 0], sizes = [1, 1921], strides = [1, 1]} : vector<1x2048xf32> to vector<1x1921xf32>
    %14 = tpu.concatenate %12, %13 in 1 : vector<1x127xf32>, vector<1x1921xf32> -> vector<1x2048xf32>
    %c2 = arith.constant 2 : index
    %c0_5 = arith.constant 0 : index
    %15 = vector.load %arg4[%c2, %c0_5] : memref<9x2048xf32, #tpu.memory_space<vmem>>, vector<1x2048xf32>
    %16 = arith.mulf %14, %15 : vector<1x2048xf32>
    %17 = vector.extract_strided_slice %1 {offsets = [0, 2047], sizes = [1, 1], strides = [1, 1]} : vector<1x2048xf32> to vector<1x1xf32>
    %18 = vector.extract_strided_slice %1 {offsets = [0, 0], sizes = [1, 2047], strides = [1, 1]} : vector<1x2048xf32> to vector<1x2047xf32>
    %19 = tpu.concatenate %17, %18 in 1 : vector<1x1xf32>, vector<1x2047xf32> -> vector<1x2048xf32>
    %c3 = arith.constant 3 : index
    %c0_6 = arith.constant 0 : index
    %20 = vector.load %arg4[%c3, %c0_6] : memref<9x2048xf32, #tpu.memory_space<vmem>>, vector<1x2048xf32>
    %21 = arith.mulf %19, %20 : vector<1x2048xf32>
    %22 = vector.extract_strided_slice %1 {offsets = [0, 1], sizes = [1, 2047], strides = [1, 1]} : vector<1x2048xf32> to vector<1x2047xf32>
    %23 = vector.extract_strided_slice %1 {offsets = [0, 0], sizes = [1, 1], strides = [1, 1]} : vector<1x2048xf32> to vector<1x1xf32>
    %24 = tpu.concatenate %22, %23 in 1 : vector<1x2047xf32>, vector<1x1xf32> -> vector<1x2048xf32>
    %c5 = arith.constant 5 : index
    %c0_7 = arith.constant 0 : index
    %25 = vector.load %arg4[%c5, %c0_7] : memref<9x2048xf32, #tpu.memory_space<vmem>>, vector<1x2048xf32>
    %26 = arith.mulf %24, %25 : vector<1x2048xf32>
    %27 = vector.extract_strided_slice %1 {offsets = [0, 127], sizes = [1, 1921], strides = [1, 1]} : vector<1x2048xf32> to vector<1x1921xf32>
    %28 = vector.extract_strided_slice %1 {offsets = [0, 0], sizes = [1, 127], strides = [1, 1]} : vector<1x2048xf32> to vector<1x127xf32>
    %29 = tpu.concatenate %27, %28 in 1 : vector<1x1921xf32>, vector<1x127xf32> -> vector<1x2048xf32>
    %c6 = arith.constant 6 : index
    %c0_8 = arith.constant 0 : index
    %30 = vector.load %arg4[%c6, %c0_8] : memref<9x2048xf32, #tpu.memory_space<vmem>>, vector<1x2048xf32>
    %31 = arith.mulf %29, %30 : vector<1x2048xf32>
    %32 = vector.extract_strided_slice %1 {offsets = [0, 128], sizes = [1, 1920], strides = [1, 1]} : vector<1x2048xf32> to vector<1x1920xf32>
    %33 = vector.extract_strided_slice %1 {offsets = [0, 0], sizes = [1, 128], strides = [1, 1]} : vector<1x2048xf32> to vector<1x128xf32>
    %34 = tpu.concatenate %32, %33 in 1 : vector<1x1920xf32>, vector<1x128xf32> -> vector<1x2048xf32>
    %c7 = arith.constant 7 : index
    %c0_9 = arith.constant 0 : index
    %35 = vector.load %arg4[%c7, %c0_9] : memref<9x2048xf32, #tpu.memory_space<vmem>>, vector<1x2048xf32>
    %36 = arith.mulf %34, %35 : vector<1x2048xf32>
    %37 = vector.extract_strided_slice %1 {offsets = [0, 129], sizes = [1, 1919], strides = [1, 1]} : vector<1x2048xf32> to vector<1x1919xf32>
    %38 = vector.extract_strided_slice %1 {offsets = [0, 0], sizes = [1, 129], strides = [1, 1]} : vector<1x2048xf32> to vector<1x129xf32>
    %39 = tpu.concatenate %37, %38 in 1 : vector<1x1919xf32>, vector<1x129xf32> -> vector<1x2048xf32>
    %c8 = arith.constant 8 : index
    %c0_10 = arith.constant 0 : index
    %40 = vector.load %arg4[%c8, %c0_10] : memref<9x2048xf32, #tpu.memory_space<vmem>>, vector<1x2048xf32>
    %41 = arith.mulf %39, %40 : vector<1x2048xf32>
    %42 = tpu.concatenate %6, %11, %16, %21, %1, %26, %31, %36, %41 in 0 : vector<1x2048xf32>, vector<1x2048xf32>, vector<1x2048xf32>, vector<1x2048xf32>, vector<1x2048xf32>, vector<1x2048xf32>, vector<1x2048xf32>, vector<1x2048xf32>, vector<1x2048xf32> -> vector<9x2048xf32>
    %43 = arith.truncf %42 : vector<9x2048xf32> to vector<9x2048xbf16>
    %c0_11 = arith.constant 0 : index
    %c0_12 = arith.constant 0 : index
    %44 = vector.load %arg2[%c0_11, %c0_12] : memref<4x9xbf16, #tpu.memory_space<vmem>>, vector<4x9xbf16>
    %cst = arith.constant dense<0.000000e+00> : vector<4x2048xf32>
    %45 = tpu.matmul %44, %43, %cst {dimension_numbers = #tpu.dot_dimension_numbers<[1], [0], [0], [1], [0, 0, 1, 1], [], []>} : vector<4x9xbf16>, vector<9x2048xbf16>, vector<4x2048xf32> -> vector<4x2048xf32>
    %46 = vector.extract_strided_slice %45 {offsets = [0, 128], sizes = [4, 1920], strides = [1, 1]} : vector<4x2048xf32> to vector<4x1920xf32>
    %47 = vector.extract_strided_slice %45 {offsets = [0, 0], sizes = [4, 128], strides = [1, 1]} : vector<4x2048xf32> to vector<4x128xf32>
    %48 = tpu.concatenate %46, %47 in 1 : vector<4x1920xf32>, vector<4x128xf32> -> vector<4x2048xf32>
    %49 = arith.maximumf %45, %48 : vector<4x2048xf32>
    %50 = vector.extract_strided_slice %49 {offsets = [0, 0], sizes = [4, 128], strides = [1, 1]} : vector<4x2048xf32> to vector<4x128xf32>
    %51 = vector.extract_strided_slice %49 {offsets = [0, 256], sizes = [4, 128], strides = [1, 1]} : vector<4x2048xf32> to vector<4x128xf32>
    %52 = vector.extract_strided_slice %49 {offsets = [0, 512], sizes = [4, 128], strides = [1, 1]} : vector<4x2048xf32> to vector<4x128xf32>
    %53 = vector.extract_strided_slice %49 {offsets = [0, 768], sizes = [4, 128], strides = [1, 1]} : vector<4x2048xf32> to vector<4x128xf32>
    %54 = vector.extract_strided_slice %49 {offsets = [0, 1024], sizes = [4, 128], strides = [1, 1]} : vector<4x2048xf32> to vector<4x128xf32>
    %55 = vector.extract_strided_slice %49 {offsets = [0, 1280], sizes = [4, 128], strides = [1, 1]} : vector<4x2048xf32> to vector<4x128xf32>
    %56 = vector.extract_strided_slice %49 {offsets = [0, 1536], sizes = [4, 128], strides = [1, 1]} : vector<4x2048xf32> to vector<4x128xf32>
    %57 = vector.extract_strided_slice %49 {offsets = [0, 1792], sizes = [4, 128], strides = [1, 1]} : vector<4x2048xf32> to vector<4x128xf32>
    %58 = tpu.concatenate %50, %51, %52, %53, %54, %55, %56, %57 in 1 : vector<4x128xf32>, vector<4x128xf32>, vector<4x128xf32>, vector<4x128xf32>, vector<4x128xf32>, vector<4x128xf32>, vector<4x128xf32>, vector<4x128xf32> -> vector<4x1024xf32>
    %59 = vector.extract_strided_slice %58 {offsets = [0, 1], sizes = [4, 1023], strides = [1, 1]} : vector<4x1024xf32> to vector<4x1023xf32>
    %60 = vector.extract_strided_slice %58 {offsets = [0, 0], sizes = [4, 1], strides = [1, 1]} : vector<4x1024xf32> to vector<4x1xf32>
    %61 = tpu.concatenate %59, %60 in 1 : vector<4x1023xf32>, vector<4x1xf32> -> vector<4x1024xf32>
    %62 = arith.maximumf %58, %61 : vector<4x1024xf32>
    %c0_13 = arith.constant 0 : index
    %c0_14 = arith.constant 0 : index
    %63 = vector.load %arg3[%c0_13, %c0_14] : memref<4x1xf32, #tpu.memory_space<vmem>>, vector<4x1xf32>
    %64 = vector.broadcast %63 : vector<4x1xf32> to vector<4x1024xf32>
    %65 = arith.addf %62, %64 : vector<4x1024xf32>
    %cst_15 = arith.constant 0.000000e+00 : f32
    %66 = vector.broadcast %cst_15 : f32 to vector<4x1024xf32>
    %67 = arith.maximumf %65, %66 : vector<4x1024xf32>
    %68 = vector.extract_strided_slice %67 {offsets = [0, 894], sizes = [4, 130], strides = [1, 1]} : vector<4x1024xf32> to vector<4x130xf32>
    %69 = vector.extract_strided_slice %67 {offsets = [0, 0], sizes = [4, 894], strides = [1, 1]} : vector<4x1024xf32> to vector<4x894xf32>
    %70 = tpu.concatenate %68, %69 in 1 : vector<4x130xf32>, vector<4x894xf32> -> vector<4x1024xf32>
    %c0_16 = arith.constant 0 : index
    %c0_17 = arith.constant 0 : index
    %71 = vector.load %arg7[%c0_16, %c0_17] : memref<9x1024xf32, #tpu.memory_space<vmem>>, vector<1x1024xf32>
    %72 = vector.broadcast %71 : vector<1x1024xf32> to vector<4x1024xf32>
    %73 = arith.mulf %70, %72 : vector<4x1024xf32>
    %74 = vector.extract_strided_slice %67 {offsets = [0, 896], sizes = [4, 128], strides = [1, 1]} : vector<4x1024xf32> to vector<4x128xf32>
    %75 = vector.extract_strided_slice %67 {offsets = [0, 0], sizes = [4, 896], strides = [1, 1]} : vector<4x1024xf32> to vector<4x896xf32>
    %76 = tpu.concatenate %74, %75 in 1 : vector<4x128xf32>, vector<4x896xf32> -> vector<4x1024xf32>
    %c1_18 = arith.constant 1 : index
    %c0_19 = arith.constant 0 : index
    %77 = vector.load %arg7[%c1_18, %c0_19] : memref<9x1024xf32, #tpu.memory_space<vmem>>, vector<1x1024xf32>
    %78 = vector.broadcast %77 : vector<1x1024xf32> to vector<4x1024xf32>
    %79 = arith.mulf %76, %78 : vector<4x1024xf32>
    %80 = vector.extract_strided_slice %67 {offsets = [0, 898], sizes = [4, 126], strides = [1, 1]} : vector<4x1024xf32> to vector<4x126xf32>
    %81 = vector.extract_strided_slice %67 {offsets = [0, 0], sizes = [4, 898], strides = [1, 1]} : vector<4x1024xf32> to vector<4x898xf32>
    %82 = tpu.concatenate %80, %81 in 1 : vector<4x126xf32>, vector<4x898xf32> -> vector<4x1024xf32>
    %c2_20 = arith.constant 2 : index
    %c0_21 = arith.constant 0 : index
    %83 = vector.load %arg7[%c2_20, %c0_21] : memref<9x1024xf32, #tpu.memory_space<vmem>>, vector<1x1024xf32>
    %84 = vector.broadcast %83 : vector<1x1024xf32> to vector<4x1024xf32>
    %85 = arith.mulf %82, %84 : vector<4x1024xf32>
    %86 = vector.extract_strided_slice %67 {offsets = [0, 1022], sizes = [4, 2], strides = [1, 1]} : vector<4x1024xf32> to vector<4x2xf32>
    %87 = vector.extract_strided_slice %67 {offsets = [0, 0], sizes = [4, 1022], strides = [1, 1]} : vector<4x1024xf32> to vector<4x1022xf32>
    %88 = tpu.concatenate %86, %87 in 1 : vector<4x2xf32>, vector<4x1022xf32> -> vector<4x1024xf32>
    %c3_22 = arith.constant 3 : index
    %c0_23 = arith.constant 0 : index
    %89 = vector.load %arg7[%c3_22, %c0_23] : memref<9x1024xf32, #tpu.memory_space<vmem>>, vector<1x1024xf32>
    %90 = vector.broadcast %89 : vector<1x1024xf32> to vector<4x1024xf32>
    %91 = arith.mulf %88, %90 : vector<4x1024xf32>
    %92 = vector.extract_strided_slice %67 {offsets = [0, 2], sizes = [4, 1022], strides = [1, 1]} : vector<4x1024xf32> to vector<4x1022xf32>
    %93 = vector.extract_strided_slice %67 {offsets = [0, 0], sizes = [4, 2], strides = [1, 1]} : vector<4x1024xf32> to vector<4x2xf32>
    %94 = tpu.concatenate %92, %93 in 1 : vector<4x1022xf32>, vector<4x2xf32> -> vector<4x1024xf32>
    %c5_24 = arith.constant 5 : index
    %c0_25 = arith.constant 0 : index
    %95 = vector.load %arg7[%c5_24, %c0_25] : memref<9x1024xf32, #tpu.memory_space<vmem>>, vector<1x1024xf32>
    %96 = vector.broadcast %95 : vector<1x1024xf32> to vector<4x1024xf32>
    %97 = arith.mulf %94, %96 : vector<4x1024xf32>
    %98 = vector.extract_strided_slice %67 {offsets = [0, 126], sizes = [4, 898], strides = [1, 1]} : vector<4x1024xf32> to vector<4x898xf32>
    %99 = vector.extract_strided_slice %67 {offsets = [0, 0], sizes = [4, 126], strides = [1, 1]} : vector<4x1024xf32> to vector<4x126xf32>
    %100 = tpu.concatenate %98, %99 in 1 : vector<4x898xf32>, vector<4x126xf32> -> vector<4x1024xf32>
    %c6_26 = arith.constant 6 : index
    %c0_27 = arith.constant 0 : index
    %101 = vector.load %arg7[%c6_26, %c0_27] : memref<9x1024xf32, #tpu.memory_space<vmem>>, vector<1x1024xf32>
    %102 = vector.broadcast %101 : vector<1x1024xf32> to vector<4x1024xf32>
    %103 = arith.mulf %100, %102 : vector<4x1024xf32>
    %104 = vector.extract_strided_slice %67 {offsets = [0, 128], sizes = [4, 896], strides = [1, 1]} : vector<4x1024xf32> to vector<4x896xf32>
    %105 = vector.extract_strided_slice %67 {offsets = [0, 0], sizes = [4, 128], strides = [1, 1]} : vector<4x1024xf32> to vector<4x128xf32>
    %106 = tpu.concatenate %104, %105 in 1 : vector<4x896xf32>, vector<4x128xf32> -> vector<4x1024xf32>
    %c7_28 = arith.constant 7 : index
    %c0_29 = arith.constant 0 : index
    %107 = vector.load %arg7[%c7_28, %c0_29] : memref<9x1024xf32, #tpu.memory_space<vmem>>, vector<1x1024xf32>
    %108 = vector.broadcast %107 : vector<1x1024xf32> to vector<4x1024xf32>
    %109 = arith.mulf %106, %108 : vector<4x1024xf32>
    %110 = vector.extract_strided_slice %67 {offsets = [0, 130], sizes = [4, 894], strides = [1, 1]} : vector<4x1024xf32> to vector<4x894xf32>
    %111 = vector.extract_strided_slice %67 {offsets = [0, 0], sizes = [4, 130], strides = [1, 1]} : vector<4x1024xf32> to vector<4x130xf32>
    %112 = tpu.concatenate %110, %111 in 1 : vector<4x894xf32>, vector<4x130xf32> -> vector<4x1024xf32>
    %c8_30 = arith.constant 8 : index
    %c0_31 = arith.constant 0 : index
    %113 = vector.load %arg7[%c8_30, %c0_31] : memref<9x1024xf32, #tpu.memory_space<vmem>>, vector<1x1024xf32>
    %114 = vector.broadcast %113 : vector<1x1024xf32> to vector<4x1024xf32>
    %115 = arith.mulf %112, %114 : vector<4x1024xf32>
    %116 = tpu.concatenate %73, %79, %85, %91, %67, %97, %103, %109, %115 in 0 : vector<4x1024xf32>, vector<4x1024xf32>, vector<4x1024xf32>, vector<4x1024xf32>, vector<4x1024xf32>, vector<4x1024xf32>, vector<4x1024xf32>, vector<4x1024xf32>, vector<4x1024xf32> -> vector<36x1024xf32>
    %117 = arith.truncf %116 : vector<36x1024xf32> to vector<36x1024xbf16>
    %c0_32 = arith.constant 0 : index
    %c0_33 = arith.constant 0 : index
    %118 = vector.load %arg5[%c0_32, %c0_33] : memref<8x36xbf16, #tpu.memory_space<vmem>>, vector<8x36xbf16>
    %cst_34 = arith.constant dense<0.000000e+00> : vector<8x1024xf32>
    %119 = tpu.matmul %118, %117, %cst_34 {dimension_numbers = #tpu.dot_dimension_numbers<[1], [0], [0], [1], [0, 0, 1, 1], [], []>} : vector<8x36xbf16>, vector<36x1024xbf16>, vector<8x1024xf32> -> vector<8x1024xf32>
    %120 = vector.extract_strided_slice %119 {offsets = [0, 128], sizes = [8, 896], strides = [1, 1]} : vector<8x1024xf32> to vector<8x896xf32>
    %121 = vector.extract_strided_slice %119 {offsets = [0, 0], sizes = [8, 128], strides = [1, 1]} : vector<8x1024xf32> to vector<8x128xf32>
    %122 = tpu.concatenate %120, %121 in 1 : vector<8x896xf32>, vector<8x128xf32> -> vector<8x1024xf32>
    %123 = arith.maximumf %119, %122 : vector<8x1024xf32>
    %124 = vector.extract_strided_slice %123 {offsets = [0, 0], sizes = [8, 128], strides = [1, 1]} : vector<8x1024xf32> to vector<8x128xf32>
    %125 = vector.extract_strided_slice %123 {offsets = [0, 256], sizes = [8, 128], strides = [1, 1]} : vector<8x1024xf32> to vector<8x128xf32>
    %126 = vector.extract_strided_slice %123 {offsets = [0, 512], sizes = [8, 128], strides = [1, 1]} : vector<8x1024xf32> to vector<8x128xf32>
    %127 = vector.extract_strided_slice %123 {offsets = [0, 768], sizes = [8, 128], strides = [1, 1]} : vector<8x1024xf32> to vector<8x128xf32>
    %128 = tpu.concatenate %124, %125, %126, %127 in 1 : vector<8x128xf32>, vector<8x128xf32>, vector<8x128xf32>, vector<8x128xf32> -> vector<8x512xf32>
    %129 = vector.extract_strided_slice %128 {offsets = [0, 2], sizes = [8, 510], strides = [1, 1]} : vector<8x512xf32> to vector<8x510xf32>
    %130 = vector.extract_strided_slice %128 {offsets = [0, 0], sizes = [8, 2], strides = [1, 1]} : vector<8x512xf32> to vector<8x2xf32>
    %131 = tpu.concatenate %129, %130 in 1 : vector<8x510xf32>, vector<8x2xf32> -> vector<8x512xf32>
    %132 = arith.maximumf %128, %131 : vector<8x512xf32>
    %c0_35 = arith.constant 0 : index
    %c0_36 = arith.constant 0 : index
    %133 = vector.load %arg6[%c0_35, %c0_36] : memref<8x1xf32, #tpu.memory_space<vmem>>, vector<8x1xf32>
    %134 = vector.broadcast %133 : vector<8x1xf32> to vector<8x512xf32>
    %135 = arith.addf %132, %134 : vector<8x512xf32>
    %cst_37 = arith.constant 0.000000e+00 : f32
    %136 = vector.broadcast %cst_37 : f32 to vector<8x512xf32>
    %137 = arith.maximumf %135, %136 : vector<8x512xf32>
    %138 = vector.extract_strided_slice %137 {offsets = [0, 0], sizes = [8, 16], strides = [1, 1]} : vector<8x512xf32> to vector<8x16xf32>
    %139 = vector.extract_strided_slice %137 {offsets = [0, 128], sizes = [8, 16], strides = [1, 1]} : vector<8x512xf32> to vector<8x16xf32>
    %140 = vector.extract_strided_slice %137 {offsets = [0, 256], sizes = [8, 16], strides = [1, 1]} : vector<8x512xf32> to vector<8x16xf32>
    %141 = vector.extract_strided_slice %137 {offsets = [0, 384], sizes = [8, 16], strides = [1, 1]} : vector<8x512xf32> to vector<8x16xf32>
    %142 = vector.extract_strided_slice %137 {offsets = [0, 16], sizes = [8, 16], strides = [1, 1]} : vector<8x512xf32> to vector<8x16xf32>
    %143 = vector.extract_strided_slice %137 {offsets = [0, 144], sizes = [8, 16], strides = [1, 1]} : vector<8x512xf32> to vector<8x16xf32>
    %144 = vector.extract_strided_slice %137 {offsets = [0, 272], sizes = [8, 16], strides = [1, 1]} : vector<8x512xf32> to vector<8x16xf32>
    %145 = vector.extract_strided_slice %137 {offsets = [0, 400], sizes = [8, 16], strides = [1, 1]} : vector<8x512xf32> to vector<8x16xf32>
    %146 = vector.extract_strided_slice %137 {offsets = [0, 32], sizes = [8, 16], strides = [1, 1]} : vector<8x512xf32> to vector<8x16xf32>
    %147 = vector.extract_strided_slice %137 {offsets = [0, 160], sizes = [8, 16], strides = [1, 1]} : vector<8x512xf32> to vector<8x16xf32>
    %148 = vector.extract_strided_slice %137 {offsets = [0, 288], sizes = [8, 16], strides = [1, 1]} : vector<8x512xf32> to vector<8x16xf32>
    %149 = vector.extract_strided_slice %137 {offsets = [0, 416], sizes = [8, 16], strides = [1, 1]} : vector<8x512xf32> to vector<8x16xf32>
    %150 = vector.extract_strided_slice %137 {offsets = [0, 48], sizes = [8, 16], strides = [1, 1]} : vector<8x512xf32> to vector<8x16xf32>
    %151 = vector.extract_strided_slice %137 {offsets = [0, 176], sizes = [8, 16], strides = [1, 1]} : vector<8x512xf32> to vector<8x16xf32>
    %152 = vector.extract_strided_slice %137 {offsets = [0, 304], sizes = [8, 16], strides = [1, 1]} : vector<8x512xf32> to vector<8x16xf32>
    %153 = vector.extract_strided_slice %137 {offsets = [0, 432], sizes = [8, 16], strides = [1, 1]} : vector<8x512xf32> to vector<8x16xf32>
    %154 = vector.extract_strided_slice %137 {offsets = [0, 64], sizes = [8, 16], strides = [1, 1]} : vector<8x512xf32> to vector<8x16xf32>
    %155 = vector.extract_strided_slice %137 {offsets = [0, 192], sizes = [8, 16], strides = [1, 1]} : vector<8x512xf32> to vector<8x16xf32>
    %156 = vector.extract_strided_slice %137 {offsets = [0, 320], sizes = [8, 16], strides = [1, 1]} : vector<8x512xf32> to vector<8x16xf32>
    %157 = vector.extract_strided_slice %137 {offsets = [0, 448], sizes = [8, 16], strides = [1, 1]} : vector<8x512xf32> to vector<8x16xf32>
    %158 = vector.extract_strided_slice %137 {offsets = [0, 80], sizes = [8, 16], strides = [1, 1]} : vector<8x512xf32> to vector<8x16xf32>
    %159 = vector.extract_strided_slice %137 {offsets = [0, 208], sizes = [8, 16], strides = [1, 1]} : vector<8x512xf32> to vector<8x16xf32>
    %160 = vector.extract_strided_slice %137 {offsets = [0, 336], sizes = [8, 16], strides = [1, 1]} : vector<8x512xf32> to vector<8x16xf32>
    %161 = vector.extract_strided_slice %137 {offsets = [0, 464], sizes = [8, 16], strides = [1, 1]} : vector<8x512xf32> to vector<8x16xf32>
    %162 = vector.extract_strided_slice %137 {offsets = [0, 96], sizes = [8, 16], strides = [1, 1]} : vector<8x512xf32> to vector<8x16xf32>
    %163 = vector.extract_strided_slice %137 {offsets = [0, 224], sizes = [8, 16], strides = [1, 1]} : vector<8x512xf32> to vector<8x16xf32>
    %164 = vector.extract_strided_slice %137 {offsets = [0, 352], sizes = [8, 16], strides = [1, 1]} : vector<8x512xf32> to vector<8x16xf32>
    %165 = vector.extract_strided_slice %137 {offsets = [0, 480], sizes = [8, 16], strides = [1, 1]} : vector<8x512xf32> to vector<8x16xf32>
    %166 = vector.extract_strided_slice %137 {offsets = [0, 112], sizes = [8, 16], strides = [1, 1]} : vector<8x512xf32> to vector<8x16xf32>
    %167 = vector.extract_strided_slice %137 {offsets = [0, 240], sizes = [8, 16], strides = [1, 1]} : vector<8x512xf32> to vector<8x16xf32>
    %168 = vector.extract_strided_slice %137 {offsets = [0, 368], sizes = [8, 16], strides = [1, 1]} : vector<8x512xf32> to vector<8x16xf32>
    %169 = vector.extract_strided_slice %137 {offsets = [0, 496], sizes = [8, 16], strides = [1, 1]} : vector<8x512xf32> to vector<8x16xf32>
    %170 = tpu.concatenate %138, %139, %140, %141, %142, %143, %144, %145, %146, %147, %148, %149, %150, %151, %152, %153 in 1 : vector<8x16xf32>, vector<8x16xf32>, vector<8x16xf32>, vector<8x16xf32>, vector<8x16xf32>, vector<8x16xf32>, vector<8x16xf32>, vector<8x16xf32>, vector<8x16xf32>, vector<8x16xf32>, vector<8x16xf32>, vector<8x16xf32>, vector<8x16xf32>, vector<8x16xf32>, vector<8x16xf32>, vector<8x16xf32> -> vector<8x256xf32>
    %171 = tpu.concatenate %154, %155, %156, %157, %158, %159, %160, %161, %162, %163, %164, %165, %166, %167, %168, %169 in 1 : vector<8x16xf32>, vector<8x16xf32>, vector<8x16xf32>, vector<8x16xf32>, vector<8x16xf32>, vector<8x16xf32>, vector<8x16xf32>, vector<8x16xf32>, vector<8x16xf32>, vector<8x16xf32>, vector<8x16xf32>, vector<8x16xf32>, vector<8x16xf32>, vector<8x16xf32>, vector<8x16xf32>, vector<8x16xf32> -> vector<8x256xf32>
    %172 = tpu.concatenate %170, %171 in 1 : vector<8x256xf32>, vector<8x256xf32> -> vector<8x512xf32>
    %173 = vector.extract_strided_slice %172 {offsets = [0, 0], sizes = [1, 64], strides = [1, 1]} : vector<8x512xf32> to vector<1x64xf32>
    %174 = vector.extract_strided_slice %172 {offsets = [1, 0], sizes = [1, 64], strides = [1, 1]} : vector<8x512xf32> to vector<1x64xf32>
    %175 = vector.extract_strided_slice %172 {offsets = [2, 0], sizes = [1, 64], strides = [1, 1]} : vector<8x512xf32> to vector<1x64xf32>
    %176 = vector.extract_strided_slice %172 {offsets = [3, 0], sizes = [1, 64], strides = [1, 1]} : vector<8x512xf32> to vector<1x64xf32>
    %177 = vector.extract_strided_slice %172 {offsets = [4, 0], sizes = [1, 64], strides = [1, 1]} : vector<8x512xf32> to vector<1x64xf32>
    %178 = vector.extract_strided_slice %172 {offsets = [5, 0], sizes = [1, 64], strides = [1, 1]} : vector<8x512xf32> to vector<1x64xf32>
    %179 = vector.extract_strided_slice %172 {offsets = [6, 0], sizes = [1, 64], strides = [1, 1]} : vector<8x512xf32> to vector<1x64xf32>
    %180 = vector.extract_strided_slice %172 {offsets = [7, 0], sizes = [1, 64], strides = [1, 1]} : vector<8x512xf32> to vector<1x64xf32>
    %181 = tpu.concatenate %173, %174, %175, %176, %177, %178, %179, %180 in 1 : vector<1x64xf32>, vector<1x64xf32>, vector<1x64xf32>, vector<1x64xf32>, vector<1x64xf32>, vector<1x64xf32>, vector<1x64xf32>, vector<1x64xf32> -> vector<1x512xf32>
    %182 = vector.extract_strided_slice %172 {offsets = [0, 64], sizes = [1, 64], strides = [1, 1]} : vector<8x512xf32> to vector<1x64xf32>
    %183 = vector.extract_strided_slice %172 {offsets = [1, 64], sizes = [1, 64], strides = [1, 1]} : vector<8x512xf32> to vector<1x64xf32>
    %184 = vector.extract_strided_slice %172 {offsets = [2, 64], sizes = [1, 64], strides = [1, 1]} : vector<8x512xf32> to vector<1x64xf32>
    %185 = vector.extract_strided_slice %172 {offsets = [3, 64], sizes = [1, 64], strides = [1, 1]} : vector<8x512xf32> to vector<1x64xf32>
    %186 = vector.extract_strided_slice %172 {offsets = [4, 64], sizes = [1, 64], strides = [1, 1]} : vector<8x512xf32> to vector<1x64xf32>
    %187 = vector.extract_strided_slice %172 {offsets = [5, 64], sizes = [1, 64], strides = [1, 1]} : vector<8x512xf32> to vector<1x64xf32>
    %188 = vector.extract_strided_slice %172 {offsets = [6, 64], sizes = [1, 64], strides = [1, 1]} : vector<8x512xf32> to vector<1x64xf32>
    %189 = vector.extract_strided_slice %172 {offsets = [7, 64], sizes = [1, 64], strides = [1, 1]} : vector<8x512xf32> to vector<1x64xf32>
    %190 = tpu.concatenate %182, %183, %184, %185, %186, %187, %188, %189 in 1 : vector<1x64xf32>, vector<1x64xf32>, vector<1x64xf32>, vector<1x64xf32>, vector<1x64xf32>, vector<1x64xf32>, vector<1x64xf32>, vector<1x64xf32> -> vector<1x512xf32>
    %191 = vector.extract_strided_slice %172 {offsets = [0, 128], sizes = [1, 64], strides = [1, 1]} : vector<8x512xf32> to vector<1x64xf32>
    %192 = vector.extract_strided_slice %172 {offsets = [1, 128], sizes = [1, 64], strides = [1, 1]} : vector<8x512xf32> to vector<1x64xf32>
    %193 = vector.extract_strided_slice %172 {offsets = [2, 128], sizes = [1, 64], strides = [1, 1]} : vector<8x512xf32> to vector<1x64xf32>
    %194 = vector.extract_strided_slice %172 {offsets = [3, 128], sizes = [1, 64], strides = [1, 1]} : vector<8x512xf32> to vector<1x64xf32>
    %195 = vector.extract_strided_slice %172 {offsets = [4, 128], sizes = [1, 64], strides = [1, 1]} : vector<8x512xf32> to vector<1x64xf32>
    %196 = vector.extract_strided_slice %172 {offsets = [5, 128], sizes = [1, 64], strides = [1, 1]} : vector<8x512xf32> to vector<1x64xf32>
    %197 = vector.extract_strided_slice %172 {offsets = [6, 128], sizes = [1, 64], strides = [1, 1]} : vector<8x512xf32> to vector<1x64xf32>
    %198 = vector.extract_strided_slice %172 {offsets = [7, 128], sizes = [1, 64], strides = [1, 1]} : vector<8x512xf32> to vector<1x64xf32>
    %199 = tpu.concatenate %191, %192, %193, %194, %195, %196, %197, %198 in 1 : vector<1x64xf32>, vector<1x64xf32>, vector<1x64xf32>, vector<1x64xf32>, vector<1x64xf32>, vector<1x64xf32>, vector<1x64xf32>, vector<1x64xf32> -> vector<1x512xf32>
    %200 = vector.extract_strided_slice %172 {offsets = [0, 192], sizes = [1, 64], strides = [1, 1]} : vector<8x512xf32> to vector<1x64xf32>
    %201 = vector.extract_strided_slice %172 {offsets = [1, 192], sizes = [1, 64], strides = [1, 1]} : vector<8x512xf32> to vector<1x64xf32>
    %202 = vector.extract_strided_slice %172 {offsets = [2, 192], sizes = [1, 64], strides = [1, 1]} : vector<8x512xf32> to vector<1x64xf32>
    %203 = vector.extract_strided_slice %172 {offsets = [3, 192], sizes = [1, 64], strides = [1, 1]} : vector<8x512xf32> to vector<1x64xf32>
    %204 = vector.extract_strided_slice %172 {offsets = [4, 192], sizes = [1, 64], strides = [1, 1]} : vector<8x512xf32> to vector<1x64xf32>
    %205 = vector.extract_strided_slice %172 {offsets = [5, 192], sizes = [1, 64], strides = [1, 1]} : vector<8x512xf32> to vector<1x64xf32>
    %206 = vector.extract_strided_slice %172 {offsets = [6, 192], sizes = [1, 64], strides = [1, 1]} : vector<8x512xf32> to vector<1x64xf32>
    %207 = vector.extract_strided_slice %172 {offsets = [7, 192], sizes = [1, 64], strides = [1, 1]} : vector<8x512xf32> to vector<1x64xf32>
    %208 = tpu.concatenate %200, %201, %202, %203, %204, %205, %206, %207 in 1 : vector<1x64xf32>, vector<1x64xf32>, vector<1x64xf32>, vector<1x64xf32>, vector<1x64xf32>, vector<1x64xf32>, vector<1x64xf32>, vector<1x64xf32> -> vector<1x512xf32>
    %209 = vector.extract_strided_slice %172 {offsets = [0, 256], sizes = [1, 64], strides = [1, 1]} : vector<8x512xf32> to vector<1x64xf32>
    %210 = vector.extract_strided_slice %172 {offsets = [1, 256], sizes = [1, 64], strides = [1, 1]} : vector<8x512xf32> to vector<1x64xf32>
    %211 = vector.extract_strided_slice %172 {offsets = [2, 256], sizes = [1, 64], strides = [1, 1]} : vector<8x512xf32> to vector<1x64xf32>
    %212 = vector.extract_strided_slice %172 {offsets = [3, 256], sizes = [1, 64], strides = [1, 1]} : vector<8x512xf32> to vector<1x64xf32>
    %213 = vector.extract_strided_slice %172 {offsets = [4, 256], sizes = [1, 64], strides = [1, 1]} : vector<8x512xf32> to vector<1x64xf32>
    %214 = vector.extract_strided_slice %172 {offsets = [5, 256], sizes = [1, 64], strides = [1, 1]} : vector<8x512xf32> to vector<1x64xf32>
    %215 = vector.extract_strided_slice %172 {offsets = [6, 256], sizes = [1, 64], strides = [1, 1]} : vector<8x512xf32> to vector<1x64xf32>
    %216 = vector.extract_strided_slice %172 {offsets = [7, 256], sizes = [1, 64], strides = [1, 1]} : vector<8x512xf32> to vector<1x64xf32>
    %217 = tpu.concatenate %209, %210, %211, %212, %213, %214, %215, %216 in 1 : vector<1x64xf32>, vector<1x64xf32>, vector<1x64xf32>, vector<1x64xf32>, vector<1x64xf32>, vector<1x64xf32>, vector<1x64xf32>, vector<1x64xf32> -> vector<1x512xf32>
    %218 = vector.extract_strided_slice %172 {offsets = [0, 320], sizes = [1, 64], strides = [1, 1]} : vector<8x512xf32> to vector<1x64xf32>
    %219 = vector.extract_strided_slice %172 {offsets = [1, 320], sizes = [1, 64], strides = [1, 1]} : vector<8x512xf32> to vector<1x64xf32>
    %220 = vector.extract_strided_slice %172 {offsets = [2, 320], sizes = [1, 64], strides = [1, 1]} : vector<8x512xf32> to vector<1x64xf32>
    %221 = vector.extract_strided_slice %172 {offsets = [3, 320], sizes = [1, 64], strides = [1, 1]} : vector<8x512xf32> to vector<1x64xf32>
    %222 = vector.extract_strided_slice %172 {offsets = [4, 320], sizes = [1, 64], strides = [1, 1]} : vector<8x512xf32> to vector<1x64xf32>
    %223 = vector.extract_strided_slice %172 {offsets = [5, 320], sizes = [1, 64], strides = [1, 1]} : vector<8x512xf32> to vector<1x64xf32>
    %224 = vector.extract_strided_slice %172 {offsets = [6, 320], sizes = [1, 64], strides = [1, 1]} : vector<8x512xf32> to vector<1x64xf32>
    %225 = vector.extract_strided_slice %172 {offsets = [7, 320], sizes = [1, 64], strides = [1, 1]} : vector<8x512xf32> to vector<1x64xf32>
    %226 = tpu.concatenate %218, %219, %220, %221, %222, %223, %224, %225 in 1 : vector<1x64xf32>, vector<1x64xf32>, vector<1x64xf32>, vector<1x64xf32>, vector<1x64xf32>, vector<1x64xf32>, vector<1x64xf32>, vector<1x64xf32> -> vector<1x512xf32>
    %227 = vector.extract_strided_slice %172 {offsets = [0, 384], sizes = [1, 64], strides = [1, 1]} : vector<8x512xf32> to vector<1x64xf32>
    %228 = vector.extract_strided_slice %172 {offsets = [1, 384], sizes = [1, 64], strides = [1, 1]} : vector<8x512xf32> to vector<1x64xf32>
    %229 = vector.extract_strided_slice %172 {offsets = [2, 384], sizes = [1, 64], strides = [1, 1]} : vector<8x512xf32> to vector<1x64xf32>
    %230 = vector.extract_strided_slice %172 {offsets = [3, 384], sizes = [1, 64], strides = [1, 1]} : vector<8x512xf32> to vector<1x64xf32>
    %231 = vector.extract_strided_slice %172 {offsets = [4, 384], sizes = [1, 64], strides = [1, 1]} : vector<8x512xf32> to vector<1x64xf32>
    %232 = vector.extract_strided_slice %172 {offsets = [5, 384], sizes = [1, 64], strides = [1, 1]} : vector<8x512xf32> to vector<1x64xf32>
    %233 = vector.extract_strided_slice %172 {offsets = [6, 384], sizes = [1, 64], strides = [1, 1]} : vector<8x512xf32> to vector<1x64xf32>
    %234 = vector.extract_strided_slice %172 {offsets = [7, 384], sizes = [1, 64], strides = [1, 1]} : vector<8x512xf32> to vector<1x64xf32>
    %235 = tpu.concatenate %227, %228, %229, %230, %231, %232, %233, %234 in 1 : vector<1x64xf32>, vector<1x64xf32>, vector<1x64xf32>, vector<1x64xf32>, vector<1x64xf32>, vector<1x64xf32>, vector<1x64xf32>, vector<1x64xf32> -> vector<1x512xf32>
    %236 = vector.extract_strided_slice %172 {offsets = [0, 448], sizes = [1, 64], strides = [1, 1]} : vector<8x512xf32> to vector<1x64xf32>
    %237 = vector.extract_strided_slice %172 {offsets = [1, 448], sizes = [1, 64], strides = [1, 1]} : vector<8x512xf32> to vector<1x64xf32>
    %238 = vector.extract_strided_slice %172 {offsets = [2, 448], sizes = [1, 64], strides = [1, 1]} : vector<8x512xf32> to vector<1x64xf32>
    %239 = vector.extract_strided_slice %172 {offsets = [3, 448], sizes = [1, 64], strides = [1, 1]} : vector<8x512xf32> to vector<1x64xf32>
    %240 = vector.extract_strided_slice %172 {offsets = [4, 448], sizes = [1, 64], strides = [1, 1]} : vector<8x512xf32> to vector<1x64xf32>
    %241 = vector.extract_strided_slice %172 {offsets = [5, 448], sizes = [1, 64], strides = [1, 1]} : vector<8x512xf32> to vector<1x64xf32>
    %242 = vector.extract_strided_slice %172 {offsets = [6, 448], sizes = [1, 64], strides = [1, 1]} : vector<8x512xf32> to vector<1x64xf32>
    %243 = vector.extract_strided_slice %172 {offsets = [7, 448], sizes = [1, 64], strides = [1, 1]} : vector<8x512xf32> to vector<1x64xf32>
    %244 = tpu.concatenate %236, %237, %238, %239, %240, %241, %242, %243 in 1 : vector<1x64xf32>, vector<1x64xf32>, vector<1x64xf32>, vector<1x64xf32>, vector<1x64xf32>, vector<1x64xf32>, vector<1x64xf32>, vector<1x64xf32> -> vector<1x512xf32>
    %245 = tpu.concatenate %181, %190, %199, %208, %217, %226, %235, %244 in 0 : vector<1x512xf32>, vector<1x512xf32>, vector<1x512xf32>, vector<1x512xf32>, vector<1x512xf32>, vector<1x512xf32>, vector<1x512xf32>, vector<1x512xf32> -> vector<8x512xf32>
    %246 = arith.truncf %245 : vector<8x512xf32> to vector<8x512xbf16>
    %c0_38 = arith.constant 0 : index
    %c0_39 = arith.constant 0 : index
    %247 = vector.load %arg8[%c0_38, %c0_39] : memref<512x32xbf16, #tpu.memory_space<vmem>>, vector<512x32xbf16>
    %cst_40 = arith.constant dense<0.000000e+00> : vector<8x32xf32>
    %248 = tpu.matmul %246, %247, %cst_40 {dimension_numbers = #tpu.dot_dimension_numbers<[1], [0], [0], [1], [0, 0, 1, 1], [], []>} : vector<8x512xbf16>, vector<512x32xbf16>, vector<8x32xf32> -> vector<8x32xf32>
    %c0_41 = arith.constant 0 : index
    %c0_42 = arith.constant 0 : index
    %249 = vector.load %arg9[%c0_41, %c0_42] : memref<1x32xf32, #tpu.memory_space<vmem>>, vector<1x32xf32>
    %250 = vector.broadcast %249 : vector<1x32xf32> to vector<8x32xf32>
    %251 = arith.addf %248, %250 : vector<8x32xf32>
    %cst_43 = arith.constant 0.000000e+00 : f32
    %252 = vector.broadcast %cst_43 : f32 to vector<8x32xf32>
    %253 = arith.maximumf %251, %252 : vector<8x32xf32>
    %254 = arith.truncf %253 : vector<8x32xf32> to vector<8x32xbf16>
    %c0_44 = arith.constant 0 : index
    %c0_45 = arith.constant 0 : index
    %255 = vector.load %arg10[%c0_44, %c0_45] : memref<32x3xbf16, #tpu.memory_space<vmem>>, vector<32x3xbf16>
    %cst_46 = arith.constant dense<0.000000e+00> : vector<8x3xf32>
    %256 = tpu.matmul %254, %255, %cst_46 {dimension_numbers = #tpu.dot_dimension_numbers<[1], [0], [0], [1], [0, 0, 1, 1], [], []>} : vector<8x32xbf16>, vector<32x3xbf16>, vector<8x3xf32> -> vector<8x3xf32>
    %c0_47 = arith.constant 0 : index
    %c0_48 = arith.constant 0 : index
    %257 = vector.load %arg11[%c0_47, %c0_48] : memref<1x3xf32, #tpu.memory_space<vmem>>, vector<1x3xf32>
    %258 = vector.broadcast %257 : vector<1x3xf32> to vector<8x3xf32>
    %259 = arith.addf %256, %258 : vector<8x3xf32>
    %c0_49 = arith.constant 0 : index
    %c0_50 = arith.constant 0 : index
    %c0_51 = arith.constant 0 : index
    %260 = vector.load %arg12[%c0_49, %c0_50, %c0_51] : memref<1x8x3xf32, #tpu.memory_space<vmem>>, vector<1x8x3xf32>
    %261 = vector.shape_cast %260 : vector<1x8x3xf32> to vector<8x3xf32>
    %262 = vector.shape_cast %259 : vector<8x3xf32> to vector<1x8x3xf32>
    tpu.vector_store %arg12[%c0_49, %c0_50, %c0_51], %262 {strides = array<i32>} : memref<1x8x3xf32, #tpu.memory_space<vmem>>, vector<1x8x3xf32>,
    return
  }
  func.func @transform_0(%arg0: i32) -> (i32, i32, i32) {
    %c0_i32 = arith.constant 0 : i32
    %c0_i32_0 = arith.constant 0 : i32
    %c0_i32_1 = arith.constant 0 : i32
    return %arg0, %c0_i32, %c0_i32_0 : i32, i32, i32
  }
  func.func @transform_1(%arg0: i32) -> (i32, i32) {
    %c0_i32 = arith.constant 0 : i32
    %c0_i32_0 = arith.constant 0 : i32
    %c0_i32_1 = arith.constant 0 : i32
    return %c0_i32, %c0_i32_0 : i32, i32
  }
  func.func @transform_2(%arg0: i32) -> (i32, i32) {
    %c0_i32 = arith.constant 0 : i32
    %c0_i32_0 = arith.constant 0 : i32
    %c0_i32_1 = arith.constant 0 : i32
    return %c0_i32, %c0_i32_0 : i32, i32
  }
  func.func @transform_3(%arg0: i32) -> (i32, i32) {
    %c0_i32 = arith.constant 0 : i32
    %c0_i32_0 = arith.constant 0 : i32
    %c0_i32_1 = arith.constant 0 : i32
    return %c0_i32, %c0_i32_0 : i32, i32
  }
  func.func @transform_4(%arg0: i32) -> (i32, i32) {
    %c0_i32 = arith.constant 0 : i32
    %c0_i32_0 = arith.constant 0 : i32
    %c0_i32_1 = arith.constant 0 : i32
    return %c0_i32, %c0_i32_0 : i32, i32
  }
  func.func @transform_5(%arg0: i32) -> (i32, i32) {
    %c0_i32 = arith.constant 0 : i32
    %c0_i32_0 = arith.constant 0 : i32
    %c0_i32_1 = arith.constant 0 : i32
    return %c0_i32, %c0_i32_0 : i32, i32
  }
  func.func @transform_6(%arg0: i32) -> (i32, i32) {
    %c0_i32 = arith.constant 0 : i32
    %c0_i32_0 = arith.constant 0 : i32
    %c0_i32_1 = arith.constant 0 : i32
    return %c0_i32, %c0_i32_0 : i32, i32
  }
  func.func @transform_7(%arg0: i32) -> (i32, i32) {
    %c0_i32 = arith.constant 0 : i32
    %c0_i32_0 = arith.constant 0 : i32
    %c0_i32_1 = arith.constant 0 : i32
    return %c0_i32, %c0_i32_0 : i32, i32
  }
  func.func @transform_8(%arg0: i32) -> (i32, i32) {
    %c0_i32 = arith.constant 0 : i32
    %c0_i32_0 = arith.constant 0 : i32
    %c0_i32_1 = arith.constant 0 : i32
    return %c0_i32, %c0_i32_0 : i32, i32
  }
  func.func @transform_9(%arg0: i32) -> (i32, i32) {
    %c0_i32 = arith.constant 0 : i32
    %c0_i32_0 = arith.constant 0 : i32
    %c0_i32_1 = arith.constant 0 : i32
    return %c0_i32, %c0_i32_0 : i32, i32
  }
  func.func @transform_10(%arg0: i32) -> (i32, i32) {
    %c0_i32 = arith.constant 0 : i32
    %c0_i32_0 = arith.constant 0 : i32
    %c0_i32_1 = arith.constant 0 : i32
    return %c0_i32, %c0_i32_0 : i32, i32
  }
  func.func @transform_11(%arg0: i32) -> (i32, i32, i32) {
    %c0_i32 = arith.constant 0 : i32
    %c0_i32_0 = arith.constant 0 : i32
    %c0_i32_1 = arith.constant 0 : i32
    return %arg0, %c0_i32, %c0_i32_0 : i32, i32, i32
  }
}

</mosaic_0001>

<llo_original>
// kernel: fwd.1
$region0: #{fwd.1}
  #allocation0 [shape = 'u32[]', space=smem, size = 0x4, offset = 0x4, fixed_abs, tag = 'smem constant byte address 0x4 - core index']
  #allocation1 [shape = 'u32[144,128]{1,0:T(1,128)}', space=vmem, size = 0x12000, scoped, tag = 'internal scratch']
  %s0 = inlined_call_operand.vmem [shape: f32[2,1,2048], index: 0, kind: input, shape index: {}]
  %s1 = inlined_call_operand.vmem [shape: bf16[4,9], index: 1, kind: input, shape index: {}]
  %s2 = inlined_call_operand.vmem [shape: f32[4,1], index: 2, kind: input, shape index: {}]
  %s3 = inlined_call_operand.vmem [shape: f32[9,2048], index: 3, kind: input, shape index: {}]
  %s4 = inlined_call_operand.vmem [shape: bf16[8,36], index: 4, kind: input, shape index: {}]
  %s5 = inlined_call_operand.vmem [shape: f32[8,1], index: 5, kind: input, shape index: {}]
  %s6 = inlined_call_operand.vmem [shape: f32[9,1024], index: 6, kind: input, shape index: {}]
  %s7 = inlined_call_operand.vmem [shape: bf16[512,32], index: 7, kind: input, shape index: {}]
  %s8 = inlined_call_operand.vmem [shape: f32[1,32], index: 8, kind: input, shape index: {}]
  %s9 = inlined_call_operand.vmem [shape: bf16[32,3], index: 9, kind: input, shape index: {}]
  %s10 = inlined_call_operand.vmem [shape: f32[1,3], index: 10, kind: input, shape index: {}]
  %s11 = inlined_call_operand.vmem [shape: f32[2,8,3], index: 11, kind: output, shape index: {}]
  %s12 = sld [smem:[#allocation0]]
  $region77: #{fwd.1} parent=0
    _
  %s14 = ssub.s32 1, %s12
  %s15 = scalar_select 0, %s14, %s12
  loop: start=0, step=1, limit=4
  $region2: #{fwd.1} parent=0 // loop_pre_header
    _
  $region3: #{fwd.1} parent=0 // loop_header
    %s17 = sphi 0, %s21
    %p18 = scmp.ge.s32.totalorder %s17, 4
    %s27 = sphi 0, %s29
    %s30 = sphi 0, %s27
    %s31 = sphi 0, %s30
    %s47 = sphi 0, %s31
    %s51 = sphi 0, %s51
    %s53 = sphi 0, %s51
    %s54 = sphi 0, %s53
    %s68 = sphi 0, %s54
    %s72 = sphi 0, %s72
    %s74 = sphi 0, %s72
    %s75 = sphi 0, %s74
    %s89 = sphi 0, %s75
    %s93 = sphi 0, %s93
    %s95 = sphi 0, %s93
    %s96 = sphi 0, %s95
    %s110 = sphi 0, %s96
    %s114 = sphi 0, %s114
    %s116 = sphi 0, %s114
    %s117 = sphi 0, %s116
    %s131 = sphi 0, %s117
    %s135 = sphi 0, %s135
    %s137 = sphi 0, %s135
    %s138 = sphi 0, %s137
    %s152 = sphi 0, %s138
    %s156 = sphi 0, %s156
    %s158 = sphi 0, %s156
    %s159 = sphi 0, %s158
    %s173 = sphi 0, %s159
    %s177 = sphi 0, %s177
    %s179 = sphi 0, %s177
    %s180 = sphi 0, %s179
    %s194 = sphi 0, %s180
    %s198 = sphi 0, %s198
    %s200 = sphi 0, %s198
    %s201 = sphi 0, %s200
    %s215 = sphi 0, %s201
    %s219 = sphi 0, %s219
    %s221 = sphi 0, %s219
    %s222 = sphi 0, %s221
    %s236 = sphi 0, %s222
    %s240 = sphi 0, %s240
    %s242 = sphi 0, %s240
    %s243 = sphi 0, %s242
    %s257 = sphi 0, %s243
    %s263 = sphi 0, %s265
    %s266 = sphi 0, %s263
    %s267 = sphi 0, %s266
    %s283 = sphi 0, %s267
  $region4: #{fwd.1} parent=0 // loop_header_branch
    %20 = sbr.rel (%p18) target = $region8
  $region5: #{fwd.1} parent=0 // loop_body
    %s22 = ssub.s32 %s17, 1
    %s23 = ssub.s32 %s17, 2
    %s24 = sadd.s32 %s17, 1
    %s25 = ssub.s32 %s17, %s24
    %p26 = scmp.eq.s32.totalorder %s25, 0
    %s28 = sadd.s32 %s27, 1
    %s29 = scalar_select %p26, %s27, %s28
    %p32 = pneg %p26
    %p33 = scmp.eq.s32.totalorder %s17, 1
    %p34 = por %p32, %p33
    %p35 = scmp.ne.s32.totalorder %s27, %s30
    %p36 = scmp.eq.s32.totalorder %s17, 0
    %p37 = por %p35, %p36
    %p38 = scmp.ne.s32.totalorder %s27, %s30
    %p39 = scmp.eq.s32.totalorder %s22, 1
    %p40 = por %p38, %p39
    %p41 = scmp.ne.s32.totalorder %s30, %s31
    %p42 = scmp.eq.s32.totalorder %s22, 0
    %p43 = por %p41, %p42
    %p44 = scmp.ne.s32.totalorder %s30, %s31
    %p45 = scmp.eq.s32.totalorder %s23, 1
    %p46 = por %p44, %p45
    %p48 = scmp.ne.s32.totalorder %s31, %s47
    %p49 = scmp.eq.s32.totalorder %s23, 0
    %p50 = por %p48, %p49
    %s52 = sadd.s32 %s51, 1
    %p55 = scmp.eq.s32.totalorder %s17, 1
    %p56 = scmp.ne.s32.totalorder %s51, %s53
    %p57 = scmp.eq.s32.totalorder %s17, 0
    %p58 = por %p56, %p57
    %p59 = scmp.ne.s32.totalorder %s51, %s53
    %p60 = scmp.eq.s32.totalorder %s22, 1
    %p61 = por %p59, %p60
    %p62 = scmp.ne.s32.totalorder %s53, %s54
    %p63 = scmp.eq.s32.totalorder %s22, 0
    %p64 = por %p62, %p63
    %p65 = scmp.ne.s32.totalorder %s53, %s54
    %p66 = scmp.eq.s32.totalorder %s23, 1
    %p67 = por %p65, %p66
    %p69 = scmp.ne.s32.totalorder %s54, %s68
    %p70 = scmp.eq.s32.totalorder %s23, 0
    %p71 = por %p69, %p70
    %s73 = sadd.s32 %s72, 1
    %p76 = scmp.eq.s32.totalorder %s17, 1
    %p77 = scmp.ne.s32.totalorder %s72, %s74
    %p78 = scmp.eq.s32.totalorder %s17, 0
    %p79 = por %p77, %p78
    %p80 = scmp.ne.s32.totalorder %s72, %s74
    %p81 = scmp.eq.s32.totalorder %s22, 1
    %p82 = por %p80, %p81
    %p83 = scmp.ne.s32.totalorder %s74, %s75
    %p84 = scmp.eq.s32.totalorder %s22, 0
    %p85 = por %p83, %p84
    %p86 = scmp.ne.s32.totalorder %s74, %s75
    %p87 = scmp.eq.s32.totalorder %s23, 1
    %p88 = por %p86, %p87
    %p90 = scmp.ne.s32.totalorder %s75, %s89
    %p91 = scmp.eq.s32.totalorder %s23, 0
    %p92 = por %p90, %p91
    %s94 = sadd.s32 %s93, 1
    %p97 = scmp.eq.s32.totalorder %s17, 1
    %p98 = scmp.ne.s32.totalorder %s93, %s95
    %p99 = scmp.eq.s32.totalorder %s17, 0
    %p100 = por %p98, %p99
    %p101 = scmp.ne.s32.totalorder %s93, %s95
    %p102 = scmp.eq.s32.totalorder %s22, 1
    %p103 = por %p101, %p102
    %p104 = scmp.ne.s32.totalorder %s95, %s96
    %p105 = scmp.eq.s32.totalorder %s22, 0
    %p106 = por %p104, %p105
    %p107 = scmp.ne.s32.totalorder %s95, %s96
    %p108 = scmp.eq.s32.totalorder %s23, 1
    %p109 = por %p107, %p108
    %p111 = scmp.ne.s32.totalorder %s96, %s110
    %p112 = scmp.eq.s32.totalorder %s23, 0
    %p113 = por %p111, %p112
    %s115 = sadd.s32 %s114, 1
    %p118 = scmp.eq.s32.totalorder %s17, 1
    %p119 = scmp.ne.s32.totalorder %s114, %s116
    %p120 = scmp.eq.s32.totalorder %s17, 0
    %p121 = por %p119, %p120
    %p122 = scmp.ne.s32.totalorder %s114, %s116
    %p123 = scmp.eq.s32.totalorder %s22, 1
    %p124 = por %p122, %p123
    %p125 = scmp.ne.s32.totalorder %s116, %s117
    %p126 = scmp.eq.s32.totalorder %s22, 0
    %p127 = por %p125, %p126
    %p128 = scmp.ne.s32.totalorder %s116, %s117
    %p129 = scmp.eq.s32.totalorder %s23, 1
    %p130 = por %p128, %p129
    %p132 = scmp.ne.s32.totalorder %s117, %s131
    %p133 = scmp.eq.s32.totalorder %s23, 0
    %p134 = por %p132, %p133
    %s136 = sadd.s32 %s135, 1
    %p139 = scmp.eq.s32.totalorder %s17, 1
    %p140 = scmp.ne.s32.totalorder %s135, %s137
    %p141 = scmp.eq.s32.totalorder %s17, 0
    %p142 = por %p140, %p141
    %p143 = scmp.ne.s32.totalorder %s135, %s137
    %p144 = scmp.eq.s32.totalorder %s22, 1
    %p145 = por %p143, %p144
    %p146 = scmp.ne.s32.totalorder %s137, %s138
    %p147 = scmp.eq.s32.totalorder %s22, 0
    %p148 = por %p146, %p147
    %p149 = scmp.ne.s32.totalorder %s137, %s138
    %p150 = scmp.eq.s32.totalorder %s23, 1
    %p151 = por %p149, %p150
    %p153 = scmp.ne.s32.totalorder %s138, %s152
    %p154 = scmp.eq.s32.totalorder %s23, 0
    %p155 = por %p153, %p154
    %s157 = sadd.s32 %s156, 1
    %p160 = scmp.eq.s32.totalorder %s17, 1
    %p161 = scmp.ne.s32.totalorder %s156, %s158
    %p162 = scmp.eq.s32.totalorder %s17, 0
    %p163 = por %p161, %p162
    %p164 = scmp.ne.s32.totalorder %s156, %s158
    %p165 = scmp.eq.s32.totalorder %s22, 1
    %p166 = por %p164, %p165
    %p167 = scmp.ne.s32.totalorder %s158, %s159
    %p168 = scmp.eq.s32.totalorder %s22, 0
    %p169 = por %p167, %p168
    %p170 = scmp.ne.s32.totalorder %s158, %s159
    %p171 = scmp.eq.s32.totalorder %s23, 1
    %p172 = por %p170, %p171
    %p174 = scmp.ne.s32.totalorder %s159, %s173
    %p175 = scmp.eq.s32.totalorder %s23, 0
    %p176 = por %p174, %p175
    %s178 = sadd.s32 %s177, 1
    %p181 = scmp.eq.s32.totalorder %s17, 1
    %p182 = scmp.ne.s32.totalorder %s177, %s179
    %p183 = scmp.eq.s32.totalorder %s17, 0
    %p184 = por %p182, %p183
    %p185 = scmp.ne.s32.totalorder %s177, %s179
    %p186 = scmp.eq.s32.totalorder %s22, 1
    %p187 = por %p185, %p186
    %p188 = scmp.ne.s32.totalorder %s179, %s180
    %p189 = scmp.eq.s32.totalorder %s22, 0
    %p190 = por %p188, %p189
    %p191 = scmp.ne.s32.totalorder %s179, %s180
    %p192 = scmp.eq.s32.totalorder %s23, 1
    %p193 = por %p191, %p192
    %p195 = scmp.ne.s32.totalorder %s180, %s194
    %p196 = scmp.eq.s32.totalorder %s23, 0
    %p197 = por %p195, %p196
    %s199 = sadd.s32 %s198, 1
    %p202 = scmp.eq.s32.totalorder %s17, 1
    %p203 = scmp.ne.s32.totalorder %s198, %s200
    %p204 = scmp.eq.s32.totalorder %s17, 0
    %p205 = por %p203, %p204
    %p206 = scmp.ne.s32.totalorder %s198, %s200
    %p207 = scmp.eq.s32.totalorder %s22, 1
    %p208 = por %p206, %p207
    %p209 = scmp.ne.s32.totalorder %s200, %s201
    %p210 = scmp.eq.s32.totalorder %s22, 0
    %p211 = por %p209, %p210
    %p212 = scmp.ne.s32.totalorder %s200, %s201
    %p213 = scmp.eq.s32.totalorder %s23, 1
    %p214 = por %p212, %p213
    %p216 = scmp.ne.s32.totalorder %s201, %s215
    %p217 = scmp.eq.s32.totalorder %s23, 0
    %p218 = por %p216, %p217
    %s220 = sadd.s32 %s219, 1
    %p223 = scmp.eq.s32.totalorder %s17, 1
    %p224 = scmp.ne.s32.totalorder %s219, %s221
    %p225 = scmp.eq.s32.totalorder %s17, 0
    %p226 = por %p224, %p225
    %p227 = scmp.ne.s32.totalorder %s219, %s221
    %p228 = scmp.eq.s32.totalorder %s22, 1
    %p229 = por %p227, %p228
    %p230 = scmp.ne.s32.totalorder %s221, %s222
    %p231 = scmp.eq.s32.totalorder %s22, 0
    %p232 = por %p230, %p231
    %p233 = scmp.ne.s32.totalorder %s221, %s222
    %p234 = scmp.eq.s32.totalorder %s23, 1
    %p235 = por %p233, %p234
    %p237 = scmp.ne.s32.totalorder %s222, %s236
    %p238 = scmp.eq.s32.totalorder %s23, 0
    %p239 = por %p237, %p238
    %s241 = sadd.s32 %s240, 1
    %p244 = scmp.eq.s32.totalorder %s17, 1
    %p245 = scmp.ne.s32.totalorder %s240, %s242
    %p246 = scmp.eq.s32.totalorder %s17, 0
    %p247 = por %p245, %p246
    %p248 = scmp.ne.s32.totalorder %s240, %s242
    %p249 = scmp.eq.s32.totalorder %s22, 1
    %p250 = por %p248, %p249
    %p251 = scmp.ne.s32.totalorder %s242, %s243
    %p252 = scmp.eq.s32.totalorder %s22, 0
    %p253 = por %p251, %p252
    %p254 = scmp.ne.s32.totalorder %s242, %s243
    %p255 = scmp.eq.s32.totalorder %s23, 1
    %p256 = por %p254, %p255
    %p258 = scmp.ne.s32.totalorder %s243, %s257
    %p259 = scmp.eq.s32.totalorder %s23, 0
    %p260 = por %p258, %p259
    %s261 = ssub.s32 %s17, %s24
    %p262 = scmp.eq.s32.totalorder %s261, 0
    %s264 = sadd.s32 %s263, 1
    %s265 = scalar_select %p262, %s263, %s264
    %p268 = pneg %p262
    %p269 = scmp.eq.s32.totalorder %s17, 1
    %p270 = por %p268, %p269
    %p271 = scmp.ne.s32.totalorder %s263, %s266
    %p272 = scmp.eq.s32.totalorder %s17, 0
    %p273 = por %p271, %p272
    %p274 = scmp.ne.s32.totalorder %s263, %s266
    %p275 = scmp.eq.s32.totalorder %s22, 1
    %p276 = por %p274, %p275
    %p277 = scmp.ne.s32.totalorder %s266, %s267
    %p278 = scmp.eq.s32.totalorder %s22, 0
    %p279 = por %p277, %p278
    %p280 = scmp.ne.s32.totalorder %s266, %s267
    %p281 = scmp.eq.s32.totalorder %s23, 1
    %p282 = por %p280, %p281
    %p284 = scmp.ne.s32.totalorder %s267, %s283
    %p285 = scmp.eq.s32.totalorder %s23, 0
    %p286 = por %p284, %p285
    %p287 = scmp.le.s32.totalorder 1, %s17
    %p288 = scmp.lt.s32.totalorder %s17, 3
    %p289 = pnand %p287, %p288
    %p290 = pneg %p289
    // Predicated region
    $region9: #{fwd.1} parent=5 // pred_check
      _
    $region10: #{fwd.1} parent=5 // pred_check_branch
      %292 = sbr.rel (%p289) target = $region12
    $region11: #{fwd.1} parent=5 // pred_region
      %s293 = ssub.s32 %s17, 1
      // Predicated region
      $region13: #{fwd.1} parent=11 // pred_check
        %p294 = pneg %p64
      $region14: #{fwd.1} parent=11 // pred_check_branch
        %296 = sbr.rel (%p294) target = $region16
      $region15: #{fwd.1} parent=11 // pred_region
        _
      $region16: #{fwd.1} parent=11 // pred_fallthru
        _
      // Predicated region
      $region17: #{fwd.1} parent=11 // pred_check
        %p297 = pneg %p85
      $region18: #{fwd.1} parent=11 // pred_check_branch
        %299 = sbr.rel (%p297) target = $region20
      $region19: #{fwd.1} parent=11 // pred_region
        _
      $region20: #{fwd.1} parent=11 // pred_fallthru
        _
      // Predicated region
      $region21: #{fwd.1} parent=11 // pred_check
        %p300 = pneg %p106
      $region22: #{fwd.1} parent=11 // pred_check_branch
        %302 = sbr.rel (%p300) target = $region24
      $region23: #{fwd.1} parent=11 // pred_region
        _
      $region24: #{fwd.1} parent=11 // pred_fallthru
        _
      // Predicated region
      $region25: #{fwd.1} parent=11 // pred_check
        %p303 = pneg %p127
      $region26: #{fwd.1} parent=11 // pred_check_branch
        %305 = sbr.rel (%p303) target = $region28
      $region27: #{fwd.1} parent=11 // pred_region
        _
      $region28: #{fwd.1} parent=11 // pred_fallthru
        _
      // Predicated region
      $region29: #{fwd.1} parent=11 // pred_check
        %p306 = pneg %p148
      $region30: #{fwd.1} parent=11 // pred_check_branch
        %308 = sbr.rel (%p306) target = $region32
      $region31: #{fwd.1} parent=11 // pred_region
        _
      $region32: #{fwd.1} parent=11 // pred_fallthru
        _
      // Predicated region
      $region33: #{fwd.1} parent=11 // pred_check
        %p309 = pneg %p169
      $region34: #{fwd.1} parent=11 // pred_check_branch
        %311 = sbr.rel (%p309) target = $region36
      $region35: #{fwd.1} parent=11 // pred_region
        _
      $region36: #{fwd.1} parent=11 // pred_fallthru
        _
      // Predicated region
      $region37: #{fwd.1} parent=11 // pred_check
        %p312 = pneg %p190
      $region38: #{fwd.1} parent=11 // pred_check_branch
        %314 = sbr.rel (%p312) target = $region40
      $region39: #{fwd.1} parent=11 // pred_region
        _
      $region40: #{fwd.1} parent=11 // pred_fallthru
        _
      // Predicated region
      $region41: #{fwd.1} parent=11 // pred_check
        %p315 = pneg %p211
      $region42: #{fwd.1} parent=11 // pred_check_branch
        %317 = sbr.rel (%p315) target = $region44
      $region43: #{fwd.1} parent=11 // pred_region
        _
      $region44: #{fwd.1} parent=11 // pred_fallthru
        _
      // Predicated region
      $region45: #{fwd.1} parent=11 // pred_check
        %p318 = pneg %p232
      $region46: #{fwd.1} parent=11 // pred_check_branch
        %320 = sbr.rel (%p318) target = $region48
      $region47: #{fwd.1} parent=11 // pred_region
        _
      $region48: #{fwd.1} parent=11 // pred_fallthru
        _
      // Predicated region
      $region49: #{fwd.1} parent=11 // pred_check
        %p321 = pneg %p253
      $region50: #{fwd.1} parent=11 // pred_check_branch
        %323 = sbr.rel (%p321) target = $region52
      $region51: #{fwd.1} parent=11 // pred_region
        _
      $region52: #{fwd.1} parent=11 // pred_fallthru
        _
    $region12: #{fwd.1} parent=5 // pred_fallthru
      _
    %p324 = scmp.lt.s32.totalorder %s17, 2
    // Predicated region
    $region53: #{fwd.1} parent=5 // pred_check
      %p325 = pneg %p324
    $region54: #{fwd.1} parent=5 // pred_check_branch
      %327 = sbr.rel (%p325) target = $region56
    $region55: #{fwd.1} parent=5 // pred_region
      // Predicated region
      $region57: #{fwd.1} parent=55 // pred_check
        %p328 = pneg %p37
      $region58: #{fwd.1} parent=55 // pred_check_branch
        %330 = sbr.rel (%p328) target = $region60
      $region59: #{fwd.1} parent=55 // pred_region
        %p331 = scmp.lt.s32.totalorder %s17, 1
        %s332 = scalar_select %p331, %s17, 1
        %s333 = smul.addr %s332, 16
        %s334 = scalar_lea.vmem %s0, %s333
      $region60: #{fwd.1} parent=55 // pred_fallthru
        _
    $region56: #{fwd.1} parent=5 // pred_fallthru
      _
    %p335 = scmp.le.s32.totalorder 1, %s17
    %p336 = scmp.lt.s32.totalorder %s17, 3
    %p337 = pnand %p335, %p336
    %p338 = pneg %p337
    // Predicated region
    $region61: #{fwd.1} parent=5 // pred_check
      _
    $region62: #{fwd.1} parent=5 // pred_check_branch
      %340 = sbr.rel (%p337) target = $region64
    $region63: #{fwd.1} parent=5 // pred_region
      %s341 = ssub.s32 %s17, 1
      %p342 = scmp.lt.s32.totalorder %s22, 1
      %s343 = scalar_select %p342, %s22, 1
      %s344 = smul.addr %s343, 16
      %s345 = scalar_lea.vmem %s0, %s344
      %p346 = pneg %p43
      %p347 = pneg %p40
      %p348 = pneg %p64
      %p349 = pneg %p61
      %p350 = pneg %p85
      %p351 = pneg %p82
      %p352 = pneg %p106
      %p353 = pneg %p103
      %p354 = pneg %p127
      %p355 = pneg %p124
      %p356 = pneg %p148
      %p357 = pneg %p145
      %p358 = pneg %p169
      %p359 = pneg %p166
      %p360 = pneg %p190
      %p361 = pneg %p187
      %p362 = pneg %p211
      %p363 = pneg %p208
      %p364 = pneg %p232
      %p365 = pneg %p229
      %p366 = pneg %p253
      %p367 = pneg %p250
      %p368 = pneg %p279
      %p369 = pneg %p276
      %p370 = scmp.lt.s32.totalorder %s22, 1
      %s371 = scalar_select %p370, %s22, 1
      %s372 = smul.addr %s371, 8
      %s373 = scalar_lea.vmem %s11, %s372
      %p374 = scmp.lt.s32.totalorder %s22, 1
      %s375 = scalar_select %p374, %s22, 1
      %s376 = smul.addr %s375, 16
      %s377 = scalar_lea.vmem %s0, %s376
      %p378 = scmp.lt.s32.totalorder %s22, 1
      %s379 = scalar_select %p378, %s22, 1
      %s380 = smul.addr %s379, 8
      %s381 = scalar_lea.vmem %s11, %s380
      %v383 = vld [vmem:[%s377] sm:$0xff]
      %v384 = vld [vmem:[%s377 + $0x8] sm:$0xff]
      %v386 = vlaneseq
      %v387 = vshrl.u32 %v386, 7
      %v388 = vsub.s32 6, %v387
      %v389 = vrot.slane %v384, %v388
      %v390 = vlaneseq
      %v391 = vshrl.u32 %v390, 7
      %v392 = vsub.s32 7, %v391
      %v393 = vrot.slane %v384, %v392
      %394 = vrot.lane.b32.xlu0 %v389, 1
      %v395 = vpop.permute.xlu0 %394
      %396 = vrot.lane.b32.xlu0 %v393, 1
      %v397 = vpop.permute.xlu0 %396
      %vm398 = vcmask 7168
      %v399 = vsel %vm398, %v395, %v397
      %v403 = vlaneseq
      %v404 = vshrl.u32 %v403, 7
      %v405 = vsub.s32 0, %v404
      %v406 = vrot.slane %v383, %v405
      %v407 = vlaneseq
      %v408 = vshrl.u32 %v407, 7
      %v409 = vsub.s32 1, %v408
      %v410 = vrot.slane %v383, %v409
      %v411 = vlaneseq
      %v412 = vshrl.u32 %v411, 7
      %v413 = vsub.s32 2, %v412
      %v414 = vrot.slane %v383, %v413
      %v415 = vlaneseq
      %v416 = vshrl.u32 %v415, 7
      %v417 = vsub.s32 3, %v416
      %v418 = vrot.slane %v383, %v417
      %v419 = vlaneseq
      %v420 = vshrl.u32 %v419, 7
      %v421 = vsub.s32 4, %v420
      %v422 = vrot.slane %v383, %v421
      %v423 = vlaneseq
      %v424 = vshrl.u32 %v423, 7
      %v425 = vsub.s32 5, %v424
      %v426 = vrot.slane %v383, %v425
      %v427 = vlaneseq
      %v428 = vshrl.u32 %v427, 7
      %v429 = vsub.s32 6, %v428
      %v430 = vrot.slane %v383, %v429
      %v431 = vlaneseq
      %v432 = vshrl.u32 %v431, 7
      %v433 = vsub.s32 7, %v432
      %v434 = vrot.slane %v383, %v433
      %v435 = vlaneseq
      %v436 = vshrl.u32 %v435, 7
      %v437 = vsub.s32 0, %v436
      %v438 = vrot.slane %v384, %v437
      %v439 = vlaneseq
      %v440 = vshrl.u32 %v439, 7
      %v441 = vsub.s32 1, %v440
      %v442 = vrot.slane %v384, %v441
      %v443 = vlaneseq
      %v444 = vshrl.u32 %v443, 7
      %v445 = vsub.s32 2, %v444
      %v446 = vrot.slane %v384, %v445
      %v447 = vlaneseq
      %v448 = vshrl.u32 %v447, 7
      %v449 = vsub.s32 3, %v448
      %v450 = vrot.slane %v384, %v449
      %v451 = vlaneseq
      %v452 = vshrl.u32 %v451, 7
      %v453 = vsub.s32 4, %v452
      %v454 = vrot.slane %v384, %v453
      %v455 = vlaneseq
      %v456 = vshrl.u32 %v455, 7
      %v457 = vsub.s32 5, %v456
      %v458 = vrot.slane %v384, %v457
      %459 = vrot.lane.b32.xlu0 %v406, 1
      %v460 = vpop.permute.xlu0 %459
      %461 = vrot.lane.b32.xlu0 %v410, 1
      %v462 = vpop.permute.xlu0 %461
      %463 = vrot.lane.b32.xlu0 %v414, 1
      %v464 = vpop.permute.xlu0 %463
      %465 = vrot.lane.b32.xlu0 %v418, 1
      %v466 = vpop.permute.xlu0 %465
      %467 = vrot.lane.b32.xlu0 %v422, 1
      %v468 = vpop.permute.xlu0 %467
      %469 = vrot.lane.b32.xlu0 %v426, 1
      %v470 = vpop.permute.xlu0 %469
      %471 = vrot.lane.b32.xlu0 %v430, 1
      %v472 = vpop.permute.xlu0 %471
      %473 = vrot.lane.b32.xlu0 %v434, 1
      %v474 = vpop.permute.xlu0 %473
      %475 = vrot.lane.b32.xlu0 %v438, 1
      %v476 = vpop.permute.xlu0 %475
      %477 = vrot.lane.b32.xlu0 %v442, 1
      %v478 = vpop.permute.xlu0 %477
      %479 = vrot.lane.b32.xlu0 %v446, 1
      %v480 = vpop.permute.xlu0 %479
      %481 = vrot.lane.b32.xlu0 %v450, 1
      %v482 = vpop.permute.xlu0 %481
      %483 = vrot.lane.b32.xlu0 %v454, 1
      %v484 = vpop.permute.xlu0 %483
      %485 = vrot.lane.b32.xlu0 %v458, 1
      %v486 = vpop.permute.xlu0 %485
      %v487 = vsel %vm398, %v460, %v462
      %v488 = vsel %vm398, %v462, %v464
      %v489 = vsel %vm398, %v464, %v466
      %v490 = vsel %vm398, %v466, %v468
      %v491 = vsel %vm398, %v468, %v470
      %v492 = vsel %vm398, %v470, %v472
      %v493 = vsel %vm398, %v472, %v474
      %v494 = vsel %vm398, %v474, %v476
      %v495 = vsel %vm398, %v476, %v478
      %v496 = vsel %vm398, %v478, %v480
      %v497 = vsel %vm398, %v480, %v482
      %v498 = vsel %vm398, %v482, %v484
      %v499 = vsel %vm398, %v484, %v486
      %v500 = vsel %vm398, %v486, %v395
      %v516 = vsel %vm398, %v397, %v460
      %v517 = vld [vmem:[%s3] ss:$8 sm:$0xf]
      %v518 = vld [vmem:[%s3] ss:$8 sm:$0xf0]
      %v519 = vor.u32 %v517, %v518
      %s520 = scalar_lea.vmem %s3, 64
      %v521 = vld [vmem:[%s520] ss:$8 sm:$0xf]
      %v522 = vld [vmem:[%s520] ss:$8 sm:$0xf0]
      %v523 = vor.u32 %v521, %v522
      %v526 = vlaneseq
      %v527 = vshrl.u32 %v526, 7
      %v528 = vsub.s32 0, %v527
      %v529 = vrot.slane %v519, %v528
      %v530 = vlaneseq
      %v531 = vshrl.u32 %v530, 7
      %v532 = vsub.s32 1, %v531
      %v533 = vrot.slane %v519, %v532
      %v534 = vlaneseq
      %v535 = vshrl.u32 %v534, 7
      %v536 = vsub.s32 2, %v535
      %v537 = vrot.slane %v519, %v536
      %v538 = vlaneseq
      %v539 = vshrl.u32 %v538, 7
      %v540 = vsub.s32 3, %v539
      %v541 = vrot.slane %v519, %v540
      %v542 = vlaneseq
      %v543 = vshrl.u32 %v542, 7
      %v544 = vsub.s32 4, %v543
      %v545 = vrot.slane %v519, %v544
      %v546 = vlaneseq
      %v547 = vshrl.u32 %v546, 7
      %v548 = vsub.s32 5, %v547
      %v549 = vrot.slane %v519, %v548
      %v550 = vlaneseq
      %v551 = vshrl.u32 %v550, 7
      %v552 = vsub.s32 6, %v551
      %v553 = vrot.slane %v519, %v552
      %v554 = vlaneseq
      %v555 = vshrl.u32 %v554, 7
      %v556 = vsub.s32 7, %v555
      %v557 = vrot.slane %v519, %v556
      %v558 = vlaneseq
      %v559 = vshrl.u32 %v558, 7
      %v560 = vsub.s32 0, %v559
      %v561 = vrot.slane %v523, %v560
      %v562 = vlaneseq
      %v563 = vshrl.u32 %v562, 7
      %v564 = vsub.s32 1, %v563
      %v565 = vrot.slane %v523, %v564
      %v566 = vlaneseq
      %v567 = vshrl.u32 %v566, 7
      %v568 = vsub.s32 2, %v567
      %v569 = vrot.slane %v523, %v568
      %v570 = vlaneseq
      %v571 = vshrl.u32 %v570, 7
      %v572 = vsub.s32 3, %v571
      %v573 = vrot.slane %v523, %v572
      %v574 = vlaneseq
      %v575 = vshrl.u32 %v574, 7
      %v576 = vsub.s32 4, %v575
      %v577 = vrot.slane %v523, %v576
      %v578 = vlaneseq
      %v579 = vshrl.u32 %v578, 7
      %v580 = vsub.s32 5, %v579
      %v581 = vrot.slane %v523, %v580
      %v582 = vlaneseq
      %v583 = vshrl.u32 %v582, 7
      %v584 = vsub.s32 6, %v583
      %v585 = vrot.slane %v523, %v584
      %v586 = vlaneseq
      %v587 = vshrl.u32 %v586, 7
      %v588 = vsub.s32 7, %v587
      %v589 = vrot.slane %v523, %v588
      %v606 = vmul.f32 %v399, %v529
      %v607 = vmul.f32 %v516, %v533
      %v608 = vmul.f32 %v487, %v537
      %v609 = vmul.f32 %v488, %v541
      %v610 = vmul.f32 %v489, %v545
      %v611 = vmul.f32 %v490, %v549
      %v612 = vmul.f32 %v491, %v553
      %v613 = vmul.f32 %v492, %v557
      %v614 = vmul.f32 %v493, %v561
      %v615 = vmul.f32 %v494, %v565
      %v616 = vmul.f32 %v495, %v569
      %v617 = vmul.f32 %v496, %v573
      %v618 = vmul.f32 %v497, %v577
      %v619 = vmul.f32 %v498, %v581
      %v620 = vmul.f32 %v499, %v585
      %v621 = vmul.f32 %v500, %v589
      %s638 = scalar_lea.vmem %s3, 1
      %v639 = vld [vmem:[%s638] ss:$8 sm:$0xf]
      %v640 = vld [vmem:[%s638] ss:$8 sm:$0xf0]
      %v641 = vor.u32 %v639, %v640
      %s642 = scalar_lea.vmem %s3, 65
      %v643 = vld [vmem:[%s642] ss:$8 sm:$0xf]
      %v644 = vld [vmem:[%s642] ss:$8 sm:$0xf0]
      %v645 = vor.u32 %v643, %v644
      %v648 = vlaneseq
      %v649 = vshrl.u32 %v648, 7
      %v650 = vsub.s32 0, %v649
      %v651 = vrot.slane %v641, %v650
      %v652 = vlaneseq
      %v653 = vshrl.u32 %v652, 7
      %v654 = vsub.s32 1, %v653
      %v655 = vrot.slane %v641, %v654
      %v656 = vlaneseq
      %v657 = vshrl.u32 %v656, 7
      %v658 = vsub.s32 2, %v657
      %v659 = vrot.slane %v641, %v658
      %v660 = vlaneseq
      %v661 = vshrl.u32 %v660, 7
      %v662 = vsub.s32 3, %v661
      %v663 = vrot.slane %v641, %v662
      %v664 = vlaneseq
      %v665 = vshrl.u32 %v664, 7
      %v666 = vsub.s32 4, %v665
      %v667 = vrot.slane %v641, %v666
      %v668 = vlaneseq
      %v669 = vshrl.u32 %v668, 7
      %v670 = vsub.s32 5, %v669
      %v671 = vrot.slane %v641, %v670
      %v672 = vlaneseq
      %v673 = vshrl.u32 %v672, 7
      %v674 = vsub.s32 6, %v673
      %v675 = vrot.slane %v641, %v674
      %v676 = vlaneseq
      %v677 = vshrl.u32 %v676, 7
      %v678 = vsub.s32 7, %v677
      %v679 = vrot.slane %v641, %v678
      %v680 = vlaneseq
      %v681 = vshrl.u32 %v680, 7
      %v682 = vsub.s32 0, %v681
      %v683 = vrot.slane %v645, %v682
      %v684 = vlaneseq
      %v685 = vshrl.u32 %v684, 7
      %v686 = vsub.s32 1, %v685
      %v687 = vrot.slane %v645, %v686
      %v688 = vlaneseq
      %v689 = vshrl.u32 %v688, 7
      %v690 = vsub.s32 2, %v689
      %v691 = vrot.slane %v645, %v690
      %v692 = vlaneseq
      %v693 = vshrl.u32 %v692, 7
      %v694 = vsub.s32 3, %v693
      %v695 = vrot.slane %v645, %v694
      %v696 = vlaneseq
      %v697 = vshrl.u32 %v696, 7
      %v698 = vsub.s32 4, %v697
      %v699 = vrot.slane %v645, %v698
      %v700 = vlaneseq
      %v701 = vshrl.u32 %v700, 7
      %v702 = vsub.s32 5, %v701
      %v703 = vrot.slane %v645, %v702
      %v704 = vlaneseq
      %v705 = vshrl.u32 %v704, 7
      %v706 = vsub.s32 6, %v705
      %v707 = vrot.slane %v645, %v706
      %v708 = vlaneseq
      %v709 = vshrl.u32 %v708, 7
      %v710 = vsub.s32 7, %v709
      %v711 = vrot.slane %v645, %v710
      %v728 = vmul.f32 %v393, %v651
      %v729 = vmul.f32 %v406, %v655
      %v730 = vmul.f32 %v410, %v659
      %v731 = vmul.f32 %v414, %v663
      %v732 = vmul.f32 %v418, %v667
      %v733 = vmul.f32 %v422, %v671
      %v734 = vmul.f32 %v426, %v675
      %v735 = vmul.f32 %v430, %v679
      %v736 = vmul.f32 %v434, %v683
      %v737 = vmul.f32 %v438, %v687
      %v738 = vmul.f32 %v442, %v691
      %v739 = vmul.f32 %v446, %v695
      %v740 = vmul.f32 %v450, %v699
      %v741 = vmul.f32 %v454, %v703
      %v742 = vmul.f32 %v458, %v707
      %v743 = vmul.f32 %v389, %v711
      %744 = vrot.lane.b32.xlu0 %v393, 127
      %v745 = vpop.permute.xlu0 %744
      %747 = vrot.lane.b32.xlu0 %v406, 127
      %v748 = vpop.permute.xlu0 %747
      %749 = vrot.lane.b32.xlu0 %v410, 127
      %v750 = vpop.permute.xlu0 %749
      %751 = vrot.lane.b32.xlu0 %v414, 127
      %v752 = vpop.permute.xlu0 %751
      %753 = vrot.lane.b32.xlu0 %v418, 127
      %v754 = vpop.permute.xlu0 %753
      %755 = vrot.lane.b32.xlu0 %v422, 127
      %v756 = vpop.permute.xlu0 %755
      %757 = vrot.lane.b32.xlu0 %v426, 127
      %v758 = vpop.permute.xlu0 %757
      %759 = vrot.lane.b32.xlu0 %v430, 127
      %v760 = vpop.permute.xlu0 %759
      %761 = vrot.lane.b32.xlu0 %v434, 127
      %v762 = vpop.permute.xlu0 %761
      %763 = vrot.lane.b32.xlu0 %v438, 127
      %v764 = vpop.permute.xlu0 %763
      %765 = vrot.lane.b32.xlu0 %v442, 127
      %v766 = vpop.permute.xlu0 %765
      %767 = vrot.lane.b32.xlu0 %v446, 127
      %v768 = vpop.permute.xlu0 %767
      %769 = vrot.lane.b32.xlu0 %v450, 127
      %v770 = vpop.permute.xlu0 %769
      %771 = vrot.lane.b32.xlu0 %v454, 127
      %v772 = vpop.permute.xlu0 %771
      %773 = vrot.lane.b32.xlu0 %v458, 127
      %v774 = vpop.permute.xlu0 %773
      %775 = vrot.lane.b32.xlu0 %v389, 127
      %v776 = vpop.permute.xlu0 %775
      %vm777 = vcmask 1039360
      %v778 = vsel %vm777, %v748, %v750
      %v779 = vsel %vm777, %v750, %v752
      %v780 = vsel %vm777, %v752, %v754
      %v781 = vsel %vm777, %v754, %v756
      %v782 = vsel %vm777, %v756, %v758
      %v783 = vsel %vm777, %v758, %v760
      %v784 = vsel %vm777, %v760, %v762
      %v785 = vsel %vm777, %v762, %v764
      %v786 = vsel %vm777, %v764, %v766
      %v787 = vsel %vm777, %v766, %v768
      %v788 = vsel %vm777, %v768, %v770
      %v789 = vsel %vm777, %v770, %v772
      %v790 = vsel %vm777, %v772, %v774
      %v791 = vsel %vm777, %v774, %v776
      %v792 = vsel %vm777, %v776, %v745
      %v809 = vsel %vm777, %v745, %v748
      %s810 = scalar_lea.vmem %s3, 2
      %v811 = vld [vmem:[%s810] ss:$8 sm:$0xf]
      %v812 = vld [vmem:[%s810] ss:$8 sm:$0xf0]
      %v813 = vor.u32 %v811, %v812
      %s814 = scalar_lea.vmem %s3, 66
      %v815 = vld [vmem:[%s814] ss:$8 sm:$0xf]
      %v816 = vld [vmem:[%s814] ss:$8 sm:$0xf0]
      %v817 = vor.u32 %v815, %v816
      %v820 = vlaneseq
      %v821 = vshrl.u32 %v820, 7
      %v822 = vsub.s32 0, %v821
      %v823 = vrot.slane %v813, %v822
      %v824 = vlaneseq
      %v825 = vshrl.u32 %v824, 7
      %v826 = vsub.s32 1, %v825
      %v827 = vrot.slane %v813, %v826
      %v828 = vlaneseq
      %v829 = vshrl.u32 %v828, 7
      %v830 = vsub.s32 2, %v829
      %v831 = vrot.slane %v813, %v830
      %v832 = vlaneseq
      %v833 = vshrl.u32 %v832, 7
      %v834 = vsub.s32 3, %v833
      %v835 = vrot.slane %v813, %v834
      %v836 = vlaneseq
      %v837 = vshrl.u32 %v836, 7
      %v838 = vsub.s32 4, %v837
      %v839 = vrot.slane %v813, %v838
      %v840 = vlaneseq
      %v841 = vshrl.u32 %v840, 7
      %v842 = vsub.s32 5, %v841
      %v843 = vrot.slane %v813, %v842
      %v844 = vlaneseq
      %v845 = vshrl.u32 %v844, 7
      %v846 = vsub.s32 6, %v845
      %v847 = vrot.slane %v813, %v846
      %v848 = vlaneseq
      %v849 = vshrl.u32 %v848, 7
      %v850 = vsub.s32 7, %v849
      %v851 = vrot.slane %v813, %v850
      %v852 = vlaneseq
      %v853 = vshrl.u32 %v852, 7
      %v854 = vsub.s32 0, %v853
      %v855 = vrot.slane %v817, %v854
      %v856 = vlaneseq
      %v857 = vshrl.u32 %v856, 7
      %v858 = vsub.s32 1, %v857
      %v859 = vrot.slane %v817, %v858
      %v860 = vlaneseq
      %v861 = vshrl.u32 %v860, 7
      %v862 = vsub.s32 2, %v861
      %v863 = vrot.slane %v817, %v862
      %v864 = vlaneseq
      %v865 = vshrl.u32 %v864, 7
      %v866 = vsub.s32 3, %v865
      %v867 = vrot.slane %v817, %v866
      %v868 = vlaneseq
      %v869 = vshrl.u32 %v868, 7
      %v870 = vsub.s32 4, %v869
      %v871 = vrot.slane %v817, %v870
      %v872 = vlaneseq
      %v873 = vshrl.u32 %v872, 7
      %v874 = vsub.s32 5, %v873
      %v875 = vrot.slane %v817, %v874
      %v876 = vlaneseq
      %v877 = vshrl.u32 %v876, 7
      %v878 = vsub.s32 6, %v877
      %v879 = vrot.slane %v817, %v878
      %v880 = vlaneseq
      %v881 = vshrl.u32 %v880, 7
      %v882 = vsub.s32 7, %v881
      %v883 = vrot.slane %v817, %v882
      %v900 = vmul.f32 %v809, %v823
      %v901 = vmul.f32 %v778, %v827
      %v902 = vmul.f32 %v779, %v831
      %v903 = vmul.f32 %v780, %v835
      %v904 = vmul.f32 %v781, %v839
      %v905 = vmul.f32 %v782, %v843
      %v906 = vmul.f32 %v783, %v847
      %v907 = vmul.f32 %v784, %v851
      %v908 = vmul.f32 %v785, %v855
      %v909 = vmul.f32 %v786, %v859
      %v910 = vmul.f32 %v787, %v863
      %v911 = vmul.f32 %v788, %v867
      %v912 = vmul.f32 %v789, %v871
      %v913 = vmul.f32 %v790, %v875
      %v914 = vmul.f32 %v791, %v879
      %v915 = vmul.f32 %v792, %v883
      %s916 = scalar_lea.vmem %s3, 3
      %v917 = vld [vmem:[%s916] ss:$8 sm:$0xf]
      %v918 = vld [vmem:[%s916] ss:$8 sm:$0xf0]
      %v919 = vor.u32 %v917, %v918
      %s920 = scalar_lea.vmem %s3, 67
      %v921 = vld [vmem:[%s920] ss:$8 sm:$0xf]
      %v922 = vld [vmem:[%s920] ss:$8 sm:$0xf0]
      %v923 = vor.u32 %v921, %v922
      %v926 = vlaneseq
      %v927 = vshrl.u32 %v926, 7
      %v928 = vsub.s32 0, %v927
      %v929 = vrot.slane %v919, %v928
      %v930 = vlaneseq
      %v931 = vshrl.u32 %v930, 7
      %v932 = vsub.s32 1, %v931
      %v933 = vrot.slane %v919, %v932
      %v934 = vlaneseq
      %v935 = vshrl.u32 %v934, 7
      %v936 = vsub.s32 2, %v935
      %v937 = vrot.slane %v919, %v936
      %v938 = vlaneseq
      %v939 = vshrl.u32 %v938, 7
      %v940 = vsub.s32 3, %v939
      %v941 = vrot.slane %v919, %v940
      %v942 = vlaneseq
      %v943 = vshrl.u32 %v942, 7
      %v944 = vsub.s32 4, %v943
      %v945 = vrot.slane %v919, %v944
      %v946 = vlaneseq
      %v947 = vshrl.u32 %v946, 7
      %v948 = vsub.s32 5, %v947
      %v949 = vrot.slane %v919, %v948
      %v950 = vlaneseq
      %v951 = vshrl.u32 %v950, 7
      %v952 = vsub.s32 6, %v951
      %v953 = vrot.slane %v919, %v952
      %v954 = vlaneseq
      %v955 = vshrl.u32 %v954, 7
      %v956 = vsub.s32 7, %v955
      %v957 = vrot.slane %v919, %v956
      %v958 = vlaneseq
      %v959 = vshrl.u32 %v958, 7
      %v960 = vsub.s32 0, %v959
      %v961 = vrot.slane %v923, %v960
      %v962 = vlaneseq
      %v963 = vshrl.u32 %v962, 7
      %v964 = vsub.s32 1, %v963
      %v965 = vrot.slane %v923, %v964
      %v966 = vlaneseq
      %v967 = vshrl.u32 %v966, 7
      %v968 = vsub.s32 2, %v967
      %v969 = vrot.slane %v923, %v968
      %v970 = vlaneseq
      %v971 = vshrl.u32 %v970, 7
      %v972 = vsub.s32 3, %v971
      %v973 = vrot.slane %v923, %v972
      %v974 = vlaneseq
      %v975 = vshrl.u32 %v974, 7
      %v976 = vsub.s32 4, %v975
      %v977 = vrot.slane %v923, %v976
      %v978 = vlaneseq
      %v979 = vshrl.u32 %v978, 7
      %v980 = vsub.s32 5, %v979
      %v981 = vrot.slane %v923, %v980
      %v982 = vlaneseq
      %v983 = vshrl.u32 %v982, 7
      %v984 = vsub.s32 6, %v983
      %v985 = vrot.slane %v923, %v984
      %v986 = vlaneseq
      %v987 = vshrl.u32 %v986, 7
      %v988 = vsub.s32 7, %v987
      %v989 = vrot.slane %v923, %v988
      %v1006 = vmul.f32 %v516, %v929
      %v1007 = vmul.f32 %v487, %v933
      %v1008 = vmul.f32 %v488, %v937
      %v1009 = vmul.f32 %v489, %v941
      %v1010 = vmul.f32 %v490, %v945
      %v1011 = vmul.f32 %v491, %v949
      %v1012 = vmul.f32 %v492, %v953
      %v1013 = vmul.f32 %v493, %v957
      %v1014 = vmul.f32 %v494, %v961
      %v1015 = vmul.f32 %v495, %v965
      %v1016 = vmul.f32 %v496, %v969
      %v1017 = vmul.f32 %v497, %v973
      %v1018 = vmul.f32 %v498, %v977
      %v1019 = vmul.f32 %v499, %v981
      %v1020 = vmul.f32 %v500, %v985
      %v1021 = vmul.f32 %v399, %v989
      %s1022 = scalar_lea.vmem %s3, 5
      %v1023 = vld [vmem:[%s1022] ss:$8 sm:$0xf]
      %v1024 = vld [vmem:[%s1022] ss:$8 sm:$0xf0]
      %v1025 = vor.u32 %v1023, %v1024
      %s1026 = scalar_lea.vmem %s3, 69
      %v1027 = vld [vmem:[%s1026] ss:$8 sm:$0xf]
      %v1028 = vld [vmem:[%s1026] ss:$8 sm:$0xf0]
      %v1029 = vor.u32 %v1027, %v1028
      %v1032 = vlaneseq
      %v1033 = vshrl.u32 %v1032, 7
      %v1034 = vsub.s32 0, %v1033
      %v1035 = vrot.slane %v1025, %v1034
      %v1036 = vlaneseq
      %v1037 = vshrl.u32 %v1036, 7
      %v1038 = vsub.s32 1, %v1037
      %v1039 = vrot.slane %v1025, %v1038
      %v1040 = vlaneseq
      %v1041 = vshrl.u32 %v1040, 7
      %v1042 = vsub.s32 2, %v1041
      %v1043 = vrot.slane %v1025, %v1042
      %v1044 = vlaneseq
      %v1045 = vshrl.u32 %v1044, 7
      %v1046 = vsub.s32 3, %v1045
      %v1047 = vrot.slane %v1025, %v1046
      %v1048 = vlaneseq
      %v1049 = vshrl.u32 %v1048, 7
      %v1050 = vsub.s32 4, %v1049
      %v1051 = vrot.slane %v1025, %v1050
      %v1052 = vlaneseq
      %v1053 = vshrl.u32 %v1052, 7
      %v1054 = vsub.s32 5, %v1053
      %v1055 = vrot.slane %v1025, %v1054
      %v1056 = vlaneseq
      %v1057 = vshrl.u32 %v1056, 7
      %v1058 = vsub.s32 6, %v1057
      %v1059 = vrot.slane %v1025, %v1058
      %v1060 = vlaneseq
      %v1061 = vshrl.u32 %v1060, 7
      %v1062 = vsub.s32 7, %v1061
      %v1063 = vrot.slane %v1025, %v1062
      %v1064 = vlaneseq
      %v1065 = vshrl.u32 %v1064, 7
      %v1066 = vsub.s32 0, %v1065
      %v1067 = vrot.slane %v1029, %v1066
      %v1068 = vlaneseq
      %v1069 = vshrl.u32 %v1068, 7
      %v1070 = vsub.s32 1, %v1069
      %v1071 = vrot.slane %v1029, %v1070
      %v1072 = vlaneseq
      %v1073 = vshrl.u32 %v1072, 7
      %v1074 = vsub.s32 2, %v1073
      %v1075 = vrot.slane %v1029, %v1074
      %v1076 = vlaneseq
      %v1077 = vshrl.u32 %v1076, 7
      %v1078 = vsub.s32 3, %v1077
      %v1079 = vrot.slane %v1029, %v1078
      %v1080 = vlaneseq
      %v1081 = vshrl.u32 %v1080, 7
      %v1082 = vsub.s32 4, %v1081
      %v1083 = vrot.slane %v1029, %v1082
      %v1084 = vlaneseq
      %v1085 = vshrl.u32 %v1084, 7
      %v1086 = vsub.s32 5, %v1085
      %v1087 = vrot.slane %v1029, %v1086
      %v1088 = vlaneseq
      %v1089 = vshrl.u32 %v1088, 7
      %v1090 = vsub.s32 6, %v1089
      %v1091 = vrot.slane %v1029, %v1090
      %v1092 = vlaneseq
      %v1093 = vshrl.u32 %v1092, 7
      %v1094 = vsub.s32 7, %v1093
      %v1095 = vrot.slane %v1029, %v1094
      %v1112 = vmul.f32 %v778, %v1035
      %v1113 = vmul.f32 %v779, %v1039
      %v1114 = vmul.f32 %v780, %v1043
      %v1115 = vmul.f32 %v781, %v1047
      %v1116 = vmul.f32 %v782, %v1051
      %v1117 = vmul.f32 %v783, %v1055
      %v1118 = vmul.f32 %v784, %v1059
      %v1119 = vmul.f32 %v785, %v1063
      %v1120 = vmul.f32 %v786, %v1067
      %v1121 = vmul.f32 %v787, %v1071
      %v1122 = vmul.f32 %v788, %v1075
      %v1123 = vmul.f32 %v789, %v1079
      %v1124 = vmul.f32 %v790, %v1083
      %v1125 = vmul.f32 %v791, %v1087
      %v1126 = vmul.f32 %v792, %v1091
      %v1127 = vmul.f32 %v809, %v1095
      %s1128 = scalar_lea.vmem %s3, 6
      %v1129 = vld [vmem:[%s1128] ss:$8 sm:$0xf]
      %v1130 = vld [vmem:[%s1128] ss:$8 sm:$0xf0]
      %v1131 = vor.u32 %v1129, %v1130
      %s1132 = scalar_lea.vmem %s3, 70
      %v1133 = vld [vmem:[%s1132] ss:$8 sm:$0xf]
      %v1134 = vld [vmem:[%s1132] ss:$8 sm:$0xf0]
      %v1135 = vor.u32 %v1133, %v1134
      %v1138 = vlaneseq
      %v1139 = vshrl.u32 %v1138, 7
      %v1140 = vsub.s32 0, %v1139
      %v1141 = vrot.slane %v1131, %v1140
      %v1142 = vlaneseq
      %v1143 = vshrl.u32 %v1142, 7
      %v1144 = vsub.s32 1, %v1143
      %v1145 = vrot.slane %v1131, %v1144
      %v1146 = vlaneseq
      %v1147 = vshrl.u32 %v1146, 7
      %v1148 = vsub.s32 2, %v1147
      %v1149 = vrot.slane %v1131, %v1148
      %v1150 = vlaneseq
      %v1151 = vshrl.u32 %v1150, 7
      %v1152 = vsub.s32 3, %v1151
      %v1153 = vrot.slane %v1131, %v1152
      %v1154 = vlaneseq
      %v1155 = vshrl.u32 %v1154, 7
      %v1156 = vsub.s32 4, %v1155
      %v1157 = vrot.slane %v1131, %v1156
      %v1158 = vlaneseq
      %v1159 = vshrl.u32 %v1158, 7
      %v1160 = vsub.s32 5, %v1159
      %v1161 = vrot.slane %v1131, %v1160
      %v1162 = vlaneseq
      %v1163 = vshrl.u32 %v1162, 7
      %v1164 = vsub.s32 6, %v1163
      %v1165 = vrot.slane %v1131, %v1164
      %v1166 = vlaneseq
      %v1167 = vshrl.u32 %v1166, 7
      %v1168 = vsub.s32 7, %v1167
      %v1169 = vrot.slane %v1131, %v1168
      %v1170 = vlaneseq
      %v1171 = vshrl.u32 %v1170, 7
      %v1172 = vsub.s32 0, %v1171
      %v1173 = vrot.slane %v1135, %v1172
      %v1174 = vlaneseq
      %v1175 = vshrl.u32 %v1174, 7
      %v1176 = vsub.s32 1, %v1175
      %v1177 = vrot.slane %v1135, %v1176
      %v1178 = vlaneseq
      %v1179 = vshrl.u32 %v1178, 7
      %v1180 = vsub.s32 2, %v1179
      %v1181 = vrot.slane %v1135, %v1180
      %v1182 = vlaneseq
      %v1183 = vshrl.u32 %v1182, 7
      %v1184 = vsub.s32 3, %v1183
      %v1185 = vrot.slane %v1135, %v1184
      %v1186 = vlaneseq
      %v1187 = vshrl.u32 %v1186, 7
      %v1188 = vsub.s32 4, %v1187
      %v1189 = vrot.slane %v1135, %v1188
      %v1190 = vlaneseq
      %v1191 = vshrl.u32 %v1190, 7
      %v1192 = vsub.s32 5, %v1191
      %v1193 = vrot.slane %v1135, %v1192
      %v1194 = vlaneseq
      %v1195 = vshrl.u32 %v1194, 7
      %v1196 = vsub.s32 6, %v1195
      %v1197 = vrot.slane %v1135, %v1196
      %v1198 = vlaneseq
      %v1199 = vshrl.u32 %v1198, 7
      %v1200 = vsub.s32 7, %v1199
      %v1201 = vrot.slane %v1135, %v1200
      %v1218 = vmul.f32 %v487, %v1141
      %v1219 = vmul.f32 %v488, %v1145
      %v1220 = vmul.f32 %v489, %v1149
      %v1221 = vmul.f32 %v490, %v1153
      %v1222 = vmul.f32 %v491, %v1157
      %v1223 = vmul.f32 %v492, %v1161
      %v1224 = vmul.f32 %v493, %v1165
      %v1225 = vmul.f32 %v494, %v1169
      %v1226 = vmul.f32 %v495, %v1173
      %v1227 = vmul.f32 %v496, %v1177
      %v1228 = vmul.f32 %v497, %v1181
      %v1229 = vmul.f32 %v498, %v1185
      %v1230 = vmul.f32 %v499, %v1189
      %v1231 = vmul.f32 %v500, %v1193
      %v1232 = vmul.f32 %v399, %v1197
      %v1233 = vmul.f32 %v516, %v1201
      %s1234 = scalar_lea.vmem %s3, 7
      %v1235 = vld [vmem:[%s1234] ss:$8 sm:$0xf]
      %v1236 = vld [vmem:[%s1234] ss:$8 sm:$0xf0]
      %v1237 = vor.u32 %v1235, %v1236
      %s1238 = scalar_lea.vmem %s3, 71
      %v1239 = vld [vmem:[%s1238] ss:$8 sm:$0xf]
      %v1240 = vld [vmem:[%s1238] ss:$8 sm:$0xf0]
      %v1241 = vor.u32 %v1239, %v1240
      %v1244 = vlaneseq
      %v1245 = vshrl.u32 %v1244, 7
      %v1246 = vsub.s32 0, %v1245
      %v1247 = vrot.slane %v1237, %v1246
      %v1248 = vlaneseq
      %v1249 = vshrl.u32 %v1248, 7
      %v1250 = vsub.s32 1, %v1249
      %v1251 = vrot.slane %v1237, %v1250
      %v1252 = vlaneseq
      %v1253 = vshrl.u32 %v1252, 7
      %v1254 = vsub.s32 2, %v1253
      %v1255 = vrot.slane %v1237, %v1254
      %v1256 = vlaneseq
      %v1257 = vshrl.u32 %v1256, 7
      %v1258 = vsub.s32 3, %v1257
      %v1259 = vrot.slane %v1237, %v1258
      %v1260 = vlaneseq
      %v1261 = vshrl.u32 %v1260, 7
      %v1262 = vsub.s32 4, %v1261
      %v1263 = vrot.slane %v1237, %v1262
      %v1264 = vlaneseq
      %v1265 = vshrl.u32 %v1264, 7
      %v1266 = vsub.s32 5, %v1265
      %v1267 = vrot.slane %v1237, %v1266
      %v1268 = vlaneseq
      %v1269 = vshrl.u32 %v1268, 7
      %v1270 = vsub.s32 6, %v1269
      %v1271 = vrot.slane %v1237, %v1270
      %v1272 = vlaneseq
      %v1273 = vshrl.u32 %v1272, 7
      %v1274 = vsub.s32 7, %v1273
      %v1275 = vrot.slane %v1237, %v1274
      %v1276 = vlaneseq
      %v1277 = vshrl.u32 %v1276, 7
      %v1278 = vsub.s32 0, %v1277
      %v1279 = vrot.slane %v1241, %v1278
      %v1280 = vlaneseq
      %v1281 = vshrl.u32 %v1280, 7
      %v1282 = vsub.s32 1, %v1281
      %v1283 = vrot.slane %v1241, %v1282
      %v1284 = vlaneseq
      %v1285 = vshrl.u32 %v1284, 7
      %v1286 = vsub.s32 2, %v1285
      %v1287 = vrot.slane %v1241, %v1286
      %v1288 = vlaneseq
      %v1289 = vshrl.u32 %v1288, 7
      %v1290 = vsub.s32 3, %v1289
      %v1291 = vrot.slane %v1241, %v1290
      %v1292 = vlaneseq
      %v1293 = vshrl.u32 %v1292, 7
      %v1294 = vsub.s32 4, %v1293
      %v1295 = vrot.slane %v1241, %v1294
      %v1296 = vlaneseq
      %v1297 = vshrl.u32 %v1296, 7
      %v1298 = vsub.s32 5, %v1297
      %v1299 = vrot.slane %v1241, %v1298
      %v1300 = vlaneseq
      %v1301 = vshrl.u32 %v1300, 7
      %v1302 = vsub.s32 6, %v1301
      %v1303 = vrot.slane %v1241, %v1302
      %v1304 = vlaneseq
      %v1305 = vshrl.u32 %v1304, 7
      %v1306 = vsub.s32 7, %v1305
      %v1307 = vrot.slane %v1241, %v1306
      %v1324 = vmul.f32 %v410, %v1247
      %v1325 = vmul.f32 %v414, %v1251
      %v1326 = vmul.f32 %v418, %v1255
      %v1327 = vmul.f32 %v422, %v1259
      %v1328 = vmul.f32 %v426, %v1263
      %v1329 = vmul.f32 %v430, %v1267
      %v1330 = vmul.f32 %v434, %v1271
      %v1331 = vmul.f32 %v438, %v1275
      %v1332 = vmul.f32 %v442, %v1279
      %v1333 = vmul.f32 %v446, %v1283
      %v1334 = vmul.f32 %v450, %v1287
      %v1335 = vmul.f32 %v454, %v1291
      %v1336 = vmul.f32 %v458, %v1295
      %v1337 = vmul.f32 %v389, %v1299
      %v1338 = vmul.f32 %v393, %v1303
      %v1339 = vmul.f32 %v383, %v1307
      %s1340 = scalar_lea.vmem %s3, 128
      %v1341 = vld [vmem:[%s1340] ss:$8 sm:$0xf]
      %v1342 = vld [vmem:[%s1340] ss:$8 sm:$0xf0]
      %v1343 = vor.u32 %v1341, %v1342
      %s1344 = scalar_lea.vmem %s3, 192
      %v1345 = vld [vmem:[%s1344] ss:$8 sm:$0xf]
      %v1346 = vld [vmem:[%s1344] ss:$8 sm:$0xf0]
      %v1347 = vor.u32 %v1345, %v1346
      %v1350 = vlaneseq
      %v1351 = vshrl.u32 %v1350, 7
      %v1352 = vsub.s32 0, %v1351
      %v1353 = vrot.slane %v1343, %v1352
      %v1354 = vlaneseq
      %v1355 = vshrl.u32 %v1354, 7
      %v1356 = vsub.s32 1, %v1355
      %v1357 = vrot.slane %v1343, %v1356
      %v1358 = vlaneseq
      %v1359 = vshrl.u32 %v1358, 7
      %v1360 = vsub.s32 2, %v1359
      %v1361 = vrot.slane %v1343, %v1360
      %v1362 = vlaneseq
      %v1363 = vshrl.u32 %v1362, 7
      %v1364 = vsub.s32 3, %v1363
      %v1365 = vrot.slane %v1343, %v1364
      %v1366 = vlaneseq
      %v1367 = vshrl.u32 %v1366, 7
      %v1368 = vsub.s32 4, %v1367
      %v1369 = vrot.slane %v1343, %v1368
      %v1370 = vlaneseq
      %v1371 = vshrl.u32 %v1370, 7
      %v1372 = vsub.s32 5, %v1371
      %v1373 = vrot.slane %v1343, %v1372
      %v1374 = vlaneseq
      %v1375 = vshrl.u32 %v1374, 7
      %v1376 = vsub.s32 6, %v1375
      %v1377 = vrot.slane %v1343, %v1376
      %v1378 = vlaneseq
      %v1379 = vshrl.u32 %v1378, 7
      %v1380 = vsub.s32 7, %v1379
      %v1381 = vrot.slane %v1343, %v1380
      %v1382 = vlaneseq
      %v1383 = vshrl.u32 %v1382, 7
      %v1384 = vsub.s32 0, %v1383
      %v1385 = vrot.slane %v1347, %v1384
      %v1386 = vlaneseq
      %v1387 = vshrl.u32 %v1386, 7
      %v1388 = vsub.s32 1, %v1387
      %v1389 = vrot.slane %v1347, %v1388
      %v1390 = vlaneseq
      %v1391 = vshrl.u32 %v1390, 7
      %v1392 = vsub.s32 2, %v1391
      %v1393 = vrot.slane %v1347, %v1392
      %v1394 = vlaneseq
      %v1395 = vshrl.u32 %v1394, 7
      %v1396 = vsub.s32 3, %v1395
      %v1397 = vrot.slane %v1347, %v1396
      %v1398 = vlaneseq
      %v1399 = vshrl.u32 %v1398, 7
      %v1400 = vsub.s32 4, %v1399
      %v1401 = vrot.slane %v1347, %v1400
      %v1402 = vlaneseq
      %v1403 = vshrl.u32 %v1402, 7
      %v1404 = vsub.s32 5, %v1403
      %v1405 = vrot.slane %v1347, %v1404
      %v1406 = vlaneseq
      %v1407 = vshrl.u32 %v1406, 7
      %v1408 = vsub.s32 6, %v1407
      %v1409 = vrot.slane %v1347, %v1408
      %v1410 = vlaneseq
      %v1411 = vshrl.u32 %v1410, 7
      %v1412 = vsub.s32 7, %v1411
      %v1413 = vrot.slane %v1347, %v1412
      %v1430 = vmul.f32 %v779, %v1353
      %v1431 = vmul.f32 %v780, %v1357
      %v1432 = vmul.f32 %v781, %v1361
      %v1433 = vmul.f32 %v782, %v1365
      %v1434 = vmul.f32 %v783, %v1369
      %v1435 = vmul.f32 %v784, %v1373
      %v1436 = vmul.f32 %v785, %v1377
      %v1437 = vmul.f32 %v786, %v1381
      %v1438 = vmul.f32 %v787, %v1385
      %v1439 = vmul.f32 %v788, %v1389
      %v1440 = vmul.f32 %v789, %v1393
      %v1441 = vmul.f32 %v790, %v1397
      %v1442 = vmul.f32 %v791, %v1401
      %v1443 = vmul.f32 %v792, %v1405
      %v1444 = vmul.f32 %v809, %v1409
      %v1445 = vmul.f32 %v778, %v1413
      %v1462 = vrot.slane %v728, 7
      %v1463 = vrot.slane %v729, 7
      %v1464 = vrot.slane %v730, 7
      %v1465 = vrot.slane %v731, 7
      %v1466 = vrot.slane %v732, 7
      %v1467 = vrot.slane %v733, 7
      %v1468 = vrot.slane %v734, 7
      %v1469 = vrot.slane %v735, 7
      %v1470 = vrot.slane %v736, 7
      %v1471 = vrot.slane %v737, 7
      %v1472 = vrot.slane %v738, 7
      %v1473 = vrot.slane %v739, 7
      %v1474 = vrot.slane %v740, 7
      %v1475 = vrot.slane %v741, 7
      %v1476 = vrot.slane %v742, 7
      %v1477 = vrot.slane %v743, 7
      %v1510 = vrot.slane %v900, 6
      %v1511 = vrot.slane %v901, 6
      %v1512 = vrot.slane %v902, 6
      %v1513 = vrot.slane %v903, 6
      %v1514 = vrot.slane %v904, 6
      %v1515 = vrot.slane %v905, 6
      %v1516 = vrot.slane %v906, 6
      %v1517 = vrot.slane %v907, 6
      %v1518 = vrot.slane %v908, 6
      %v1519 = vrot.slane %v909, 6
      %v1520 = vrot.slane %v910, 6
      %v1521 = vrot.slane %v911, 6
      %v1522 = vrot.slane %v912, 6
      %v1523 = vrot.slane %v913, 6
      %v1524 = vrot.slane %v914, 6
      %v1525 = vrot.slane %v915, 6
      %v1558 = vrot.slane %v1006, 5
      %v1559 = vrot.slane %v1007, 5
      %v1560 = vrot.slane %v1008, 5
      %v1561 = vrot.slane %v1009, 5
      %v1562 = vrot.slane %v1010, 5
      %v1563 = vrot.slane %v1011, 5
      %v1564 = vrot.slane %v1012, 5
      %v1565 = vrot.slane %v1013, 5
      %v1566 = vrot.slane %v1014, 5
      %v1567 = vrot.slane %v1015, 5
      %v1568 = vrot.slane %v1016, 5
      %v1569 = vrot.slane %v1017, 5
      %v1570 = vrot.slane %v1018, 5
      %v1571 = vrot.slane %v1019, 5
      %v1572 = vrot.slane %v1020, 5
      %v1573 = vrot.slane %v1021, 5
      %v1606 = vrot.slane %v1112, 3
      %v1607 = vrot.slane %v1113, 3
      %v1608 = vrot.slane %v1114, 3
      %v1609 = vrot.slane %v1115, 3
      %v1610 = vrot.slane %v1116, 3
      %v1611 = vrot.slane %v1117, 3
      %v1612 = vrot.slane %v1118, 3
      %v1613 = vrot.slane %v1119, 3
      %v1614 = vrot.slane %v1120, 3
      %v1615 = vrot.slane %v1121, 3
      %v1616 = vrot.slane %v1122, 3
      %v1617 = vrot.slane %v1123, 3
      %v1618 = vrot.slane %v1124, 3
      %v1619 = vrot.slane %v1125, 3
      %v1620 = vrot.slane %v1126, 3
      %v1621 = vrot.slane %v1127, 3
      %v1654 = vrot.slane %v1218, 2
      %v1655 = vrot.slane %v1219, 2
      %v1656 = vrot.slane %v1220, 2
      %v1657 = vrot.slane %v1221, 2
      %v1658 = vrot.slane %v1222, 2
      %v1659 = vrot.slane %v1223, 2
      %v1660 = vrot.slane %v1224, 2
      %v1661 = vrot.slane %v1225, 2
      %v1662 = vrot.slane %v1226, 2
      %v1663 = vrot.slane %v1227, 2
      %v1664 = vrot.slane %v1228, 2
      %v1665 = vrot.slane %v1229, 2
      %v1666 = vrot.slane %v1230, 2
      %v1667 = vrot.slane %v1231, 2
      %v1668 = vrot.slane %v1232, 2
      %v1669 = vrot.slane %v1233, 2
      %v1702 = vrot.slane %v1324, 1
      %v1703 = vrot.slane %v1325, 1
      %v1704 = vrot.slane %v1326, 1
      %v1705 = vrot.slane %v1327, 1
      %v1706 = vrot.slane %v1328, 1
      %v1707 = vrot.slane %v1329, 1
      %v1708 = vrot.slane %v1330, 1
      %v1709 = vrot.slane %v1331, 1
      %v1710 = vrot.slane %v1332, 1
      %v1711 = vrot.slane %v1333, 1
      %v1712 = vrot.slane %v1334, 1
      %v1713 = vrot.slane %v1335, 1
      %v1714 = vrot.slane %v1336, 1
      %v1715 = vrot.slane %v1337, 1
      %v1716 = vrot.slane %v1338, 1
      %v1717 = vrot.slane %v1339, 1
      %vm1734 = vcmask 1040384
      %v1735 = vsel %vm1734, %v606, %v1462
      %v1736 = vsel %vm1734, %v607, %v1463
      %v1737 = vsel %vm1734, %v608, %v1464
      %v1738 = vsel %vm1734, %v609, %v1465
      %v1739 = vsel %vm1734, %v610, %v1466
      %v1740 = vsel %vm1734, %v611, %v1467
      %v1741 = vsel %vm1734, %v612, %v1468
      %v1742 = vsel %vm1734, %v613, %v1469
      %v1743 = vsel %vm1734, %v614, %v1470
      %v1744 = vsel %vm1734, %v615, %v1471
      %v1745 = vsel %vm1734, %v616, %v1472
      %v1746 = vsel %vm1734, %v617, %v1473
      %v1747 = vsel %vm1734, %v618, %v1474
      %v1748 = vsel %vm1734, %v619, %v1475
      %v1749 = vsel %vm1734, %v620, %v1476
      %v1750 = vsel %vm1734, %v621, %v1477
      %vm1751 = vcmask 1041408
      %v1752 = vsel %vm1751, %v1735, %v1510
      %v1753 = vsel %vm1751, %v1736, %v1511
      %v1754 = vsel %vm1751, %v1737, %v1512
      %v1755 = vsel %vm1751, %v1738, %v1513
      %v1756 = vsel %vm1751, %v1739, %v1514
      %v1757 = vsel %vm1751, %v1740, %v1515
      %v1758 = vsel %vm1751, %v1741, %v1516
      %v1759 = vsel %vm1751, %v1742, %v1517
      %v1760 = vsel %vm1751, %v1743, %v1518
      %v1761 = vsel %vm1751, %v1744, %v1519
      %v1762 = vsel %vm1751, %v1745, %v1520
      %v1763 = vsel %vm1751, %v1746, %v1521
      %v1764 = vsel %vm1751, %v1747, %v1522
      %v1765 = vsel %vm1751, %v1748, %v1523
      %v1766 = vsel %vm1751, %v1749, %v1524
      %v1767 = vsel %vm1751, %v1750, %v1525
      %vm1768 = vcmask 1042432
      %v1769 = vsel %vm1768, %v1752, %v1558
      %v1770 = vsel %vm1768, %v1753, %v1559
      %v1771 = vsel %vm1768, %v1754, %v1560
      %v1772 = vsel %vm1768, %v1755, %v1561
      %v1773 = vsel %vm1768, %v1756, %v1562
      %v1774 = vsel %vm1768, %v1757, %v1563
      %v1775 = vsel %vm1768, %v1758, %v1564
      %v1776 = vsel %vm1768, %v1759, %v1565
      %v1777 = vsel %vm1768, %v1760, %v1566
      %v1778 = vsel %vm1768, %v1761, %v1567
      %v1779 = vsel %vm1768, %v1762, %v1568
      %v1780 = vsel %vm1768, %v1763, %v1569
      %v1781 = vsel %vm1768, %v1764, %v1570
      %v1782 = vsel %vm1768, %v1765, %v1571
      %v1783 = vsel %vm1768, %v1766, %v1572
      %v1784 = vsel %vm1768, %v1767, %v1573
      %vm1785 = vcmask 1043456
      %v1786 = vsel %vm1785, %v1769, %v406
      %v1787 = vsel %vm1785, %v1770, %v410
      %v1788 = vsel %vm1785, %v1771, %v414
      %v1789 = vsel %vm1785, %v1772, %v418
      %v1790 = vsel %vm1785, %v1773, %v422
      %v1791 = vsel %vm1785, %v1774, %v426
      %v1792 = vsel %vm1785, %v1775, %v430
      %v1793 = vsel %vm1785, %v1776, %v434
      %v1794 = vsel %vm1785, %v1777, %v438
      %v1795 = vsel %vm1785, %v1778, %v442
      %v1796 = vsel %vm1785, %v1779, %v446
      %v1797 = vsel %vm1785, %v1780, %v450
      %v1798 = vsel %vm1785, %v1781, %v454
      %v1799 = vsel %vm1785, %v1782, %v458
      %v1800 = vsel %vm1785, %v1783, %v389
      %v1801 = vsel %vm1785, %v1784, %v393
      %vm1802 = vcmask 1044480
      %v1803 = vsel %vm1802, %v1786, %v1606
      %v1804 = vsel %vm1802, %v1787, %v1607
      %v1805 = vsel %vm1802, %v1788, %v1608
      %v1806 = vsel %vm1802, %v1789, %v1609
      %v1807 = vsel %vm1802, %v1790, %v1610
      %v1808 = vsel %vm1802, %v1791, %v1611
      %v1809 = vsel %vm1802, %v1792, %v1612
      %v1810 = vsel %vm1802, %v1793, %v1613
      %v1811 = vsel %vm1802, %v1794, %v1614
      %v1812 = vsel %vm1802, %v1795, %v1615
      %v1813 = vsel %vm1802, %v1796, %v1616
      %v1814 = vsel %vm1802, %v1797, %v1617
      %v1815 = vsel %vm1802, %v1798, %v1618
      %v1816 = vsel %vm1802, %v1799, %v1619
      %v1817 = vsel %vm1802, %v1800, %v1620
      %v1818 = vsel %vm1802, %v1801, %v1621
      %vm1819 = vcmask 1045504
      %v1820 = vsel %vm1819, %v1803, %v1654
      %v1821 = vsel %vm1819, %v1804, %v1655
      %v1822 = vsel %vm1819, %v1805, %v1656
      %v1823 = vsel %vm1819, %v1806, %v1657
      %v1824 = vsel %vm1819, %v1807, %v1658
      %v1825 = vsel %vm1819, %v1808, %v1659
      %v1826 = vsel %vm1819, %v1809, %v1660
      %v1827 = vsel %vm1819, %v1810, %v1661
      %v1828 = vsel %vm1819, %v1811, %v1662
      %v1829 = vsel %vm1819, %v1812, %v1663
      %v1830 = vsel %vm1819, %v1813, %v1664
      %v1831 = vsel %vm1819, %v1814, %v1665
      %v1832 = vsel %vm1819, %v1815, %v1666
      %v1833 = vsel %vm1819, %v1816, %v1667
      %v1834 = vsel %vm1819, %v1817, %v1668
      %v1835 = vsel %vm1819, %v1818, %v1669
      %vm1836 = vcmask 1046528
      %v1837 = vsel %vm1836, %v1820, %v1702
      %v1838 = vsel %vm1836, %v1821, %v1703
      %v1839 = vsel %vm1836, %v1822, %v1704
      %v1840 = vsel %vm1836, %v1823, %v1705
      %v1841 = vsel %vm1836, %v1824, %v1706
      %v1842 = vsel %vm1836, %v1825, %v1707
      %v1843 = vsel %vm1836, %v1826, %v1708
      %v1844 = vsel %vm1836, %v1827, %v1709
      %v1845 = vsel %vm1836, %v1828, %v1710
      %v1846 = vsel %vm1836, %v1829, %v1711
      %v1847 = vsel %vm1836, %v1830, %v1712
      %v1848 = vsel %vm1836, %v1831, %v1713
      %v1849 = vsel %vm1836, %v1832, %v1714
      %v1850 = vsel %vm1836, %v1833, %v1715
      %v1851 = vsel %vm1836, %v1834, %v1716
      %v1852 = vsel %vm1836, %v1835, %v1717
      %v1853 = vpack.c.bf16 %v1430, %v1837
      %v1854 = vpack.c.bf16 %v1431, %v1838
      %v1855 = vpack.c.bf16 %v1432, %v1839
      %v1856 = vpack.c.bf16 %v1433, %v1840
      %v1857 = vpack.c.bf16 %v1434, %v1841
      %v1858 = vpack.c.bf16 %v1435, %v1842
      %v1859 = vpack.c.bf16 %v1436, %v1843
      %v1860 = vpack.c.bf16 %v1437, %v1844
      %v1861 = vpack.c.bf16 %v1438, %v1845
      %v1862 = vpack.c.bf16 %v1439, %v1846
      %v1863 = vpack.c.bf16 %v1440, %v1847
      %v1864 = vpack.c.bf16 %v1441, %v1848
      %v1865 = vpack.c.bf16 %v1442, %v1849
      %v1866 = vpack.c.bf16 %v1443, %v1850
      %v1867 = vpack.c.bf16 %v1444, %v1851
      %v1868 = vpack.c.bf16 %v1445, %v1852
      %v1869 = vld [vmem:[%s1] sm:$0x3]
      %vm1870 = vcmask 72704
      %v1872 = vsel %vm1870, %v1869, 0
      %v1874 = vsel %vm1785, 4294967295, 65535
      %v1875 = vsel %vm1802, %v1874, 0
      %v1877 = vand.u32 %v1853, %v1875
      %v1880 = vand.u32 %v1854, %v1875
      %v1883 = vand.u32 %v1855, %v1875
      %v1886 = vand.u32 %v1856, %v1875
      %v1889 = vand.u32 %v1857, %v1875
      %v1892 = vand.u32 %v1858, %v1875
      %v1895 = vand.u32 %v1859, %v1875
      %v1898 = vand.u32 %v1860, %v1875
      %v1901 = vand.u32 %v1861, %v1875
      %v1904 = vand.u32 %v1862, %v1875
      %v1907 = vand.u32 %v1863, %v1875
      %v1910 = vand.u32 %v1864, %v1875
      %v1913 = vand.u32 %v1865, %v1875
      %v1916 = vand.u32 %v1866, %v1875
      %v1919 = vand.u32 %v1867, %v1875
      %v1922 = vand.u32 %v1868, %v1875
      %1924 = vmatprep.subr.bf16.mxu0 %v1880
      %1925 = vmatpush1.bf16.msra.mxu0 %v1877
      %1926 = vmatprep.subr.bf16.mxu0 0
      %1927 = vmatpush1.bf16.msra.mxu0 0
      %1928 = vmatprep.subr.bf16.mxu0 0
      %1929 = vmatpush1.bf16.msra.mxu0 0
      %1930 = vmatprep.subr.bf16.mxu0 0
      %1931 = vmatpush1.bf16.msra.mxu0 0
      %1932 = vmatprep.subr.bf16.mxu0 0
      %1933 = vmatpush1.bf16.msra.mxu0 0
      %1934 = vmatprep.subr.bf16.mxu0 0
      %1935 = vmatpush1.bf16.msra.mxu0 0
      %1936 = vmatprep.subr.bf16.mxu0 0
      %1937 = vmatpush1.bf16.msra.mxu0 0
      %1938 = vmatprep.subr.bf16.mxu0 0
      %1939 = vmatpush1.bf16.msra.mxu0 0
      %1940 = vmatprep.subr.bf16.mxu0 0
      %1941 = vmatpush1.bf16.msra.mxu0 0
      %1942 = vmatprep.subr.bf16.mxu0 0
      %1943 = vmatpush1.bf16.msra.mxu0 0
      %1944 = vmatprep.subr.bf16.mxu0 0
      %1945 = vmatpush1.bf16.msra.mxu0 0
      %1946 = vmatprep.subr.bf16.mxu0 0
      %1947 = vmatpush1.bf16.msra.mxu0 0
      %1948 = vmatprep.subr.bf16.mxu0 0
      %1949 = vmatpush1.bf16.msra.mxu0 0
      %1950 = vmatprep.subr.bf16.mxu0 0
      %1951 = vmatpush1.bf16.msra.mxu0 0
      %1952 = vmatprep.subr.bf16.mxu0 0
      %1953 = vmatpush1.bf16.msra.mxu0 0
      %1954 = vmatprep.subr.bf16.mxu0 0
      %1955 = vmatpush1.bf16.msra.mxu0 0
      %1956 = vmatprep.mubr.bf16.mxu0 0
      %1957 = vmatmul.mubr.bf16.gmra.mrb[0].mxu0 %v1872
      %v1958 = vpop.f32.mrb[0].mxu0
      %v1959 = vadd.f32 0.0, %v1958
      %v1960 = vpop.f32.mrb[0].mxu0
      %v1961 = vadd.f32 0.0, %v1960
      %v1962 = vpop.f32.mrb[0].mxu0
      %v1963 = vpop.f32.mrb[0].mxu0
      %1964 = vdwg.mxu0
      %1965 = vmatprep.subr.bf16.mxu0 %v1886
      %1966 = vmatpush1.bf16.msra.mxu0 %v1883
      %1967 = vmatprep.subr.bf16.mxu0 0
      %1968 = vmatpush1.bf16.msra.mxu0 0
      %1969 = vmatprep.subr.bf16.mxu0 0
      %1970 = vmatpush1.bf16.msra.mxu0 0
      %1971 = vmatprep.subr.bf16.mxu0 0
      %1972 = vmatpush1.bf16.msra.mxu0 0
      %1973 = vmatprep.subr.bf16.mxu0 0
      %1974 = vmatpush1.bf16.msra.mxu0 0
      %1975 = vmatprep.subr.bf16.mxu0 0
      %1976 = vmatpush1.bf16.msra.mxu0 0
      %1977 = vmatprep.subr.bf16.mxu0 0
      %1978 = vmatpush1.bf16.msra.mxu0 0
      %1979 = vmatprep.subr.bf16.mxu0 0
      %1980 = vmatpush1.bf16.msra.mxu0 0
      %1981 = vmatprep.subr.bf16.mxu0 0
      %1982 = vmatpush1.bf16.msra.mxu0 0
      %1983 = vmatprep.subr.bf16.mxu0 0
      %1984 = vmatpush1.bf16.msra.mxu0 0
      %1985 = vmatprep.subr.bf16.mxu0 0
      %1986 = vmatpush1.bf16.msra.mxu0 0
      %1987 = vmatprep.subr.bf16.mxu0 0
      %1988 = vmatpush1.bf16.msra.mxu0 0
      %1989 = vmatprep.subr.bf16.mxu0 0
      %1990 = vmatpush1.bf16.msra.mxu0 0
      %1991 = vmatprep.subr.bf16.mxu0 0
      %1992 = vmatpush1.bf16.msra.mxu0 0
      %1993 = vmatprep.subr.bf16.mxu0 0
      %1994 = vmatpush1.bf16.msra.mxu0 0
      %1995 = vmatprep.subr.bf16.mxu0 0
      %1996 = vmatpush1.bf16.msra.mxu0 0
      %1997 = vmatprep.mubr.bf16.mxu0 0
      %1998 = vmatmul.mubr.bf16.gmra.mrb[0].mxu0 %v1872
      %v1999 = vpop.f32.mrb[0].mxu0
      %v2000 = vadd.f32 0.0, %v1999
      %v2001 = vpop.f32.mrb[0].mxu0
      %v2002 = vadd.f32 0.0, %v2001
      %v2003 = vpop.f32.mrb[0].mxu0
      %v2004 = vpop.f32.mrb[0].mxu0
      %2005 = vdwg.mxu0
      %2006 = vmatprep.subr.bf16.mxu0 %v1892
      %2007 = vmatpush1.bf16.msra.mxu0 %v1889
      %2008 = vmatprep.subr.bf16.mxu0 0
      %2009 = vmatpush1.bf16.msra.mxu0 0
      %2010 = vmatprep.subr.bf16.mxu0 0
      %2011 = vmatpush1.bf16.msra.mxu0 0
      %2012 = vmatprep.subr.bf16.mxu0 0
      %2013 = vmatpush1.bf16.msra.mxu0 0
      %2014 = vmatprep.subr.bf16.mxu0 0
      %2015 = vmatpush1.bf16.msra.mxu0 0
      %2016 = vmatprep.subr.bf16.mxu0 0
      %2017 = vmatpush1.bf16.msra.mxu0 0
      %2018 = vmatprep.subr.bf16.mxu0 0
      %2019 = vmatpush1.bf16.msra.mxu0 0
      %2020 = vmatprep.subr.bf16.mxu0 0
      %2021 = vmatpush1.bf16.msra.mxu0 0
      %2022 = vmatprep.subr.bf16.mxu0 0
      %2023 = vmatpush1.bf16.msra.mxu0 0
      %2024 = vmatprep.subr.bf16.mxu0 0
      %2025 = vmatpush1.bf16.msra.mxu0 0
      %2026 = vmatprep.subr.bf16.mxu0 0
      %2027 = vmatpush1.bf16.msra.mxu0 0
      %2028 = vmatprep.subr.bf16.mxu0 0
      %2029 = vmatpush1.bf16.msra.mxu0 0
      %2030 = vmatprep.subr.bf16.mxu0 0
      %2031 = vmatpush1.bf16.msra.mxu0 0
      %2032 = vmatprep.subr.bf16.mxu0 0
      %2033 = vmatpush1.bf16.msra.mxu0 0
      %2034 = vmatprep.subr.bf16.mxu0 0
      %2035 = vmatpush1.bf16.msra.mxu0 0
      %2036 = vmatprep.subr.bf16.mxu0 0
      %2037 = vmatpush1.bf16.msra.mxu0 0
      %2038 = vmatprep.mubr.bf16.mxu0 0
      %2039 = vmatmul.mubr.bf16.gmra.mrb[0].mxu0 %v1872
      %v2040 = vpop.f32.mrb[0].mxu0
      %v2041 = vadd.f32 0.0, %v2040
      %v2042 = vpop.f32.mrb[0].mxu0
      %v2043 = vadd.f32 0.0, %v2042
      %v2044 = vpop.f32.mrb[0].mxu0
      %v2045 = vpop.f32.mrb[0].mxu0
      %2046 = vdwg.mxu0
      %2047 = vmatprep.subr.bf16.mxu0 %v1898
      %2048 = vmatpush1.bf16.msra.mxu0 %v1895
      %2049 = vmatprep.subr.bf16.mxu0 0
      %2050 = vmatpush1.bf16.msra.mxu0 0
      %2051 = vmatprep.subr.bf16.mxu0 0
      %2052 = vmatpush1.bf16.msra.mxu0 0
      %2053 = vmatprep.subr.bf16.mxu0 0
      %2054 = vmatpush1.bf16.msra.mxu0 0
      %2055 = vmatprep.subr.bf16.mxu0 0
      %2056 = vmatpush1.bf16.msra.mxu0 0
      %2057 = vmatprep.subr.bf16.mxu0 0
      %2058 = vmatpush1.bf16.msra.mxu0 0
      %2059 = vmatprep.subr.bf16.mxu0 0
      %2060 = vmatpush1.bf16.msra.mxu0 0
      %2061 = vmatprep.subr.bf16.mxu0 0
      %2062 = vmatpush1.bf16.msra.mxu0 0
      %2063 = vmatprep.subr.bf16.mxu0 0
      %2064 = vmatpush1.bf16.msra.mxu0 0
      %2065 = vmatprep.subr.bf16.mxu0 0
      %2066 = vmatpush1.bf16.msra.mxu0 0
      %2067 = vmatprep.subr.bf16.mxu0 0
      %2068 = vmatpush1.bf16.msra.mxu0 0
      %2069 = vmatprep.subr.bf16.mxu0 0
      %2070 = vmatpush1.bf16.msra.mxu0 0
      %2071 = vmatprep.subr.bf16.mxu0 0
      %2072 = vmatpush1.bf16.msra.mxu0 0
      %2073 = vmatprep.subr.bf16.mxu0 0
      %2074 = vmatpush1.bf16.msra.mxu0 0
      %2075 = vmatprep.subr.bf16.mxu0 0
      %2076 = vmatpush1.bf16.msra.mxu0 0
      %2077 = vmatprep.subr.bf16.mxu0 0
      %2078 = vmatpush1.bf16.msra.mxu0 0
      %2079 = vmatprep.mubr.bf16.mxu0 0
      %2080 = vmatmul.mubr.bf16.gmra.mrb[0].mxu0 %v1872
      %v2081 = vpop.f32.mrb[0].mxu0
      %v2082 = vadd.f32 0.0, %v2081
      %v2083 = vpop.f32.mrb[0].mxu0
      %v2084 = vadd.f32 0.0, %v2083
      %v2085 = vpop.f32.mrb[0].mxu0
      %v2086 = vpop.f32.mrb[0].mxu0
      %2087 = vdwg.mxu0
      %2088 = vmatprep.subr.bf16.mxu0 %v1904
      %2089 = vmatpush1.bf16.msra.mxu0 %v1901
      %2090 = vmatprep.subr.bf16.mxu0 0
      %2091 = vmatpush1.bf16.msra.mxu0 0
      %2092 = vmatprep.subr.bf16.mxu0 0
      %2093 = vmatpush1.bf16.msra.mxu0 0
      %2094 = vmatprep.subr.bf16.mxu0 0
      %2095 = vmatpush1.bf16.msra.mxu0 0
      %2096 = vmatprep.subr.bf16.mxu0 0
      %2097 = vmatpush1.bf16.msra.mxu0 0
      %2098 = vmatprep.subr.bf16.mxu0 0
      %2099 = vmatpush1.bf16.msra.mxu0 0
      %2100 = vmatprep.subr.bf16.mxu0 0
      %2101 = vmatpush1.bf16.msra.mxu0 0
      %2102 = vmatprep.subr.bf16.mxu0 0
      %2103 = vmatpush1.bf16.msra.mxu0 0
      %2104 = vmatprep.subr.bf16.mxu0 0
      %2105 = vmatpush1.bf16.msra.mxu0 0
      %2106 = vmatprep.subr.bf16.mxu0 0
      %2107 = vmatpush1.bf16.msra.mxu0 0
      %2108 = vmatprep.subr.bf16.mxu0 0
      %2109 = vmatpush1.bf16.msra.mxu0 0
      %2110 = vmatprep.subr.bf16.mxu0 0
      %2111 = vmatpush1.bf16.msra.mxu0 0
      %2112 = vmatprep.subr.bf16.mxu0 0
      %2113 = vmatpush1.bf16.msra.mxu0 0
      %2114 = vmatprep.subr.bf16.mxu0 0
      %2115 = vmatpush1.bf16.msra.mxu0 0
      %2116 = vmatprep.subr.bf16.mxu0 0
      %2117 = vmatpush1.bf16.msra.mxu0 0
      %2118 = vmatprep.subr.bf16.mxu0 0
      %2119 = vmatpush1.bf16.msra.mxu0 0
      %2120 = vmatprep.mubr.bf16.mxu0 0
      %2121 = vmatmul.mubr.bf16.gmra.mrb[0].mxu0 %v1872
      %v2122 = vpop.f32.mrb[0].mxu0
      %v2123 = vadd.f32 0.0, %v2122
      %v2124 = vpop.f32.mrb[0].mxu0
      %v2125 = vadd.f32 0.0, %v2124
      %v2126 = vpop.f32.mrb[0].mxu0
      %v2127 = vpop.f32.mrb[0].mxu0
      %2128 = vdwg.mxu0
      %2129 = vmatprep.subr.bf16.mxu0 %v1910
      %2130 = vmatpush1.bf16.msra.mxu0 %v1907
      %2131 = vmatprep.subr.bf16.mxu0 0
      %2132 = vmatpush1.bf16.msra.mxu0 0
      %2133 = vmatprep.subr.bf16.mxu0 0
      %2134 = vmatpush1.bf16.msra.mxu0 0
      %2135 = vmatprep.subr.bf16.mxu0 0
      %2136 = vmatpush1.bf16.msra.mxu0 0
      %2137 = vmatprep.subr.bf16.mxu0 0
      %2138 = vmatpush1.bf16.msra.mxu0 0
      %2139 = vmatprep.subr.bf16.mxu0 0
      %2140 = vmatpush1.bf16.msra.mxu0 0
      %2141 = vmatprep.subr.bf16.mxu0 0
      %2142 = vmatpush1.bf16.msra.mxu0 0
      %2143 = vmatprep.subr.bf16.mxu0 0
      %2144 = vmatpush1.bf16.msra.mxu0 0
      %2145 = vmatprep.subr.bf16.mxu0 0
      %2146 = vmatpush1.bf16.msra.mxu0 0
      %2147 = vmatprep.subr.bf16.mxu0 0
      %2148 = vmatpush1.bf16.msra.mxu0 0
      %2149 = vmatprep.subr.bf16.mxu0 0
      %2150 = vmatpush1.bf16.msra.mxu0 0
      %2151 = vmatprep.subr.bf16.mxu0 0
      %2152 = vmatpush1.bf16.msra.mxu0 0
      %2153 = vmatprep.subr.bf16.mxu0 0
      %2154 = vmatpush1.bf16.msra.mxu0 0
      %2155 = vmatprep.subr.bf16.mxu0 0
      %2156 = vmatpush1.bf16.msra.mxu0 0
      %2157 = vmatprep.subr.bf16.mxu0 0
      %2158 = vmatpush1.bf16.msra.mxu0 0
      %2159 = vmatprep.subr.bf16.mxu0 0
      %2160 = vmatpush1.bf16.msra.mxu0 0
      %2161 = vmatprep.mubr.bf16.mxu0 0
      %2162 = vmatmul.mubr.bf16.gmra.mrb[0].mxu0 %v1872
      %v2163 = vpop.f32.mrb[0].mxu0
      %v2164 = vadd.f32 0.0, %v2163
      %v2165 = vpop.f32.mrb[0].mxu0
      %v2166 = vadd.f32 0.0, %v2165
      %v2167 = vpop.f32.mrb[0].mxu0
      %v2168 = vpop.f32.mrb[0].mxu0
      %2169 = vdwg.mxu0
      %2170 = vmatprep.subr.bf16.mxu0 %v1916
      %2171 = vmatpush1.bf16.msra.mxu0 %v1913
      %2172 = vmatprep.subr.bf16.mxu0 0
      %2173 = vmatpush1.bf16.msra.mxu0 0
      %2174 = vmatprep.subr.bf16.mxu0 0
      %2175 = vmatpush1.bf16.msra.mxu0 0
      %2176 = vmatprep.subr.bf16.mxu0 0
      %2177 = vmatpush1.bf16.msra.mxu0 0
      %2178 = vmatprep.subr.bf16.mxu0 0
      %2179 = vmatpush1.bf16.msra.mxu0 0
      %2180 = vmatprep.subr.bf16.mxu0 0
      %2181 = vmatpush1.bf16.msra.mxu0 0
      %2182 = vmatprep.subr.bf16.mxu0 0
      %2183 = vmatpush1.bf16.msra.mxu0 0
      %2184 = vmatprep.subr.bf16.mxu0 0
      %2185 = vmatpush1.bf16.msra.mxu0 0
      %2186 = vmatprep.subr.bf16.mxu0 0
      %2187 = vmatpush1.bf16.msra.mxu0 0
      %2188 = vmatprep.subr.bf16.mxu0 0
      %2189 = vmatpush1.bf16.msra.mxu0 0
      %2190 = vmatprep.subr.bf16.mxu0 0
      %2191 = vmatpush1.bf16.msra.mxu0 0
      %2192 = vmatprep.subr.bf16.mxu0 0
      %2193 = vmatpush1.bf16.msra.mxu0 0
      %2194 = vmatprep.subr.bf16.mxu0 0
      %2195 = vmatpush1.bf16.msra.mxu0 0
      %2196 = vmatprep.subr.bf16.mxu0 0
      %2197 = vmatpush1.bf16.msra.mxu0 0
      %2198 = vmatprep.subr.bf16.mxu0 0
      %2199 = vmatpush1.bf16.msra.mxu0 0
      %2200 = vmatprep.subr.bf16.mxu0 0
      %2201 = vmatpush1.bf16.msra.mxu0 0
      %2202 = vmatprep.mubr.bf16.mxu0 0
      %2203 = vmatmul.mubr.bf16.gmra.mrb[0].mxu0 %v1872
      %v2204 = vpop.f32.mrb[0].mxu0
      %v2205 = vadd.f32 0.0, %v2204
      %v2206 = vpop.f32.mrb[0].mxu0
      %v2207 = vadd.f32 0.0, %v2206
      %v2208 = vpop.f32.mrb[0].mxu0
      %v2209 = vpop.f32.mrb[0].mxu0
      %2210 = vdwg.mxu0
      %2211 = vmatprep.subr.bf16.mxu0 %v1922
      %2212 = vmatpush1.bf16.msra.mxu0 %v1919
      %2213 = vmatprep.subr.bf16.mxu0 0
      %2214 = vmatpush1.bf16.msra.mxu0 0
      %2215 = vmatprep.subr.bf16.mxu0 0
      %2216 = vmatpush1.bf16.msra.mxu0 0
      %2217 = vmatprep.subr.bf16.mxu0 0
      %2218 = vmatpush1.bf16.msra.mxu0 0
      %2219 = vmatprep.subr.bf16.mxu0 0
      %2220 = vmatpush1.bf16.msra.mxu0 0
      %2221 = vmatprep.subr.bf16.mxu0 0
      %2222 = vmatpush1.bf16.msra.mxu0 0
      %2223 = vmatprep.subr.bf16.mxu0 0
      %2224 = vmatpush1.bf16.msra.mxu0 0
      %2225 = vmatprep.subr.bf16.mxu0 0
      %2226 = vmatpush1.bf16.msra.mxu0 0
      %2227 = vmatprep.subr.bf16.mxu0 0
      %2228 = vmatpush1.bf16.msra.mxu0 0
      %2229 = vmatprep.subr.bf16.mxu0 0
      %2230 = vmatpush1.bf16.msra.mxu0 0
      %2231 = vmatprep.subr.bf16.mxu0 0
      %2232 = vmatpush1.bf16.msra.mxu0 0
      %2233 = vmatprep.subr.bf16.mxu0 0
      %2234 = vmatpush1.bf16.msra.mxu0 0
      %2235 = vmatprep.subr.bf16.mxu0 0
      %2236 = vmatpush1.bf16.msra.mxu0 0
      %2237 = vmatprep.subr.bf16.mxu0 0
      %2238 = vmatpush1.bf16.msra.mxu0 0
      %2239 = vmatprep.subr.bf16.mxu0 0
      %2240 = vmatpush1.bf16.msra.mxu0 0
      %2241 = vmatprep.subr.bf16.mxu0 0
      %2242 = vmatpush1.bf16.msra.mxu0 0
      %2243 = vmatprep.mubr.bf16.mxu0 0
      %2244 = vmatmul.mubr.bf16.gmra.mrb[0].mxu0 %v1872
      %v2245 = vpop.f32.mrb[0].mxu0
      %v2246 = vadd.f32 0.0, %v2245
      %v2247 = vpop.f32.mrb[0].mxu0
      %v2248 = vadd.f32 0.0, %v2247
      %v2249 = vpop.f32.mrb[0].mxu0
      %v2250 = vpop.f32.mrb[0].mxu0
      %2251 = vdwg.mxu0
      %v2252 = vmax.f32 %v1959, %v1961
      %v2253 = vmax.f32 %v2000, %v2002
      %v2254 = vmax.f32 %v2041, %v2043
      %v2255 = vmax.f32 %v2082, %v2084
      %v2256 = vmax.f32 %v2123, %v2125
      %v2257 = vmax.f32 %v2164, %v2166
      %v2258 = vmax.f32 %v2205, %v2207
      %v2259 = vmax.f32 %v2246, %v2248
      %2268 = vrot.lane.b32.xlu0 %v2252, 127
      %v2269 = vpop.permute.xlu0 %2268
      %2270 = vrot.lane.b32.xlu0 %v2253, 127
      %v2271 = vpop.permute.xlu0 %2270
      %2272 = vrot.lane.b32.xlu0 %v2254, 127
      %v2273 = vpop.permute.xlu0 %2272
      %2274 = vrot.lane.b32.xlu0 %v2255, 127
      %v2275 = vpop.permute.xlu0 %2274
      %2276 = vrot.lane.b32.xlu0 %v2256, 127
      %v2277 = vpop.permute.xlu0 %2276
      %2278 = vrot.lane.b32.xlu0 %v2257, 127
      %v2279 = vpop.permute.xlu0 %2278
      %2280 = vrot.lane.b32.xlu0 %v2258, 127
      %v2281 = vpop.permute.xlu0 %2280
      %2282 = vrot.lane.b32.xlu0 %v2259, 127
      %v2283 = vpop.permute.xlu0 %2282
      %v2284 = vsel %vm777, %v2269, %v2271
      %v2285 = vsel %vm777, %v2271, %v2273
      %v2286 = vsel %vm777, %v2273, %v2275
      %v2287 = vsel %vm777, %v2275, %v2277
      %v2288 = vsel %vm777, %v2277, %v2279
      %v2289 = vsel %vm777, %v2279, %v2281
      %v2290 = vsel %vm777, %v2281, %v2283
      %v2300 = vsel %vm777, %v2283, %v2269
      %v2301 = vmax.f32 %v2252, %v2284
      %v2302 = vmax.f32 %v2253, %v2285
      %v2303 = vmax.f32 %v2254, %v2286
      %v2304 = vmax.f32 %v2255, %v2287
      %v2305 = vmax.f32 %v2256, %v2288
      %v2306 = vmax.f32 %v2257, %v2289
      %v2307 = vmax.f32 %v2258, %v2290
      %v2308 = vmax.f32 %v2259, %v2300
      %v2309 = vld [vmem:[%s2] sm:$0xf]
      %2311 = vset.pattern.permute.xlu0 0
      %2312 = vperm.xlu0 %2311, %v2309
      %v2313 = vpop.permute.xlu0 %2312
      %v2315 = vadd.f32 %v2301, %v2313
      %v2316 = vadd.f32 %v2302, %v2313
      %v2317 = vadd.f32 %v2303, %v2313
      %v2318 = vadd.f32 %v2304, %v2313
      %v2319 = vadd.f32 %v2305, %v2313
      %v2320 = vadd.f32 %v2306, %v2313
      %v2321 = vadd.f32 %v2307, %v2313
      %v2322 = vadd.f32 %v2308, %v2313
      %v2323 = vmax.f32 %v2315, 0.0
      %v2324 = vmax.f32 %v2316, 0.0
      %v2325 = vmax.f32 %v2317, 0.0
      %v2326 = vmax.f32 %v2318, 0.0
      %v2327 = vmax.f32 %v2319, 0.0
      %v2328 = vmax.f32 %v2320, 0.0
      %v2329 = vmax.f32 %v2321, 0.0
      %v2330 = vmax.f32 %v2322, 0.0
      %2333 = vrot.lane.b32.xlu0 %v2329, 2
      %v2334 = vpop.permute.xlu0 %2333
      %2335 = vrot.lane.b32.xlu0 %v2330, 2
      %v2336 = vpop.permute.xlu0 %2335
      %vm2337 = vcmask 15360
      %v2338 = vsel %vm2337, %v2334, %v2336
      %2347 = vrot.lane.b32.xlu0 %v2323, 2
      %v2348 = vpop.permute.xlu0 %2347
      %2349 = vrot.lane.b32.xlu0 %v2324, 2
      %v2350 = vpop.permute.xlu0 %2349
      %2351 = vrot.lane.b32.xlu0 %v2325, 2
      %v2352 = vpop.permute.xlu0 %2351
      %2353 = vrot.lane.b32.xlu0 %v2326, 2
      %v2354 = vpop.permute.xlu0 %2353
      %2355 = vrot.lane.b32.xlu0 %v2327, 2
      %v2356 = vpop.permute.xlu0 %2355
      %2357 = vrot.lane.b32.xlu0 %v2328, 2
      %v2358 = vpop.permute.xlu0 %2357
      %v2359 = vsel %vm2337, %v2348, %v2350
      %v2360 = vsel %vm2337, %v2350, %v2352
      %v2361 = vsel %vm2337, %v2352, %v2354
      %v2362 = vsel %vm2337, %v2354, %v2356
      %v2363 = vsel %vm2337, %v2356, %v2358
      %v2364 = vsel %vm2337, %v2358, %v2334
      %v2372 = vsel %vm2337, %v2336, %v2348
      %v2373 = vld [vmem:[%s6] ss:$8 sm:$0xf]
      %v2374 = vld [vmem:[%s6] ss:$8 sm:$0xf0]
      %v2375 = vor.u32 %v2373, %v2374
      %v2377 = vlaneseq
      %v2378 = vshrl.u32 %v2377, 7
      %v2379 = vsub.s32 0, %v2378
      %v2380 = vrot.slane %v2375, %v2379
      %v2381 = vlaneseq
      %v2382 = vshrl.u32 %v2381, 7
      %v2383 = vsub.s32 1, %v2382
      %v2384 = vrot.slane %v2375, %v2383
      %v2385 = vlaneseq
      %v2386 = vshrl.u32 %v2385, 7
      %v2387 = vsub.s32 2, %v2386
      %v2388 = vrot.slane %v2375, %v2387
      %v2389 = vlaneseq
      %v2390 = vshrl.u32 %v2389, 7
      %v2391 = vsub.s32 3, %v2390
      %v2392 = vrot.slane %v2375, %v2391
      %v2393 = vlaneseq
      %v2394 = vshrl.u32 %v2393, 7
      %v2395 = vsub.s32 4, %v2394
      %v2396 = vrot.slane %v2375, %v2395
      %v2397 = vlaneseq
      %v2398 = vshrl.u32 %v2397, 7
      %v2399 = vsub.s32 5, %v2398
      %v2400 = vrot.slane %v2375, %v2399
      %v2401 = vlaneseq
      %v2402 = vshrl.u32 %v2401, 7
      %v2403 = vsub.s32 6, %v2402
      %v2404 = vrot.slane %v2375, %v2403
      %v2405 = vlaneseq
      %v2406 = vshrl.u32 %v2405, 7
      %v2407 = vsub.s32 7, %v2406
      %v2408 = vrot.slane %v2375, %v2407
      %v2417 = vmul.f32 %v2338, %v2380
      %v2418 = vmul.f32 %v2372, %v2384
      %v2419 = vmul.f32 %v2359, %v2388
      %v2420 = vmul.f32 %v2360, %v2392
      %v2421 = vmul.f32 %v2361, %v2396
      %v2422 = vmul.f32 %v2362, %v2400
      %v2423 = vmul.f32 %v2363, %v2404
      %v2424 = vmul.f32 %v2364, %v2408
      %s2425 = scalar_lea.vmem %s6, 1
      %v2426 = vld [vmem:[%s2425] ss:$8 sm:$0xf]
      %v2427 = vld [vmem:[%s2425] ss:$8 sm:$0xf0]
      %v2428 = vor.u32 %v2426, %v2427
      %v2430 = vlaneseq
      %v2431 = vshrl.u32 %v2430, 7
      %v2432 = vsub.s32 0, %v2431
      %v2433 = vrot.slane %v2428, %v2432
      %v2434 = vlaneseq
      %v2435 = vshrl.u32 %v2434, 7
      %v2436 = vsub.s32 1, %v2435
      %v2437 = vrot.slane %v2428, %v2436
      %v2438 = vlaneseq
      %v2439 = vshrl.u32 %v2438, 7
      %v2440 = vsub.s32 2, %v2439
      %v2441 = vrot.slane %v2428, %v2440
      %v2442 = vlaneseq
      %v2443 = vshrl.u32 %v2442, 7
      %v2444 = vsub.s32 3, %v2443
      %v2445 = vrot.slane %v2428, %v2444
      %v2446 = vlaneseq
      %v2447 = vshrl.u32 %v2446, 7
      %v2448 = vsub.s32 4, %v2447
      %v2449 = vrot.slane %v2428, %v2448
      %v2450 = vlaneseq
      %v2451 = vshrl.u32 %v2450, 7
      %v2452 = vsub.s32 5, %v2451
      %v2453 = vrot.slane %v2428, %v2452
      %v2454 = vlaneseq
      %v2455 = vshrl.u32 %v2454, 7
      %v2456 = vsub.s32 6, %v2455
      %v2457 = vrot.slane %v2428, %v2456
      %v2458 = vlaneseq
      %v2459 = vshrl.u32 %v2458, 7
      %v2460 = vsub.s32 7, %v2459
      %v2461 = vrot.slane %v2428, %v2460
      %v2470 = vmul.f32 %v2330, %v2433
      %v2471 = vmul.f32 %v2323, %v2437
      %v2472 = vmul.f32 %v2324, %v2441
      %v2473 = vmul.f32 %v2325, %v2445
      %v2474 = vmul.f32 %v2326, %v2449
      %v2475 = vmul.f32 %v2327, %v2453
      %v2476 = vmul.f32 %v2328, %v2457
      %v2477 = vmul.f32 %v2329, %v2461
      %2478 = vrot.lane.b32.xlu0 %v2330, 126
      %v2479 = vpop.permute.xlu0 %2478
      %2481 = vrot.lane.b32.xlu0 %v2323, 126
      %v2482 = vpop.permute.xlu0 %2481
      %2483 = vrot.lane.b32.xlu0 %v2324, 126
      %v2484 = vpop.permute.xlu0 %2483
      %2485 = vrot.lane.b32.xlu0 %v2325, 126
      %v2486 = vpop.permute.xlu0 %2485
      %2487 = vrot.lane.b32.xlu0 %v2326, 126
      %v2488 = vpop.permute.xlu0 %2487
      %2489 = vrot.lane.b32.xlu0 %v2327, 126
      %v2490 = vpop.permute.xlu0 %2489
      %2491 = vrot.lane.b32.xlu0 %v2328, 126
      %v2492 = vpop.permute.xlu0 %2491
      %2493 = vrot.lane.b32.xlu0 %v2329, 126
      %v2494 = vpop.permute.xlu0 %2493
      %vm2495 = vcmask 1031168
      %v2496 = vsel %vm2495, %v2482, %v2484
      %v2497 = vsel %vm2495, %v2484, %v2486
      %v2498 = vsel %vm2495, %v2486, %v2488
      %v2499 = vsel %vm2495, %v2488, %v2490
      %v2500 = vsel %vm2495, %v2490, %v2492
      %v2501 = vsel %vm2495, %v2492, %v2494
      %v2502 = vsel %vm2495, %v2494, %v2479
      %v2511 = vsel %vm2495, %v2479, %v2482
      %s2512 = scalar_lea.vmem %s6, 2
      %v2513 = vld [vmem:[%s2512] ss:$8 sm:$0xf]
      %v2514 = vld [vmem:[%s2512] ss:$8 sm:$0xf0]
      %v2515 = vor.u32 %v2513, %v2514
      %v2517 = vlaneseq
      %v2518 = vshrl.u32 %v2517, 7
      %v2519 = vsub.s32 0, %v2518
      %v2520 = vrot.slane %v2515, %v2519
      %v2521 = vlaneseq
      %v2522 = vshrl.u32 %v2521, 7
      %v2523 = vsub.s32 1, %v2522
      %v2524 = vrot.slane %v2515, %v2523
      %v2525 = vlaneseq
      %v2526 = vshrl.u32 %v2525, 7
      %v2527 = vsub.s32 2, %v2526
      %v2528 = vrot.slane %v2515, %v2527
      %v2529 = vlaneseq
      %v2530 = vshrl.u32 %v2529, 7
      %v2531 = vsub.s32 3, %v2530
      %v2532 = vrot.slane %v2515, %v2531
      %v2533 = vlaneseq
      %v2534 = vshrl.u32 %v2533, 7
      %v2535 = vsub.s32 4, %v2534
      %v2536 = vrot.slane %v2515, %v2535
      %v2537 = vlaneseq
      %v2538 = vshrl.u32 %v2537, 7
      %v2539 = vsub.s32 5, %v2538
      %v2540 = vrot.slane %v2515, %v2539
      %v2541 = vlaneseq
      %v2542 = vshrl.u32 %v2541, 7
      %v2543 = vsub.s32 6, %v2542
      %v2544 = vrot.slane %v2515, %v2543
      %v2545 = vlaneseq
      %v2546 = vshrl.u32 %v2545, 7
      %v2547 = vsub.s32 7, %v2546
      %v2548 = vrot.slane %v2515, %v2547
      %v2557 = vmul.f32 %v2511, %v2520
      %v2558 = vmul.f32 %v2496, %v2524
      %v2559 = vmul.f32 %v2497, %v2528
      %v2560 = vmul.f32 %v2498, %v2532
      %v2561 = vmul.f32 %v2499, %v2536
      %v2562 = vmul.f32 %v2500, %v2540
      %v2563 = vmul.f32 %v2501, %v2544
      %v2564 = vmul.f32 %v2502, %v2548
      %s2565 = scalar_lea.vmem %s6, 3
      %v2566 = vld [vmem:[%s2565] ss:$8 sm:$0xf]
      %v2567 = vld [vmem:[%s2565] ss:$8 sm:$0xf0]
      %v2568 = vor.u32 %v2566, %v2567
      %v2570 = vlaneseq
      %v2571 = vshrl.u32 %v2570, 7
      %v2572 = vsub.s32 0, %v2571
      %v2573 = vrot.slane %v2568, %v2572
      %v2574 = vlaneseq
      %v2575 = vshrl.u32 %v2574, 7
      %v2576 = vsub.s32 1, %v2575
      %v2577 = vrot.slane %v2568, %v2576
      %v2578 = vlaneseq
      %v2579 = vshrl.u32 %v2578, 7
      %v2580 = vsub.s32 2, %v2579
      %v2581 = vrot.slane %v2568, %v2580
      %v2582 = vlaneseq
      %v2583 = vshrl.u32 %v2582, 7
      %v2584 = vsub.s32 3, %v2583
      %v2585 = vrot.slane %v2568, %v2584
      %v2586 = vlaneseq
      %v2587 = vshrl.u32 %v2586, 7
      %v2588 = vsub.s32 4, %v2587
      %v2589 = vrot.slane %v2568, %v2588
      %v2590 = vlaneseq
      %v2591 = vshrl.u32 %v2590, 7
      %v2592 = vsub.s32 5, %v2591
      %v2593 = vrot.slane %v2568, %v2592
      %v2594 = vlaneseq
      %v2595 = vshrl.u32 %v2594, 7
      %v2596 = vsub.s32 6, %v2595
      %v2597 = vrot.slane %v2568, %v2596
      %v2598 = vlaneseq
      %v2599 = vshrl.u32 %v2598, 7
      %v2600 = vsub.s32 7, %v2599
      %v2601 = vrot.slane %v2568, %v2600
      %v2610 = vmul.f32 %v2372, %v2573
      %v2611 = vmul.f32 %v2359, %v2577
      %v2612 = vmul.f32 %v2360, %v2581
      %v2613 = vmul.f32 %v2361, %v2585
      %v2614 = vmul.f32 %v2362, %v2589
      %v2615 = vmul.f32 %v2363, %v2593
      %v2616 = vmul.f32 %v2364, %v2597
      %v2617 = vmul.f32 %v2338, %v2601
      %s2618 = scalar_lea.vmem %s6, 5
      %v2619 = vld [vmem:[%s2618] ss:$8 sm:$0xf]
      %v2620 = vld [vmem:[%s2618] ss:$8 sm:$0xf0]
      %v2621 = vor.u32 %v2619, %v2620
      %v2623 = vlaneseq
      %v2624 = vshrl.u32 %v2623, 7
      %v2625 = vsub.s32 0, %v2624
      %v2626 = vrot.slane %v2621, %v2625
      %v2627 = vlaneseq
      %v2628 = vshrl.u32 %v2627, 7
      %v2629 = vsub.s32 1, %v2628
      %v2630 = vrot.slane %v2621, %v2629
      %v2631 = vlaneseq
      %v2632 = vshrl.u32 %v2631, 7
      %v2633 = vsub.s32 2, %v2632
      %v2634 = vrot.slane %v2621, %v2633
      %v2635 = vlaneseq
      %v2636 = vshrl.u32 %v2635, 7
      %v2637 = vsub.s32 3, %v2636
      %v2638 = vrot.slane %v2621, %v2637
      %v2639 = vlaneseq
      %v2640 = vshrl.u32 %v2639, 7
      %v2641 = vsub.s32 4, %v2640
      %v2642 = vrot.slane %v2621, %v2641
      %v2643 = vlaneseq
      %v2644 = vshrl.u32 %v2643, 7
      %v2645 = vsub.s32 5, %v2644
      %v2646 = vrot.slane %v2621, %v2645
      %v2647 = vlaneseq
      %v2648 = vshrl.u32 %v2647, 7
      %v2649 = vsub.s32 6, %v2648
      %v2650 = vrot.slane %v2621, %v2649
      %v2651 = vlaneseq
      %v2652 = vshrl.u32 %v2651, 7
      %v2653 = vsub.s32 7, %v2652
      %v2654 = vrot.slane %v2621, %v2653
      %v2663 = vmul.f32 %v2496, %v2626
      %v2664 = vmul.f32 %v2497, %v2630
      %v2665 = vmul.f32 %v2498, %v2634
      %v2666 = vmul.f32 %v2499, %v2638
      %v2667 = vmul.f32 %v2500, %v2642
      %v2668 = vmul.f32 %v2501, %v2646
      %v2669 = vmul.f32 %v2502, %v2650
      %v2670 = vmul.f32 %v2511, %v2654
      %s2671 = scalar_lea.vmem %s6, 6
      %v2672 = vld [vmem:[%s2671] ss:$8 sm:$0xf]
      %v2673 = vld [vmem:[%s2671] ss:$8 sm:$0xf0]
      %v2674 = vor.u32 %v2672, %v2673
      %v2676 = vlaneseq
      %v2677 = vshrl.u32 %v2676, 7
      %v2678 = vsub.s32 0, %v2677
      %v2679 = vrot.slane %v2674, %v2678
      %v2680 = vlaneseq
      %v2681 = vshrl.u32 %v2680, 7
      %v2682 = vsub.s32 1, %v2681
      %v2683 = vrot.slane %v2674, %v2682
      %v2684 = vlaneseq
      %v2685 = vshrl.u32 %v2684, 7
      %v2686 = vsub.s32 2, %v2685
      %v2687 = vrot.slane %v2674, %v2686
      %v2688 = vlaneseq
      %v2689 = vshrl.u32 %v2688, 7
      %v2690 = vsub.s32 3, %v2689
      %v2691 = vrot.slane %v2674, %v2690
      %v2692 = vlaneseq
      %v2693 = vshrl.u32 %v2692, 7
      %v2694 = vsub.s32 4, %v2693
      %v2695 = vrot.slane %v2674, %v2694
      %v2696 = vlaneseq
      %v2697 = vshrl.u32 %v2696, 7
      %v2698 = vsub.s32 5, %v2697
      %v2699 = vrot.slane %v2674, %v2698
      %v2700 = vlaneseq
      %v2701 = vshrl.u32 %v2700, 7
      %v2702 = vsub.s32 6, %v2701
      %v2703 = vrot.slane %v2674, %v2702
      %v2704 = vlaneseq
      %v2705 = vshrl.u32 %v2704, 7
      %v2706 = vsub.s32 7, %v2705
      %v2707 = vrot.slane %v2674, %v2706
      %v2716 = vmul.f32 %v2359, %v2679
      %v2717 = vmul.f32 %v2360, %v2683
      %v2718 = vmul.f32 %v2361, %v2687
      %v2719 = vmul.f32 %v2362, %v2691
      %v2720 = vmul.f32 %v2363, %v2695
      %v2721 = vmul.f32 %v2364, %v2699
      %v2722 = vmul.f32 %v2338, %v2703
      %v2723 = vmul.f32 %v2372, %v2707
      %s2724 = scalar_lea.vmem %s6, 7
      %v2725 = vld [vmem:[%s2724] ss:$8 sm:$0xf]
      %v2726 = vld [vmem:[%s2724] ss:$8 sm:$0xf0]
      %v2727 = vor.u32 %v2725, %v2726
      %v2729 = vlaneseq
      %v2730 = vshrl.u32 %v2729, 7
      %v2731 = vsub.s32 0, %v2730
      %v2732 = vrot.slane %v2727, %v2731
      %v2733 = vlaneseq
      %v2734 = vshrl.u32 %v2733, 7
      %v2735 = vsub.s32 1, %v2734
      %v2736 = vrot.slane %v2727, %v2735
      %v2737 = vlaneseq
      %v2738 = vshrl.u32 %v2737, 7
      %v2739 = vsub.s32 2, %v2738
      %v2740 = vrot.slane %v2727, %v2739
      %v2741 = vlaneseq
      %v2742 = vshrl.u32 %v2741, 7
      %v2743 = vsub.s32 3, %v2742
      %v2744 = vrot.slane %v2727, %v2743
      %v2745 = vlaneseq
      %v2746 = vshrl.u32 %v2745, 7
      %v2747 = vsub.s32 4, %v2746
      %v2748 = vrot.slane %v2727, %v2747
      %v2749 = vlaneseq
      %v2750 = vshrl.u32 %v2749, 7
      %v2751 = vsub.s32 5, %v2750
      %v2752 = vrot.slane %v2727, %v2751
      %v2753 = vlaneseq
      %v2754 = vshrl.u32 %v2753, 7
      %v2755 = vsub.s32 6, %v2754
      %v2756 = vrot.slane %v2727, %v2755
      %v2757 = vlaneseq
      %v2758 = vshrl.u32 %v2757, 7
      %v2759 = vsub.s32 7, %v2758
      %v2760 = vrot.slane %v2727, %v2759
      %v2769 = vmul.f32 %v2324, %v2732
      %v2770 = vmul.f32 %v2325, %v2736
      %v2771 = vmul.f32 %v2326, %v2740
      %v2772 = vmul.f32 %v2327, %v2744
      %v2773 = vmul.f32 %v2328, %v2748
      %v2774 = vmul.f32 %v2329, %v2752
      %v2775 = vmul.f32 %v2330, %v2756
      %v2776 = vmul.f32 %v2323, %v2760
      %s2777 = scalar_lea.vmem %s6, 64
      %v2778 = vld [vmem:[%s2777] ss:$8 sm:$0xf]
      %v2779 = vld [vmem:[%s2777] ss:$8 sm:$0xf0]
      %v2780 = vor.u32 %v2778, %v2779
      %v2782 = vlaneseq
      %v2783 = vshrl.u32 %v2782, 7
      %v2784 = vsub.s32 0, %v2783
      %v2785 = vrot.slane %v2780, %v2784
      %v2786 = vlaneseq
      %v2787 = vshrl.u32 %v2786, 7
      %v2788 = vsub.s32 1, %v2787
      %v2789 = vrot.slane %v2780, %v2788
      %v2790 = vlaneseq
      %v2791 = vshrl.u32 %v2790, 7
      %v2792 = vsub.s32 2, %v2791
      %v2793 = vrot.slane %v2780, %v2792
      %v2794 = vlaneseq
      %v2795 = vshrl.u32 %v2794, 7
      %v2796 = vsub.s32 3, %v2795
      %v2797 = vrot.slane %v2780, %v2796
      %v2798 = vlaneseq
      %v2799 = vshrl.u32 %v2798, 7
      %v2800 = vsub.s32 4, %v2799
      %v2801 = vrot.slane %v2780, %v2800
      %v2802 = vlaneseq
      %v2803 = vshrl.u32 %v2802, 7
      %v2804 = vsub.s32 5, %v2803
      %v2805 = vrot.slane %v2780, %v2804
      %v2806 = vlaneseq
      %v2807 = vshrl.u32 %v2806, 7
      %v2808 = vsub.s32 6, %v2807
      %v2809 = vrot.slane %v2780, %v2808
      %v2810 = vlaneseq
      %v2811 = vshrl.u32 %v2810, 7
      %v2812 = vsub.s32 7, %v2811
      %v2813 = vrot.slane %v2780, %v2812
      %v2822 = vmul.f32 %v2497, %v2785
      %v2823 = vmul.f32 %v2498, %v2789
      %v2824 = vmul.f32 %v2499, %v2793
      %v2825 = vmul.f32 %v2500, %v2797
      %v2826 = vmul.f32 %v2501, %v2801
      %v2827 = vmul.f32 %v2502, %v2805
      %v2828 = vmul.f32 %v2511, %v2809
      %v2829 = vmul.f32 %v2496, %v2813
      %v2838 = vrot.slane %v2470, 4
      %v2839 = vrot.slane %v2471, 4
      %v2840 = vrot.slane %v2472, 4
      %v2841 = vrot.slane %v2473, 4
      %v2842 = vrot.slane %v2474, 4
      %v2843 = vrot.slane %v2475, 4
      %v2844 = vrot.slane %v2476, 4
      %v2845 = vrot.slane %v2477, 4
      %v2862 = vrot.slane %v2610, 4
      %v2863 = vrot.slane %v2611, 4
      %v2864 = vrot.slane %v2612, 4
      %v2865 = vrot.slane %v2613, 4
      %v2866 = vrot.slane %v2614, 4
      %v2867 = vrot.slane %v2615, 4
      %v2868 = vrot.slane %v2616, 4
      %v2869 = vrot.slane %v2617, 4
      %v2886 = vrot.slane %v2663, 4
      %v2887 = vrot.slane %v2664, 4
      %v2888 = vrot.slane %v2665, 4
      %v2889 = vrot.slane %v2666, 4
      %v2890 = vrot.slane %v2667, 4
      %v2891 = vrot.slane %v2668, 4
      %v2892 = vrot.slane %v2669, 4
      %v2893 = vrot.slane %v2670, 4
      %v2910 = vrot.slane %v2769, 4
      %v2911 = vrot.slane %v2770, 4
      %v2912 = vrot.slane %v2771, 4
      %v2913 = vrot.slane %v2772, 4
      %v2914 = vrot.slane %v2773, 4
      %v2915 = vrot.slane %v2774, 4
      %v2916 = vrot.slane %v2775, 4
      %v2917 = vrot.slane %v2776, 4
      %v2926 = vsel %vm1785, %v2417, %v2838
      %v2927 = vsel %vm1785, %v2418, %v2839
      %v2928 = vsel %vm1785, %v2419, %v2840
      %v2929 = vsel %vm1785, %v2420, %v2841
      %v2930 = vsel %vm1785, %v2421, %v2842
      %v2931 = vsel %vm1785, %v2422, %v2843
      %v2932 = vsel %vm1785, %v2423, %v2844
      %v2933 = vsel %vm1785, %v2424, %v2845
      %v2934 = vsel %vm1785, %v2557, %v2862
      %v2935 = vsel %vm1785, %v2558, %v2863
      %v2936 = vsel %vm1785, %v2559, %v2864
      %v2937 = vsel %vm1785, %v2560, %v2865
      %v2938 = vsel %vm1785, %v2561, %v2866
      %v2939 = vsel %vm1785, %v2562, %v2867
      %v2940 = vsel %vm1785, %v2563, %v2868
      %v2941 = vsel %vm1785, %v2564, %v2869
      %v2942 = vsel %vm1785, %v2323, %v2886
      %v2943 = vsel %vm1785, %v2324, %v2887
      %v2944 = vsel %vm1785, %v2325, %v2888
      %v2945 = vsel %vm1785, %v2326, %v2889
      %v2946 = vsel %vm1785, %v2327, %v2890
      %v2947 = vsel %vm1785, %v2328, %v2891
      %v2948 = vsel %vm1785, %v2329, %v2892
      %v2949 = vsel %vm1785, %v2330, %v2893
      %v2950 = vsel %vm1785, %v2716, %v2910
      %v2951 = vsel %vm1785, %v2717, %v2911
      %v2952 = vsel %vm1785, %v2718, %v2912
      %v2953 = vsel %vm1785, %v2719, %v2913
      %v2954 = vsel %vm1785, %v2720, %v2914
      %v2955 = vsel %vm1785, %v2721, %v2915
      %v2956 = vsel %vm1785, %v2722, %v2916
      %v2957 = vsel %vm1785, %v2723, %v2917
      %v2958 = vpack.c.bf16 %v2934, %v2926
      %v2959 = vpack.c.bf16 %v2935, %v2927
      %v2960 = vpack.c.bf16 %v2936, %v2928
      %v2961 = vpack.c.bf16 %v2937, %v2929
      %v2962 = vpack.c.bf16 %v2938, %v2930
      %v2963 = vpack.c.bf16 %v2939, %v2931
      %v2964 = vpack.c.bf16 %v2940, %v2932
      %v2965 = vpack.c.bf16 %v2941, %v2933
      %v2966 = vpack.c.bf16 %v2950, %v2942
      %v2967 = vpack.c.bf16 %v2951, %v2943
      %v2968 = vpack.c.bf16 %v2952, %v2944
      %v2969 = vpack.c.bf16 %v2953, %v2945
      %v2970 = vpack.c.bf16 %v2954, %v2946
      %v2971 = vpack.c.bf16 %v2955, %v2947
      %v2972 = vpack.c.bf16 %v2956, %v2948
      %v2973 = vpack.c.bf16 %v2957, %v2949
      %v2974 = vpack.c.bf16 %v2822, %v2822
      %v2975 = vpack.c.bf16 %v2823, %v2823
      %v2976 = vpack.c.bf16 %v2824, %v2824
      %v2977 = vpack.c.bf16 %v2825, %v2825
      %v2978 = vpack.c.bf16 %v2826, %v2826
      %v2979 = vpack.c.bf16 %v2827, %v2827
      %v2980 = vpack.c.bf16 %v2828, %v2828
      %v2981 = vpack.c.bf16 %v2829, %v2829
      %v2982 = vld [vmem:[%s4] sm:$0xf]
      %vm2983 = vcmask 293888
      %v2985 = vsel %vm2983, %v2982, 0
      %v2988 = vsel %vm1751, %v2974, 0
      %v2991 = vsel %vm1751, %v2975, 0
      %v2994 = vsel %vm1751, %v2976, 0
      %v2997 = vsel %vm1751, %v2977, 0
      %v3000 = vsel %vm1751, %v2978, 0
      %v3003 = vsel %vm1751, %v2979, 0
      %v3006 = vsel %vm1751, %v2980, 0
      %v3009 = vsel %vm1751, %v2981, 0
      %3011 = vmatprep.subr.bf16.mxu0 %v2959
      %3012 = vmatpush1.bf16.msra.mxu0 %v2958
      %3013 = vmatprep.subr.bf16.mxu0 %v2967
      %3014 = vmatpush1.bf16.msra.mxu0 %v2966
      %3015 = vmatprep.subr.bf16.mxu0 %v2991
      %3016 = vmatpush1.bf16.msra.mxu0 %v2988
      %3017 = vmatprep.subr.bf16.mxu0 0
      %3018 = vmatpush1.bf16.msra.mxu0 0
      %3019 = vmatprep.subr.bf16.mxu0 0
      %3020 = vmatpush1.bf16.msra.mxu0 0
      %3021 = vmatprep.subr.bf16.mxu0 0
      %3022 = vmatpush1.bf16.msra.mxu0 0
      %3023 = vmatprep.subr.bf16.mxu0 0
      %3024 = vmatpush1.bf16.msra.mxu0 0
      %3025 = vmatprep.subr.bf16.mxu0 0
      %3026 = vmatpush1.bf16.msra.mxu0 0
      %3027 = vmatprep.subr.bf16.mxu0 0
      %3028 = vmatpush1.bf16.msra.mxu0 0
      %3029 = vmatprep.subr.bf16.mxu0 0
      %3030 = vmatpush1.bf16.msra.mxu0 0
      %3031 = vmatprep.subr.bf16.mxu0 0
      %3032 = vmatpush1.bf16.msra.mxu0 0
      %3033 = vmatprep.subr.bf16.mxu0 0
      %3034 = vmatpush1.bf16.msra.mxu0 0
      %3035 = vmatprep.subr.bf16.mxu0 0
      %3036 = vmatpush1.bf16.msra.mxu0 0
      %3037 = vmatprep.subr.bf16.mxu0 0
      %3038 = vmatpush1.bf16.msra.mxu0 0
      %3039 = vmatprep.subr.bf16.mxu0 0
      %3040 = vmatpush1.bf16.msra.mxu0 0
      %3041 = vmatprep.subr.bf16.mxu0 0
      %3042 = vmatpush1.bf16.msra.mxu0 0
      %3043 = vmatprep.mubr.bf16.mxu0 0
      %3044 = vmatmul.mubr.bf16.gmra.mrb[0].mxu0 %v2985
      %v3045 = vpop.f32.mrb[0].mxu0
      %v3046 = vadd.f32 0.0, %v3045
      %v3047 = vpop.f32.mrb[0].mxu0
      %v3048 = vadd.f32 0.0, %v3047
      %v3049 = vpop.f32.mrb[0].mxu0
      %v3050 = vpop.f32.mrb[0].mxu0
      %3051 = vdwg.mxu0
      %3052 = vmatprep.subr.bf16.mxu0 %v2961
      %3053 = vmatpush1.bf16.msra.mxu0 %v2960
      %3054 = vmatprep.subr.bf16.mxu0 %v2969
      %3055 = vmatpush1.bf16.msra.mxu0 %v2968
      %3056 = vmatprep.subr.bf16.mxu0 %v2997
      %3057 = vmatpush1.bf16.msra.mxu0 %v2994
      %3058 = vmatprep.subr.bf16.mxu0 0
      %3059 = vmatpush1.bf16.msra.mxu0 0
      %3060 = vmatprep.subr.bf16.mxu0 0
      %3061 = vmatpush1.bf16.msra.mxu0 0
      %3062 = vmatprep.subr.bf16.mxu0 0
      %3063 = vmatpush1.bf16.msra.mxu0 0
      %3064 = vmatprep.subr.bf16.mxu0 0
      %3065 = vmatpush1.bf16.msra.mxu0 0
      %3066 = vmatprep.subr.bf16.mxu0 0
      %3067 = vmatpush1.bf16.msra.mxu0 0
      %3068 = vmatprep.subr.bf16.mxu0 0
      %3069 = vmatpush1.bf16.msra.mxu0 0
      %3070 = vmatprep.subr.bf16.mxu0 0
      %3071 = vmatpush1.bf16.msra.mxu0 0
      %3072 = vmatprep.subr.bf16.mxu0 0
      %3073 = vmatpush1.bf16.msra.mxu0 0
      %3074 = vmatprep.subr.bf16.mxu0 0
      %3075 = vmatpush1.bf16.msra.mxu0 0
      %3076 = vmatprep.subr.bf16.mxu0 0
      %3077 = vmatpush1.bf16.msra.mxu0 0
      %3078 = vmatprep.subr.bf16.mxu0 0
      %3079 = vmatpush1.bf16.msra.mxu0 0
      %3080 = vmatprep.subr.bf16.mxu0 0
      %3081 = vmatpush1.bf16.msra.mxu0 0
      %3082 = vmatprep.subr.bf16.mxu0 0
      %3083 = vmatpush1.bf16.msra.mxu0 0
      %3084 = vmatprep.mubr.bf16.mxu0 0
      %3085 = vmatmul.mubr.bf16.gmra.mrb[0].mxu0 %v2985
      %v3086 = vpop.f32.mrb[0].mxu0
      %v3087 = vadd.f32 0.0, %v3086
      %v3088 = vpop.f32.mrb[0].mxu0
      %v3089 = vadd.f32 0.0, %v3088
      %v3090 = vpop.f32.mrb[0].mxu0
      %v3091 = vpop.f32.mrb[0].mxu0
      %3092 = vdwg.mxu0
      %3093 = vmatprep.subr.bf16.mxu0 %v2963
      %3094 = vmatpush1.bf16.msra.mxu0 %v2962
      %3095 = vmatprep.subr.bf16.mxu0 %v2971
      %3096 = vmatpush1.bf16.msra.mxu0 %v2970
      %3097 = vmatprep.subr.bf16.mxu0 %v3003
      %3098 = vmatpush1.bf16.msra.mxu0 %v3000
      %3099 = vmatprep.subr.bf16.mxu0 0
      %3100 = vmatpush1.bf16.msra.mxu0 0
      %3101 = vmatprep.subr.bf16.mxu0 0
      %3102 = vmatpush1.bf16.msra.mxu0 0
      %3103 = vmatprep.subr.bf16.mxu0 0
      %3104 = vmatpush1.bf16.msra.mxu0 0
      %3105 = vmatprep.subr.bf16.mxu0 0
      %3106 = vmatpush1.bf16.msra.mxu0 0
      %3107 = vmatprep.subr.bf16.mxu0 0
      %3108 = vmatpush1.bf16.msra.mxu0 0
      %3109 = vmatprep.subr.bf16.mxu0 0
      %3110 = vmatpush1.bf16.msra.mxu0 0
      %3111 = vmatprep.subr.bf16.mxu0 0
      %3112 = vmatpush1.bf16.msra.mxu0 0
      %3113 = vmatprep.subr.bf16.mxu0 0
      %3114 = vmatpush1.bf16.msra.mxu0 0
      %3115 = vmatprep.subr.bf16.mxu0 0
      %3116 = vmatpush1.bf16.msra.mxu0 0
      %3117 = vmatprep.subr.bf16.mxu0 0
      %3118 = vmatpush1.bf16.msra.mxu0 0
      %3119 = vmatprep.subr.bf16.mxu0 0
      %3120 = vmatpush1.bf16.msra.mxu0 0
      %3121 = vmatprep.subr.bf16.mxu0 0
      %3122 = vmatpush1.bf16.msra.mxu0 0
      %3123 = vmatprep.subr.bf16.mxu0 0
      %3124 = vmatpush1.bf16.msra.mxu0 0
      %3125 = vmatprep.mubr.bf16.mxu0 0
      %3126 = vmatmul.mubr.bf16.gmra.mrb[0].mxu0 %v2985
      %v3127 = vpop.f32.mrb[0].mxu0
      %v3128 = vadd.f32 0.0, %v3127
      %v3129 = vpop.f32.mrb[0].mxu0
      %v3130 = vadd.f32 0.0, %v3129
      %v3131 = vpop.f32.mrb[0].mxu0
      %v3132 = vpop.f32.mrb[0].mxu0
      %3133 = vdwg.mxu0
      %3134 = vmatprep.subr.bf16.mxu0 %v2965
      %3135 = vmatpush1.bf16.msra.mxu0 %v2964
      %3136 = vmatprep.subr.bf16.mxu0 %v2973
      %3137 = vmatpush1.bf16.msra.mxu0 %v2972
      %3138 = vmatprep.subr.bf16.mxu0 %v3009
      %3139 = vmatpush1.bf16.msra.mxu0 %v3006
      %3140 = vmatprep.subr.bf16.mxu0 0
      %3141 = vmatpush1.bf16.msra.mxu0 0
      %3142 = vmatprep.subr.bf16.mxu0 0
      %3143 = vmatpush1.bf16.msra.mxu0 0
      %3144 = vmatprep.subr.bf16.mxu0 0
      %3145 = vmatpush1.bf16.msra.mxu0 0
      %3146 = vmatprep.subr.bf16.mxu0 0
      %3147 = vmatpush1.bf16.msra.mxu0 0
      %3148 = vmatprep.subr.bf16.mxu0 0
      %3149 = vmatpush1.bf16.msra.mxu0 0
      %3150 = vmatprep.subr.bf16.mxu0 0
      %3151 = vmatpush1.bf16.msra.mxu0 0
      %3152 = vmatprep.subr.bf16.mxu0 0
      %3153 = vmatpush1.bf16.msra.mxu0 0
      %3154 = vmatprep.subr.bf16.mxu0 0
      %3155 = vmatpush1.bf16.msra.mxu0 0
      %3156 = vmatprep.subr.bf16.mxu0 0
      %3157 = vmatpush1.bf16.msra.mxu0 0
      %3158 = vmatprep.subr.bf16.mxu0 0
      %3159 = vmatpush1.bf16.msra.mxu0 0
      %3160 = vmatprep.subr.bf16.mxu0 0
      %3161 = vmatpush1.bf16.msra.mxu0 0
      %3162 = vmatprep.subr.bf16.mxu0 0
      %3163 = vmatpush1.bf16.msra.mxu0 0
      %3164 = vmatprep.subr.bf16.mxu0 0
      %3165 = vmatpush1.bf16.msra.mxu0 0
      %3166 = vmatprep.mubr.bf16.mxu0 0
      %3167 = vmatmul.mubr.bf16.gmra.mrb[0].mxu0 %v2985
      %v3168 = vpop.f32.mrb[0].mxu0
      %v3169 = vadd.f32 0.0, %v3168
      %v3170 = vpop.f32.mrb[0].mxu0
      %v3171 = vadd.f32 0.0, %v3170
      %v3172 = vpop.f32.mrb[0].mxu0
      %v3173 = vpop.f32.mrb[0].mxu0
      %3174 = vdwg.mxu0
      %v3175 = vmax.f32 %v3046, %v3048
      %v3176 = vmax.f32 %v3087, %v3089
      %v3177 = vmax.f32 %v3128, %v3130
      %v3178 = vmax.f32 %v3169, %v3171
      %3183 = vrot.lane.b32.xlu0 %v3175, 126
      %v3184 = vpop.permute.xlu0 %3183
      %3185 = vrot.lane.b32.xlu0 %v3176, 126
      %v3186 = vpop.permute.xlu0 %3185
      %3187 = vrot.lane.b32.xlu0 %v3177, 126
      %v3188 = vpop.permute.xlu0 %3187
      %3189 = vrot.lane.b32.xlu0 %v3178, 126
      %v3190 = vpop.permute.xlu0 %3189
      %v3191 = vsel %vm2495, %v3184, %v3186
      %v3192 = vsel %vm2495, %v3186, %v3188
      %v3193 = vsel %vm2495, %v3188, %v3190
      %v3199 = vsel %vm2495, %v3190, %v3184
      %v3200 = vmax.f32 %v3175, %v3191
      %v3201 = vmax.f32 %v3176, %v3192
      %v3202 = vmax.f32 %v3177, %v3193
      %v3203 = vmax.f32 %v3178, %v3199
      %v3204 = vld [vmem:[%s5] sm:$0xff]
      %3206 = vset.pattern.permute.xlu0 0
      %3207 = vperm.xlu0 %3206, %v3204
      %v3208 = vpop.permute.xlu0 %3207
      %v3210 = vadd.f32 %v3200, %v3208
      %v3211 = vadd.f32 %v3201, %v3208
      %v3212 = vadd.f32 %v3202, %v3208
      %v3213 = vadd.f32 %v3203, %v3208
      %v3214 = vmax.f32 %v3210, 0.0
      %v3215 = vmax.f32 %v3211, 0.0
      %v3216 = vmax.f32 %v3212, 0.0
      %v3217 = vmax.f32 %v3213, 0.0
      %3219 = vrot.lane.b32.xlu0 %v3215, 16
      %v3220 = vpop.permute.xlu0 %3219
      %3223 = vrot.lane.b32.xlu0 %v3216, 32
      %v3224 = vpop.permute.xlu0 %3223
      %3227 = vrot.lane.b32.xlu0 %v3217, 48
      %v3228 = vpop.permute.xlu0 %3227
      %3231 = vrot.lane.b32.xlu0 %v3214, 48
      %v3232 = vpop.permute.xlu0 %3231
      %3234 = vrot.lane.b32.xlu0 %v3215, 64
      %v3235 = vpop.permute.xlu0 %3234
      %3237 = vrot.lane.b32.xlu0 %v3216, 80
      %v3238 = vpop.permute.xlu0 %3237
      %3240 = vrot.lane.b32.xlu0 %v3217, 96
      %v3241 = vpop.permute.xlu0 %3240
      %3243 = vrot.lane.b32.xlu0 %v3214, 96
      %v3244 = vpop.permute.xlu0 %3243
      %3246 = vrot.lane.b32.xlu0 %v3215, 112
      %v3247 = vpop.permute.xlu0 %3246
      %3249 = vrot.lane.b32.xlu0 %v3217, 16
      %v3250 = vpop.permute.xlu0 %3249
      %3252 = vrot.lane.b32.xlu0 %v3214, 16
      %v3253 = vpop.permute.xlu0 %3252
      %3255 = vrot.lane.b32.xlu0 %v3215, 32
      %v3256 = vpop.permute.xlu0 %3255
      %3258 = vrot.lane.b32.xlu0 %v3216, 48
      %v3259 = vpop.permute.xlu0 %3258
      %3261 = vrot.lane.b32.xlu0 %v3217, 64
      %v3262 = vpop.permute.xlu0 %3261
      %vm3264 = vcmask 130048
      %v3265 = vsel %vm3264, %v3214, %v3220
      %vm3266 = vcmask 261120
      %v3267 = vsel %vm3266, %v3265, %v3224
      %vm3268 = vcmask 392192
      %v3269 = vsel %vm3268, %v3267, %v3228
      %vm3270 = vcmask 523264
      %v3271 = vsel %vm3270, %v3269, %v3232
      %vm3272 = vcmask 654336
      %v3273 = vsel %vm3272, %v3271, %v3235
      %vm3274 = vcmask 785408
      %v3275 = vsel %vm3274, %v3273, %v3238
      %vm3276 = vcmask 916480
      %v3277 = vsel %vm3276, %v3275, %v3241
      %v3278 = vsel %vm3264, %v3244, %v3247
      %v3279 = vsel %vm3266, %v3278, %v3216
      %v3280 = vsel %vm3268, %v3279, %v3250
      %v3281 = vsel %vm3270, %v3280, %v3253
      %v3282 = vsel %vm3272, %v3281, %v3256
      %v3283 = vsel %vm3274, %v3282, %v3259
      %v3284 = vsel %vm3276, %v3283, %v3262
      %3285 = vrot.lane.b32.xlu0 %v3214, 64
      %v3286 = vpop.permute.xlu0 %3285
      %3288 = vrot.lane.b32.xlu0 %v3215, 80
      %v3289 = vpop.permute.xlu0 %3288
      %3291 = vrot.lane.b32.xlu0 %v3216, 96
      %v3292 = vpop.permute.xlu0 %3291
      %3294 = vrot.lane.b32.xlu0 %v3217, 112
      %v3295 = vpop.permute.xlu0 %3294
      %3297 = vrot.lane.b32.xlu0 %v3214, 112
      %v3298 = vpop.permute.xlu0 %3297
      %3300 = vrot.lane.b32.xlu0 %v3216, 16
      %v3301 = vpop.permute.xlu0 %3300
      %3303 = vrot.lane.b32.xlu0 %v3217, 32
      %v3304 = vpop.permute.xlu0 %3303
      %3306 = vrot.lane.b32.xlu0 %v3214, 32
      %v3307 = vpop.permute.xlu0 %3306
      %3309 = vrot.lane.b32.xlu0 %v3215, 48
      %v3310 = vpop.permute.xlu0 %3309
      %3312 = vrot.lane.b32.xlu0 %v3216, 64
      %v3313 = vpop.permute.xlu0 %3312
      %3315 = vrot.lane.b32.xlu0 %v3217, 80
      %v3316 = vpop.permute.xlu0 %3315
      %3318 = vrot.lane.b32.xlu0 %v3214, 80
      %v3319 = vpop.permute.xlu0 %3318
      %3321 = vrot.lane.b32.xlu0 %v3215, 96
      %v3322 = vpop.permute.xlu0 %3321
      %3324 = vrot.lane.b32.xlu0 %v3216, 112
      %v3325 = vpop.permute.xlu0 %3324
      %v3327 = vsel %vm3264, %v3286, %v3289
      %v3328 = vsel %vm3266, %v3327, %v3292
      %v3329 = vsel %vm3268, %v3328, %v3295
      %v3330 = vsel %vm3270, %v3329, %v3298
      %v3331 = vsel %vm3272, %v3330, %v3215
      %v3332 = vsel %vm3274, %v3331, %v3301
      %v3333 = vsel %vm3276, %v3332, %v3304
      %v3334 = vsel %vm3264, %v3307, %v3310
      %v3335 = vsel %vm3266, %v3334, %v3313
      %v3336 = vsel %vm3268, %v3335, %v3316
      %v3337 = vsel %vm3270, %v3336, %v3319
      %v3338 = vsel %vm3272, %v3337, %v3322
      %v3339 = vsel %vm3274, %v3338, %v3325
      %v3340 = vsel %vm3276, %v3339, %v3217
      %v3342 = vrot.slane %v3277, 1
      %3343 = vrot.lane.b32.xlu0 %v3342, 64
      %v3344 = vpop.permute.xlu0 %3343
      %v3346 = vrot.slane %v3277, 2
      %v3348 = vrot.slane %v3277, 3
      %3349 = vrot.lane.b32.xlu0 %v3348, 64
      %v3350 = vpop.permute.xlu0 %3349
      %v3352 = vrot.slane %v3277, 4
      %v3354 = vrot.slane %v3277, 5
      %3355 = vrot.lane.b32.xlu0 %v3354, 64
      %v3356 = vpop.permute.xlu0 %3355
      %v3358 = vrot.slane %v3277, 6
      %v3360 = vrot.slane %v3277, 7
      %3361 = vrot.lane.b32.xlu0 %v3360, 64
      %v3362 = vpop.permute.xlu0 %3361
      %v3364 = vsel %vm3270, %v3277, %v3344
      %v3365 = vsel %vm3270, %v3346, %v3350
      %v3366 = vsel %vm3270, %v3352, %v3356
      %v3367 = vsel %vm3270, %v3358, %v3362
      %3368 = vrot.lane.b32.xlu0 %v3277, 64
      %v3369 = vpop.permute.xlu0 %3368
      %3372 = vrot.lane.b32.xlu0 %v3346, 64
      %v3373 = vpop.permute.xlu0 %3372
      %3376 = vrot.lane.b32.xlu0 %v3352, 64
      %v3377 = vpop.permute.xlu0 %3376
      %3380 = vrot.lane.b32.xlu0 %v3358, 64
      %v3381 = vpop.permute.xlu0 %3380
      %v3384 = vsel %vm3270, %v3369, %v3342
      %v3385 = vsel %vm3270, %v3373, %v3348
      %v3386 = vsel %vm3270, %v3377, %v3354
      %v3387 = vsel %vm3270, %v3381, %v3360
      %v3389 = vrot.slane %v3284, 1
      %3390 = vrot.lane.b32.xlu0 %v3389, 64
      %v3391 = vpop.permute.xlu0 %3390
      %v3393 = vrot.slane %v3284, 2
      %v3395 = vrot.slane %v3284, 3
      %3396 = vrot.lane.b32.xlu0 %v3395, 64
      %v3397 = vpop.permute.xlu0 %3396
      %v3399 = vrot.slane %v3284, 4
      %v3401 = vrot.slane %v3284, 5
      %3402 = vrot.lane.b32.xlu0 %v3401, 64
      %v3403 = vpop.permute.xlu0 %3402
      %v3405 = vrot.slane %v3284, 6
      %v3407 = vrot.slane %v3284, 7
      %3408 = vrot.lane.b32.xlu0 %v3407, 64
      %v3409 = vpop.permute.xlu0 %3408
      %v3411 = vsel %vm3270, %v3284, %v3391
      %v3412 = vsel %vm3270, %v3393, %v3397
      %v3413 = vsel %vm3270, %v3399, %v3403
      %v3414 = vsel %vm3270, %v3405, %v3409
      %3415 = vrot.lane.b32.xlu0 %v3284, 64
      %v3416 = vpop.permute.xlu0 %3415
      %3419 = vrot.lane.b32.xlu0 %v3393, 64
      %v3420 = vpop.permute.xlu0 %3419
      %3423 = vrot.lane.b32.xlu0 %v3399, 64
      %v3424 = vpop.permute.xlu0 %3423
      %3427 = vrot.lane.b32.xlu0 %v3405, 64
      %v3428 = vpop.permute.xlu0 %3427
      %v3431 = vsel %vm3270, %v3416, %v3389
      %v3432 = vsel %vm3270, %v3420, %v3395
      %v3433 = vsel %vm3270, %v3424, %v3401
      %v3434 = vsel %vm3270, %v3428, %v3407
      %v3436 = vrot.slane %v3333, 1
      %3437 = vrot.lane.b32.xlu0 %v3436, 64
      %v3438 = vpop.permute.xlu0 %3437
      %v3440 = vrot.slane %v3333, 2
      %v3442 = vrot.slane %v3333, 3
      %3443 = vrot.lane.b32.xlu0 %v3442, 64
      %v3444 = vpop.permute.xlu0 %3443
      %v3446 = vrot.slane %v3333, 4
      %v3448 = vrot.slane %v3333, 5
      %3449 = vrot.lane.b32.xlu0 %v3448, 64
      %v3450 = vpop.permute.xlu0 %3449
      %v3452 = vrot.slane %v3333, 6
      %v3454 = vrot.slane %v3333, 7
      %3455 = vrot.lane.b32.xlu0 %v3454, 64
      %v3456 = vpop.permute.xlu0 %3455
      %v3458 = vsel %vm3270, %v3333, %v3438
      %v3459 = vsel %vm3270, %v3440, %v3444
      %v3460 = vsel %vm3270, %v3446, %v3450
      %v3461 = vsel %vm3270, %v3452, %v3456
      %3462 = vrot.lane.b32.xlu0 %v3333, 64
      %v3463 = vpop.permute.xlu0 %3462
      %3466 = vrot.lane.b32.xlu0 %v3440, 64
      %v3467 = vpop.permute.xlu0 %3466
      %3470 = vrot.lane.b32.xlu0 %v3446, 64
      %v3471 = vpop.permute.xlu0 %3470
      %3474 = vrot.lane.b32.xlu0 %v3452, 64
      %v3475 = vpop.permute.xlu0 %3474
      %v3478 = vsel %vm3270, %v3463, %v3436
      %v3479 = vsel %vm3270, %v3467, %v3442
      %v3480 = vsel %vm3270, %v3471, %v3448
      %v3481 = vsel %vm3270, %v3475, %v3454
      %v3483 = vrot.slane %v3340, 1
      %3484 = vrot.lane.b32.xlu0 %v3483, 64
      %v3485 = vpop.permute.xlu0 %3484
      %v3487 = vrot.slane %v3340, 2
      %v3489 = vrot.slane %v3340, 3
      %3490 = vrot.lane.b32.xlu0 %v3489, 64
      %v3491 = vpop.permute.xlu0 %3490
      %v3493 = vrot.slane %v3340, 4
      %v3495 = vrot.slane %v3340, 5
      %3496 = vrot.lane.b32.xlu0 %v3495, 64
      %v3497 = vpop.permute.xlu0 %3496
      %v3499 = vrot.slane %v3340, 6
      %v3501 = vrot.slane %v3340, 7
      %3502 = vrot.lane.b32.xlu0 %v3501, 64
      %v3503 = vpop.permute.xlu0 %3502
      %v3505 = vsel %vm3270, %v3340, %v3485
      %v3506 = vsel %vm3270, %v3487, %v3491
      %v3507 = vsel %vm3270, %v3493, %v3497
      %v3508 = vsel %vm3270, %v3499, %v3503
      %3509 = vrot.lane.b32.xlu0 %v3340, 64
      %v3510 = vpop.permute.xlu0 %3509
      %3513 = vrot.lane.b32.xlu0 %v3487, 64
      %v3514 = vpop.permute.xlu0 %3513
      %3517 = vrot.lane.b32.xlu0 %v3493, 64
      %v3518 = vpop.permute.xlu0 %3517
      %3521 = vrot.lane.b32.xlu0 %v3499, 64
      %v3522 = vpop.permute.xlu0 %3521
      %v3525 = vsel %vm3270, %v3510, %v3483
      %v3526 = vsel %vm3270, %v3514, %v3489
      %v3527 = vsel %vm3270, %v3518, %v3495
      %v3528 = vsel %vm3270, %v3522, %v3501
      %v3533 = vrot.slane %v3384, 7
      %v3534 = vrot.slane %v3385, 7
      %v3535 = vrot.slane %v3386, 7
      %v3536 = vrot.slane %v3387, 7
      %v3545 = vrot.slane %v3411, 6
      %v3546 = vrot.slane %v3412, 6
      %v3547 = vrot.slane %v3413, 6
      %v3548 = vrot.slane %v3414, 6
      %v3557 = vrot.slane %v3431, 5
      %v3558 = vrot.slane %v3432, 5
      %v3559 = vrot.slane %v3433, 5
      %v3560 = vrot.slane %v3434, 5
      %v3569 = vrot.slane %v3458, 4
      %v3570 = vrot.slane %v3459, 4
      %v3571 = vrot.slane %v3460, 4
      %v3572 = vrot.slane %v3461, 4
      %v3581 = vrot.slane %v3478, 3
      %v3582 = vrot.slane %v3479, 3
      %v3583 = vrot.slane %v3480, 3
      %v3584 = vrot.slane %v3481, 3
      %v3593 = vrot.slane %v3505, 2
      %v3594 = vrot.slane %v3506, 2
      %v3595 = vrot.slane %v3507, 2
      %v3596 = vrot.slane %v3508, 2
      %v3605 = vrot.slane %v3525, 1
      %v3606 = vrot.slane %v3526, 1
      %v3607 = vrot.slane %v3527, 1
      %v3608 = vrot.slane %v3528, 1
      %v3613 = vsel %vm1734, %v3364, %v3533
      %v3614 = vsel %vm1734, %v3365, %v3534
      %v3615 = vsel %vm1734, %v3366, %v3535
      %v3616 = vsel %vm1734, %v3367, %v3536
      %v3617 = vsel %vm1751, %v3613, %v3545
      %v3618 = vsel %vm1751, %v3614, %v3546
      %v3619 = vsel %vm1751, %v3615, %v3547
      %v3620 = vsel %vm1751, %v3616, %v3548
      %v3621 = vsel %vm1768, %v3617, %v3557
      %v3622 = vsel %vm1768, %v3618, %v3558
      %v3623 = vsel %vm1768, %v3619, %v3559
      %v3624 = vsel %vm1768, %v3620, %v3560
      %v3625 = vsel %vm1785, %v3621, %v3569
      %v3626 = vsel %vm1785, %v3622, %v3570
      %v3627 = vsel %vm1785, %v3623, %v3571
      %v3628 = vsel %vm1785, %v3624, %v3572
      %v3629 = vsel %vm1802, %v3625, %v3581
      %v3630 = vsel %vm1802, %v3626, %v3582
      %v3631 = vsel %vm1802, %v3627, %v3583
      %v3632 = vsel %vm1802, %v3628, %v3584
      %v3633 = vsel %vm1819, %v3629, %v3593
      %v3634 = vsel %vm1819, %v3630, %v3594
      %v3635 = vsel %vm1819, %v3631, %v3595
      %v3636 = vsel %vm1819, %v3632, %v3596
      %v3637 = vsel %vm1836, %v3633, %v3605
      %v3638 = vsel %vm1836, %v3634, %v3606
      %v3639 = vsel %vm1836, %v3635, %v3607
      %v3640 = vsel %vm1836, %v3636, %v3608
      %v3641 = vpack.c.bf16 %v3637, %v3637
      %v3642 = vpack.c.bf16 %v3638, %v3638
      %v3643 = vpack.c.bf16 %v3639, %v3639
      %v3644 = vpack.c.bf16 %v3640, %v3640
      %v3645 = vld [vmem:[%s7] sm:$0xf]
      %v3646 = vld [vmem:[%s7 + $0x4] sm:$0xf]
      %v3647 = vld [vmem:[%s7 + $0x8] sm:$0xf]
      %v3648 = vld [vmem:[%s7 + $0xc] sm:$0xf]
      %v3649 = vld [vmem:[%s7 + $0x10] sm:$0xf]
      %v3650 = vld [vmem:[%s7 + $0x14] sm:$0xf]
      %v3651 = vld [vmem:[%s7 + $0x18] sm:$0xf]
      %v3652 = vld [vmem:[%s7 + $0x1c] sm:$0xf]
      %v3653 = vld [vmem:[%s7 + $0x20] sm:$0xf]
      %v3654 = vld [vmem:[%s7 + $0x24] sm:$0xf]
      %v3655 = vld [vmem:[%s7 + $0x28] sm:$0xf]
      %v3656 = vld [vmem:[%s7 + $0x2c] sm:$0xf]
      %v3657 = vld [vmem:[%s7 + $0x30] sm:$0xf]
      %v3658 = vld [vmem:[%s7 + $0x34] sm:$0xf]
      %v3659 = vld [vmem:[%s7 + $0x38] sm:$0xf]
      %v3660 = vld [vmem:[%s7 + $0x3c] sm:$0xf]
      %v3661 = vld [vmem:[%s7 + $0x40] sm:$0xf]
      %v3662 = vld [vmem:[%s7 + $0x44] sm:$0xf]
      %v3663 = vld [vmem:[%s7 + $0x48] sm:$0xf]
      %v3664 = vld [vmem:[%s7 + $0x4c] sm:$0xf]
      %v3665 = vld [vmem:[%s7 + $0x50] sm:$0xf]
      %v3666 = vld [vmem:[%s7 + $0x54] sm:$0xf]
      %v3667 = vld [vmem:[%s7 + $0x58] sm:$0xf]
      %v3668 = vld [vmem:[%s7 + $0x5c] sm:$0xf]
      %v3669 = vld [vmem:[%s7 + $0x60] sm:$0xf]
      %v3670 = vld [vmem:[%s7 + $0x64] sm:$0xf]
      %v3671 = vld [vmem:[%s7 + $0x68] sm:$0xf]
      %v3672 = vld [vmem:[%s7 + $0x6c] sm:$0xf]
      %v3673 = vld [vmem:[%s7 + $0x70] sm:$0xf]
      %v3674 = vld [vmem:[%s7 + $0x74] sm:$0xf]
      %v3675 = vld [vmem:[%s7 + $0x78] sm:$0xf]
      %v3676 = vld [vmem:[%s7 + $0x7c] sm:$0xf]
      %v3677 = vld [vmem:[%s7 + $0x80] sm:$0xf]
      %v3678 = vld [vmem:[%s7 + $0x84] sm:$0xf]
      %v3679 = vld [vmem:[%s7 + $0x88] sm:$0xf]
      %v3680 = vld [vmem:[%s7 + $0x8c] sm:$0xf]
      %v3681 = vld [vmem:[%s7 + $0x90] sm:$0xf]
      %v3682 = vld [vmem:[%s7 + $0x94] sm:$0xf]
      %v3683 = vld [vmem:[%s7 + $0x98] sm:$0xf]
      %v3684 = vld [vmem:[%s7 + $0x9c] sm:$0xf]
      %v3685 = vld [vmem:[%s7 + $0xa0] sm:$0xf]
      %v3686 = vld [vmem:[%s7 + $0xa4] sm:$0xf]
      %v3687 = vld [vmem:[%s7 + $0xa8] sm:$0xf]
      %v3688 = vld [vmem:[%s7 + $0xac] sm:$0xf]
      %v3689 = vld [vmem:[%s7 + $0xb0] sm:$0xf]
      %v3690 = vld [vmem:[%s7 + $0xb4] sm:$0xf]
      %v3691 = vld [vmem:[%s7 + $0xb8] sm:$0xf]
      %v3692 = vld [vmem:[%s7 + $0xbc] sm:$0xf]
      %v3693 = vld [vmem:[%s7 + $0xc0] sm:$0xf]
      %v3694 = vld [vmem:[%s7 + $0xc4] sm:$0xf]
      %v3695 = vld [vmem:[%s7 + $0xc8] sm:$0xf]
      %v3696 = vld [vmem:[%s7 + $0xcc] sm:$0xf]
      %v3697 = vld [vmem:[%s7 + $0xd0] sm:$0xf]
      %v3698 = vld [vmem:[%s7 + $0xd4] sm:$0xf]
      %v3699 = vld [vmem:[%s7 + $0xd8] sm:$0xf]
      %v3700 = vld [vmem:[%s7 + $0xdc] sm:$0xf]
      %v3701 = vld [vmem:[%s7 + $0xe0] sm:$0xf]
      %v3702 = vld [vmem:[%s7 + $0xe4] sm:$0xf]
      %v3703 = vld [vmem:[%s7 + $0xe8] sm:$0xf]
      %v3704 = vld [vmem:[%s7 + $0xec] sm:$0xf]
      %v3705 = vld [vmem:[%s7 + $0xf0] sm:$0xf]
      %v3706 = vld [vmem:[%s7 + $0xf4] sm:$0xf]
      %v3707 = vld [vmem:[%s7 + $0xf8] sm:$0xf]
      %v3708 = vld [vmem:[%s7 + $0xfc] sm:$0xf]
      %v3709 = vld [vmem:[%s8] sm:$0x1]
      %v3711 = vlaneseq
      %v3712 = vshrl.u32 %v3711, 7
      %v3713 = vsub.s32 0, %v3712
      %v3714 = vrot.slane %v3709, %v3713
      %v3780 = vunpack.c.l.b16 %v3645
      %v3781 = vunpack.c.l.b16 %v3646
      %v3782 = vunpack.c.l.b16 %v3647
      %v3783 = vunpack.c.l.b16 %v3648
      %v3784 = vunpack.c.l.b16 %v3649
      %v3785 = vunpack.c.l.b16 %v3650
      %v3786 = vunpack.c.l.b16 %v3651
      %v3787 = vunpack.c.l.b16 %v3652
      %v3788 = vunpack.c.l.b16 %v3653
      %v3789 = vunpack.c.l.b16 %v3654
      %v3790 = vunpack.c.l.b16 %v3655
      %v3791 = vunpack.c.l.b16 %v3656
      %v3792 = vunpack.c.l.b16 %v3657
      %v3793 = vunpack.c.l.b16 %v3658
      %v3794 = vunpack.c.l.b16 %v3659
      %v3795 = vunpack.c.l.b16 %v3660
      %v3796 = vunpack.c.l.b16 %v3661
      %v3797 = vunpack.c.l.b16 %v3662
      %v3798 = vunpack.c.l.b16 %v3663
      %v3799 = vunpack.c.l.b16 %v3664
      %v3800 = vunpack.c.l.b16 %v3665
      %v3801 = vunpack.c.l.b16 %v3666
      %v3802 = vunpack.c.l.b16 %v3667
      %v3803 = vunpack.c.l.b16 %v3668
      %v3804 = vunpack.c.l.b16 %v3669
      %v3805 = vunpack.c.l.b16 %v3670
      %v3806 = vunpack.c.l.b16 %v3671
      %v3807 = vunpack.c.l.b16 %v3672
      %v3808 = vunpack.c.l.b16 %v3673
      %v3809 = vunpack.c.l.b16 %v3674
      %v3810 = vunpack.c.l.b16 %v3675
      %v3811 = vunpack.c.l.b16 %v3676
      %v3812 = vunpack.c.l.b16 %v3677
      %v3813 = vunpack.c.l.b16 %v3678
      %v3814 = vunpack.c.l.b16 %v3679
      %v3815 = vunpack.c.l.b16 %v3680
      %v3816 = vunpack.c.l.b16 %v3681
      %v3817 = vunpack.c.l.b16 %v3682
      %v3818 = vunpack.c.l.b16 %v3683
      %v3819 = vunpack.c.l.b16 %v3684
      %v3820 = vunpack.c.l.b16 %v3685
      %v3821 = vunpack.c.l.b16 %v3686
      %v3822 = vunpack.c.l.b16 %v3687
      %v3823 = vunpack.c.l.b16 %v3688
      %v3824 = vunpack.c.l.b16 %v3689
      %v3825 = vunpack.c.l.b16 %v3690
      %v3826 = vunpack.c.l.b16 %v3691
      %v3827 = vunpack.c.l.b16 %v3692
      %v3828 = vunpack.c.l.b16 %v3693
      %v3829 = vunpack.c.l.b16 %v3694
      %v3830 = vunpack.c.l.b16 %v3695
      %v3831 = vunpack.c.l.b16 %v3696
      %v3832 = vunpack.c.l.b16 %v3697
      %v3833 = vunpack.c.l.b16 %v3698
      %v3834 = vunpack.c.l.b16 %v3699
      %v3835 = vunpack.c.l.b16 %v3700
      %v3836 = vunpack.c.l.b16 %v3701
      %v3837 = vunpack.c.l.b16 %v3702
      %v3838 = vunpack.c.l.b16 %v3703
      %v3839 = vunpack.c.l.b16 %v3704
      %v3840 = vunpack.c.l.b16 %v3705
      %v3841 = vunpack.c.l.b16 %v3706
      %v3842 = vunpack.c.l.b16 %v3707
      %v3843 = vunpack.c.l.b16 %v3708
      %v3844 = vpack.c.b16 %v3781, %v3780
      %v3845 = vpack.c.b16 %v3783, %v3782
      %v3846 = vpack.c.b16 %v3785, %v3784
      %v3847 = vpack.c.b16 %v3787, %v3786
      %v3848 = vpack.c.b16 %v3789, %v3788
      %v3849 = vpack.c.b16 %v3791, %v3790
      %v3850 = vpack.c.b16 %v3793, %v3792
      %v3851 = vpack.c.b16 %v3795, %v3794
      %v3852 = vpack.c.b16 %v3797, %v3796
      %v3853 = vpack.c.b16 %v3799, %v3798
      %v3854 = vpack.c.b16 %v3801, %v3800
      %v3855 = vpack.c.b16 %v3803, %v3802
      %v3856 = vpack.c.b16 %v3805, %v3804
      %v3857 = vpack.c.b16 %v3807, %v3806
      %v3858 = vpack.c.b16 %v3809, %v3808
      %v3859 = vpack.c.b16 %v3811, %v3810
      %v3860 = vpack.c.b16 %v3813, %v3812
      %v3861 = vpack.c.b16 %v3815, %v3814
      %v3862 = vpack.c.b16 %v3817, %v3816
      %v3863 = vpack.c.b16 %v3819, %v3818
      %v3864 = vpack.c.b16 %v3821, %v3820
      %v3865 = vpack.c.b16 %v3823, %v3822
      %v3866 = vpack.c.b16 %v3825, %v3824
      %v3867 = vpack.c.b16 %v3827, %v3826
      %v3868 = vpack.c.b16 %v3829, %v3828
      %v3869 = vpack.c.b16 %v3831, %v3830
      %v3870 = vpack.c.b16 %v3833, %v3832
      %v3871 = vpack.c.b16 %v3835, %v3834
      %v3872 = vpack.c.b16 %v3837, %v3836
      %v3873 = vpack.c.b16 %v3839, %v3838
      %v3874 = vpack.c.b16 %v3841, %v3840
      %v3875 = vpack.c.b16 %v3843, %v3842
      %3908 = vmatprep.subr.bf16.mxu0 0
      %3909 = vmatpush1.bf16.msra.mxu0 %v3844
      %3910 = vmatprep.subr.bf16.mxu0 0
      %3911 = vmatpush1.bf16.msra.mxu0 %v3845
      %3912 = vmatprep.subr.bf16.mxu0 0
      %3913 = vmatpush1.bf16.msra.mxu0 %v3846
      %3914 = vmatprep.subr.bf16.mxu0 0
      %3915 = vmatpush1.bf16.msra.mxu0 %v3847
      %3916 = vmatprep.subr.bf16.mxu0 0
      %3917 = vmatpush1.bf16.msra.mxu0 %v3848
      %3918 = vmatprep.subr.bf16.mxu0 0
      %3919 = vmatpush1.bf16.msra.mxu0 %v3849
      %3920 = vmatprep.subr.bf16.mxu0 0
      %3921 = vmatpush1.bf16.msra.mxu0 %v3850
      %3922 = vmatprep.subr.bf16.mxu0 0
      %3923 = vmatpush1.bf16.msra.mxu0 %v3851
      %3924 = vmatprep.subr.bf16.mxu0 0
      %3925 = vmatpush1.bf16.msra.mxu0 %v3852
      %3926 = vmatprep.subr.bf16.mxu0 0
      %3927 = vmatpush1.bf16.msra.mxu0 %v3853
      %3928 = vmatprep.subr.bf16.mxu0 0
      %3929 = vmatpush1.bf16.msra.mxu0 %v3854
      %3930 = vmatprep.subr.bf16.mxu0 0
      %3931 = vmatpush1.bf16.msra.mxu0 %v3855
      %3932 = vmatprep.subr.bf16.mxu0 0
      %3933 = vmatpush1.bf16.msra.mxu0 %v3856
      %3934 = vmatprep.subr.bf16.mxu0 0
      %3935 = vmatpush1.bf16.msra.mxu0 %v3857
      %3936 = vmatprep.subr.bf16.mxu0 0
      %3937 = vmatpush1.bf16.msra.mxu0 %v3858
      %3938 = vmatprep.subr.bf16.mxu0 0
      %3939 = vmatpush1.bf16.msra.mxu0 %v3859
      %3940 = vmatprep.mubr.bf16.mxu0 %v3642
      %3941 = vmatmul.mubr.bf16.gmra.mrb[0].mxu0 %v3641
      %v3942 = vpop.f32.mrb[0].mxu0
      %v3943 = vadd.f32 %v3714, %v3942
      %v3944 = vpop.f32.mrb[0].mxu0
      %v3945 = vpop.f32.mrb[0].mxu0
      %v3946 = vpop.f32.mrb[0].mxu0
      %3947 = vdwg.mxu0
      %3948 = vmatprep.subr.bf16.mxu0 0
      %3949 = vmatpush1.bf16.msra.mxu0 %v3860
      %3950 = vmatprep.subr.bf16.mxu0 0
      %3951 = vmatpush1.bf16.msra.mxu0 %v3861
      %3952 = vmatprep.subr.bf16.mxu0 0
      %3953 = vmatpush1.bf16.msra.mxu0 %v3862
      %3954 = vmatprep.subr.bf16.mxu0 0
      %3955 = vmatpush1.bf16.msra.mxu0 %v3863
      %3956 = vmatprep.subr.bf16.mxu0 0
      %3957 = vmatpush1.bf16.msra.mxu0 %v3864
      %3958 = vmatprep.subr.bf16.mxu0 0
      %3959 = vmatpush1.bf16.msra.mxu0 %v3865
      %3960 = vmatprep.subr.bf16.mxu0 0
      %3961 = vmatpush1.bf16.msra.mxu0 %v3866
      %3962 = vmatprep.subr.bf16.mxu0 0
      %3963 = vmatpush1.bf16.msra.mxu0 %v3867
      %3964 = vmatprep.subr.bf16.mxu0 0
      %3965 = vmatpush1.bf16.msra.mxu0 %v3868
      %3966 = vmatprep.subr.bf16.mxu0 0
      %3967 = vmatpush1.bf16.msra.mxu0 %v3869
      %3968 = vmatprep.subr.bf16.mxu0 0
      %3969 = vmatpush1.bf16.msra.mxu0 %v3870
      %3970 = vmatprep.subr.bf16.mxu0 0
      %3971 = vmatpush1.bf16.msra.mxu0 %v3871
      %3972 = vmatprep.subr.bf16.mxu0 0
      %3973 = vmatpush1.bf16.msra.mxu0 %v3872
      %3974 = vmatprep.subr.bf16.mxu0 0
      %3975 = vmatpush1.bf16.msra.mxu0 %v3873
      %3976 = vmatprep.subr.bf16.mxu0 0
      %3977 = vmatpush1.bf16.msra.mxu0 %v3874
      %3978 = vmatprep.subr.bf16.mxu0 0
      %3979 = vmatpush1.bf16.msra.mxu0 %v3875
      %3980 = vmatprep.mubr.bf16.mxu0 %v3644
      %3981 = vmatmul.mubr.bf16.gmra.mrb[0].mxu0 %v3643
      %v3982 = vpop.f32.mrb[0].mxu0
      %v3983 = vadd.f32 %v3943, %v3982
      %v3984 = vpop.f32.mrb[0].mxu0
      %v3985 = vpop.f32.mrb[0].mxu0
      %v3986 = vpop.f32.mrb[0].mxu0
      %3987 = vdwg.mxu0
      %v3988 = vmax.f32 %v3983, 0.0
      %v3989 = vpack.c.bf16 %v3988, %v3988
      %v3990 = vld [vmem:[%s9] sm:$0xf]
      %v3991 = vld [vmem:[%s9 + $0x4] sm:$0xf]
      %v3992 = vld [vmem:[%s9 + $0x8] sm:$0xf]
      %v3993 = vld [vmem:[%s9 + $0xc] sm:$0xf]
      %v3994 = vld [vmem:[%s10] sm:$0x1]
      %v3996 = vlaneseq
      %v3997 = vshrl.u32 %v3996, 7
      %v3998 = vsub.s32 0, %v3997
      %v3999 = vrot.slane %v3994, %v3998
      %v4005 = vunpack.c.l.b16 %v3990
      %v4006 = vunpack.c.l.b16 %v3991
      %v4007 = vunpack.c.l.b16 %v3992
      %v4008 = vunpack.c.l.b16 %v3993
      %v4009 = vpack.c.b16 %v4006, %v4005
      %v4010 = vpack.c.b16 %v4008, %v4007
      %v4014 = vsel %vm3266, %v3989, 0
      %4016 = vmatprep.subr.bf16.mxu0 0
      %4017 = vmatpush1.bf16.msra.mxu0 %v4009
      %4018 = vmatprep.subr.bf16.mxu0 0
      %4019 = vmatpush1.bf16.msra.mxu0 %v4010
      %4020 = vmatprep.subr.bf16.mxu0 0
      %4021 = vmatpush1.bf16.msra.mxu0 0
      %4022 = vmatprep.subr.bf16.mxu0 0
      %4023 = vmatpush1.bf16.msra.mxu0 0
      %4024 = vmatprep.subr.bf16.mxu0 0
      %4025 = vmatpush1.bf16.msra.mxu0 0
      %4026 = vmatprep.subr.bf16.mxu0 0
      %4027 = vmatpush1.bf16.msra.mxu0 0
      %4028 = vmatprep.subr.bf16.mxu0 0
      %4029 = vmatpush1.bf16.msra.mxu0 0
      %4030 = vmatprep.subr.bf16.mxu0 0
      %4031 = vmatpush1.bf16.msra.mxu0 0
      %4032 = vmatprep.subr.bf16.mxu0 0
      %4033 = vmatpush1.bf16.msra.mxu0 0
      %4034 = vmatprep.subr.bf16.mxu0 0
      %4035 = vmatpush1.bf16.msra.mxu0 0
      %4036 = vmatprep.subr.bf16.mxu0 0
      %4037 = vmatpush1.bf16.msra.mxu0 0
      %4038 = vmatprep.subr.bf16.mxu0 0
      %4039 = vmatpush1.bf16.msra.mxu0 0
      %4040 = vmatprep.subr.bf16.mxu0 0
      %4041 = vmatpush1.bf16.msra.mxu0 0
      %4042 = vmatprep.subr.bf16.mxu0 0
      %4043 = vmatpush1.bf16.msra.mxu0 0
      %4044 = vmatprep.subr.bf16.mxu0 0
      %4045 = vmatpush1.bf16.msra.mxu0 0
      %4046 = vmatprep.subr.bf16.mxu0 0
      %4047 = vmatpush1.bf16.msra.mxu0 0
      %4048 = vmatprep.mubr.bf16.mxu0 0
      %4049 = vmatmul.mubr.bf16.gmra.mrb[0].mxu0 %v4014
      %v4050 = vpop.f32.mrb[0].mxu0
      %v4051 = vadd.f32 %v3999, %v4050
      %v4052 = vpop.f32.mrb[0].mxu0
      %v4053 = vpop.f32.mrb[0].mxu0
      %v4054 = vpop.f32.mrb[0].mxu0
      %4055 = vdwg.mxu0
      %vm4056 = vcmask 23552
      %4057 = vst.msk [vmem:[%s381] sm:$0xff] %vm4056, %v4051
      %p4058 = scmp.lt.s32.totalorder %s22, 1
      %s4059 = scalar_select %p4058, %s22, 1
      %s4060 = smul.addr %s4059, 8
      %s4061 = scalar_lea.vmem %s11, %s4060
      // Predicated region
      $region65: #{fwd.1} parent=63 // pred_check
        %p4062 = pneg %p276
      $region66: #{fwd.1} parent=63 // pred_check_branch
        %4064 = sbr.rel (%p4062) target = $region68
      $region67: #{fwd.1} parent=63 // pred_region
        _
      $region68: #{fwd.1} parent=63 // pred_fallthru
        _
    $region64: #{fwd.1} parent=5 // pred_fallthru
      _
    %p4065 = scmp.le.s32.totalorder 2, %s17
    // Predicated region
    $region69: #{fwd.1} parent=5 // pred_check
      %p4066 = pneg %p4065
    $region70: #{fwd.1} parent=5 // pred_check_branch
      %4068 = sbr.rel (%p4066) target = $region72
    $region71: #{fwd.1} parent=5 // pred_region
      %s4069 = ssub.s32 %s17, 2
      // Predicated region
      $region73: #{fwd.1} parent=71 // pred_check
        %p4070 = pneg %p282
      $region74: #{fwd.1} parent=71 // pred_check_branch
        %4072 = sbr.rel (%p4070) target = $region76
      $region75: #{fwd.1} parent=71 // pred_region
        %p4073 = scmp.lt.s32.totalorder %s23, 1
        %s4074 = scalar_select %p4073, %s23, 1
        %s4075 = smul.addr %s4074, 8
        %s4076 = scalar_lea.vmem %s11, %s4075
      $region76: #{fwd.1} parent=71 // pred_fallthru
        _
    $region72: #{fwd.1} parent=5 // pred_fallthru
      _
  $region6: #{fwd.1} parent=0 // loop_footer
    %s21 = sadd.s32 1, %s17
  $region7: #{fwd.1} parent=0 // loop_footer_branch
    %16 = sbr.rel target = $region3
  $region8: #{fwd.1} parent=0 // loop_exit
    _

</llo_original>
